<compile_context>
chip_gen: v6e
topology: v6e:2x2x1
jax: 0.10.0
libtpu: 0.0.40
codegen_flags: <defaults>
</compile_context>

<pallas_src>
import numpy as np

import jax
import jax.numpy as jnp
from jax import lax
from jax.experimental import pallas as pl
from jax.experimental.pallas import tpu as pltpu

_BF16 = jnp.bfloat16
_F32 = jnp.float32


# ----------------------------------------------------------------------------
# In-kernel helpers
# ----------------------------------------------------------------------------
def _mm(a, b):
    """MXU matmul: bf16 operands, f32 accumulation."""
    return jnp.dot(a.astype(_BF16), b.astype(_BF16),
                   preferred_element_type=_F32)


def _pair_rows_sel(half, phase):
    """(half, 2*half) 0/1 matrix S with S[k, 2k+phase] = 1 (row decimation)."""
    r = lax.broadcasted_iota(jnp.int32, (half, 2 * half), 0)
    c = lax.broadcasted_iota(jnp.int32, (half, 2 * half), 1)
    return jnp.where(c == 2 * r + phase, 1.0, 0.0).astype(_BF16)


def _pair_cols_sel(full, phase):
    """(full, full//2) 0/1 matrix S with S[2m+phase, m] = 1 (lane decimation)."""
    half = full // 2
    r = lax.broadcasted_iota(jnp.int32, (full, half), 0)
    c = lax.broadcasted_iota(jnp.int32, (full, half), 1)
    return jnp.where(r == 2 * c + phase, 1.0, 0.0).astype(_BF16)


def _maxpool_2x2(y, rows_half, cols_full):
    """2x2 / stride-2 max pool of a (2*rows_half, cols_full) activation.

    Valid because each channel occupies an even-width contiguous lane block,
    so adjacent lane pairs never straddle channels.  Uses selection matmuls +
    elementwise max (no strided slices / reshapes inside the kernel).
    """
    yh = jnp.maximum(_mm(_pair_rows_sel(rows_half, 0), y),
                     _mm(_pair_rows_sel(rows_half, 1), y))
    return jnp.maximum(_mm(yh, _pair_cols_sel(cols_full, 0)),
                       _mm(yh, _pair_cols_sel(cols_full, 1)))


# ----------------------------------------------------------------------------
# Fused LeNet5 kernel
# ----------------------------------------------------------------------------
def _lenet5_kernel(x_ref, w1_ref, b1_ref, w2_ref, b2_ref,
                   wf1_ref, bf1_ref, wf2_ref, bf2_ref, wf3_ref, bf3_ref,
                   o_ref):
    B = x_ref.shape[0]
    x = x_ref[...]                                    # (B, 28, 28) f32

    # ---- conv1 (1 -> 6, 5x5 valid) + ReLU ---------------------------------
    # rows: b*24 + i    lanes: co*24 + j
    acc1 = jnp.zeros((B * 24, 144), _F32)
    for di in range(5):
        xs = jnp.concatenate([x[b, di:di + 24, :] for b in range(B)], axis=0)
        acc1 = acc1 + _mm(xs, w1_ref[di])             # (B*24, 28) @ (28, 144)
    y1 = jnp.maximum(acc1 + b1_ref[...], 0.0)         # (B*24, 144)

    # ---- pool1: 24x24 -> 12x12 --------------------------------------------
    # rows: b*12 + i    lanes: ci*12 + j
    p1 = _maxpool_2x2(y1, B * 12, 144)                # (B*12, 72)

    # ---- conv2 (6 -> 16, 5x5 valid) + ReLU --------------------------------
    # rows: b*8 + i     lanes: co*8 + j
    acc2 = jnp.zeros((B * 8, 128), _F32)
    for ci in range(6):
        for di in range(5):
            ps = jnp.concatenate(
                [p1[b * 12 + di:b * 12 + di + 8, ci * 12:(ci + 1) * 12]
                 for b in range(B)], axis=0)          # (B*8, 12)
            acc2 = acc2 + _mm(ps, w2_ref[ci * 5 + di])   # @ (12, 128)
    y2 = jnp.maximum(acc2 + b2_ref[...], 0.0)         # (B*8, 128)

    # ---- pool2: 8x8 -> 4x4 --------------------------------------------------
    # rows: b*4 + i     lanes: co*4 + j
    p2 = _maxpool_2x2(y2, B * 4, 128)                 # (B*4, 64)

    # ---- fc1 (256 -> 120, zero-padded to 128) + ReLU ------------------------
    # The NCHW flatten permutation is folded into wf1: slab i maps the 64
    # lanes of pooled row (b*4 + i) onto the 128 fc1 outputs.
    accf = jnp.zeros((B, 128), _F32)
    for i in range(4):
        r = lax.broadcasted_iota(jnp.int32, (B, B * 4), 0)
        c = lax.broadcasted_iota(jnp.int32, (B, B * 4), 1)
        gather_i = jnp.where(c == 4 * r + i, 1.0, 0.0).astype(_BF16)
        accf = accf + _mm(_mm(gather_i, p2), wf1_ref[i])
    h = jnp.maximum(accf + bf1_ref[...], 0.0)         # (B, 128)

    # ---- fc2 (120 -> 84, padded) + ReLU, fc3 (84 -> out) + ReLU ------------
    h = jnp.maximum(_mm(h, wf2_ref[...]) + bf2_ref[...], 0.0)    # (B, 128)
    h = jnp.maximum(_mm(h, wf3_ref[...]) + bf3_ref[...], 0.0)    # (B, out)
    o_ref[...] = h


_VMEM = pl.BlockSpec(memory_space=pltpu.MemorySpace.VMEM)


def lenet5_forward(params, x_nchw):
    """Forward pass matching LeNet5.forward; x_nchw: (B, 1, 28, 28)."""
    B, C, H, W = x_nchw.shape
    assert (C, H, W) == (1, 28, 28), (C, H, W)
    out_dim = params["bf3"].shape[-1]
    x = x_nchw.reshape(B, 28, 28).astype(jnp.float32)
    return pl.pallas_call(
        _lenet5_kernel,
        out_shape=jax.ShapeDtypeStruct((B, out_dim), jnp.float32),
        in_specs=[_VMEM] * 11,
        out_specs=_VMEM,
    )(x,
      params["w1"], params["b1"], params["w2"], params["b2"],
      params["wf1"], params["bf1"], params["wf2"], params["bf2"],
      params["wf3"], params["bf3"])


# ----------------------------------------------------------------------------
# Parameter initialization (deterministic xavier_uniform, zero bias),
# pre-packed into the fused-kernel layout.
# ----------------------------------------------------------------------------
def _xavier_uniform(key, shape, fan_in, fan_out):
    bound = float(np.sqrt(6.0 / (fan_in + fan_out)))
    return jax.random.uniform(key, shape, jnp.float32, -bound, bound)


def init_lenet5_params(key, output_dim=10):
    ks = jax.random.split(key, 5)
    w1 = np.asarray(_xavier_uniform(ks[0], (6, 1, 5, 5), 1 * 25, 6 * 25))
    w2 = np.asarray(_xavier_uniform(ks[1], (16, 6, 5, 5), 6 * 25, 16 * 25))
    wf1 = np.asarray(_xavier_uniform(ks[2], (256, 120), 256, 120))
    wf2 = np.asarray(_xavier_uniform(ks[3], (120, 84), 120, 84))
    wf3 = np.asarray(_xavier_uniform(ks[4], (84, output_dim), 84, output_dim))
    b1 = np.zeros((6,), np.float32)
    b2 = np.zeros((16,), np.float32)

    # conv1 band slabs: w1s[di, j + dj, co*24 + j] = w1[co, 0, di, dj]
    w1s = np.zeros((5, 28, 144), np.float32)
    w1c = w1[:, 0, :, :]                                         # (6, 5, 5)
    co, di, dj, j = np.meshgrid(np.arange(6), np.arange(5), np.arange(5),
                                np.arange(24), indexing="ij")
    w1s[di, j + dj, co * 24 + j] = w1c[co, di, dj]
    b1cat = np.repeat(b1, 24)[None, :]                           # (1, 144)

    # conv2 band slabs: w2s[ci*5+di, j + dj, co*8 + j] = w2[co, ci, di, dj]
    w2s = np.zeros((30, 12, 128), np.float32)
    co, ci, di, dj, j = np.meshgrid(np.arange(16), np.arange(6), np.arange(5),
                                    np.arange(5), np.arange(8), indexing="ij")
    w2s[ci * 5 + di, j + dj, co * 8 + j] = w2[co, ci, di, dj]
    b2cat = np.repeat(b2, 8)[None, :]                            # (1, 128)

    # fc1: fold PyTorch NCHW flatten order (feature = co*16 + i*4 + j) into
    # the kernel's pooled layout (row-slab i, lane co*4 + j); pad 120 -> 128.
    wf1s = np.zeros((4, 64, 128), np.float32)
    co, i, j = np.meshgrid(np.arange(16), np.arange(4), np.arange(4),
                           indexing="ij")
    wf1s[i, co * 4 + j, :120] = wf1[co * 16 + i * 4 + j, :]
    bf1 = np.zeros((1, 128), np.float32)

    # fc2 / fc3: zero-pad widths to 128 (dead lanes stay exactly zero).
    wf2p = np.zeros((128, 128), np.float32)
    wf2p[:120, :84] = wf2
    bf2 = np.zeros((1, 128), np.float32)
    wf3p = np.zeros((128, output_dim), np.float32)
    wf3p[:84, :] = wf3
    bf3 = np.zeros((1, output_dim), np.float32)

    return {
        "w1": jnp.asarray(w1s, _BF16), "b1": jnp.asarray(b1cat, _F32),
        "w2": jnp.asarray(w2s, _BF16), "b2": jnp.asarray(b2cat, _F32),
        "wf1": jnp.asarray(wf1s, _BF16), "bf1": jnp.asarray(bf1, _F32),
        "wf2": jnp.asarray(wf2p, _BF16), "bf2": jnp.asarray(bf2, _F32),
        "wf3": jnp.asarray(wf3p, _BF16), "bf3": jnp.asarray(bf3, _F32),
    }


if __name__ == "__main__":
    key = jax.random.PRNGKey(0)
    pkey, xkey = jax.random.split(key)

    params = init_lenet5_params(pkey, output_dim=10)
    # The Linear(256, ...) head implies 28x28 single-channel input
    # (28 -> 24 -> 12 -> 8 -> 4; 16*4*4 = 256).  Small batch.
    x = jax.random.normal(xkey, (2, 1, 28, 28), dtype=jnp.float32)

    out = jax.block_until_ready(jax.jit(lenet5_forward)(params, x))
    assert out.shape == (2, 10), out.shape
    assert bool(jnp.all(jnp.isfinite(out))), "non-finite output"
    print("KERNEL_OK")
</pallas_src>

<mosaic_0001>
module attributes {stable_mosaic.version = 11 : i64} {
  func.func @_lenet5_kernel(%arg0: memref<2x28x28xf32, #tpu.memory_space<vmem>>, %arg1: memref<5x28x144xbf16, #tpu.memory_space<vmem>>, %arg2: memref<1x144xf32, #tpu.memory_space<vmem>>, %arg3: memref<30x12x128xbf16, #tpu.memory_space<vmem>>, %arg4: memref<1x128xf32, #tpu.memory_space<vmem>>, %arg5: memref<4x64x128xbf16, #tpu.memory_space<vmem>>, %arg6: memref<1x128xf32, #tpu.memory_space<vmem>>, %arg7: memref<128x128xbf16, #tpu.memory_space<vmem>>, %arg8: memref<1x128xf32, #tpu.memory_space<vmem>>, %arg9: memref<128x10xbf16, #tpu.memory_space<vmem>>, %arg10: memref<1x10xf32, #tpu.memory_space<vmem>>, %arg11: memref<2x10xf32, #tpu.memory_space<vmem>>) attributes {dimension_semantics = [], scalar_prefetch = 0 : i64, scratch_operands = 0 : i64, tpu.core_type = #tpu.core_type<tc>} {
    %c0 = arith.constant 0 : index
    %c0_0 = arith.constant 0 : index
    %c0_1 = arith.constant 0 : index
    %0 = vector.load %arg0[%c0, %c0_0, %c0_1] : memref<2x28x28xf32, #tpu.memory_space<vmem>>, vector<2x28x28xf32>
    %cst = arith.constant 0.000000e+00 : f32
    %1 = vector.broadcast %cst : f32 to vector<48x144xf32>
    %2 = vector.extract_strided_slice %0 {offsets = [0, 0, 0], sizes = [1, 24, 28], strides = [1, 1, 1]} : vector<2x28x28xf32> to vector<1x24x28xf32>
    %3 = vector.shape_cast %2 : vector<1x24x28xf32> to vector<24x28xf32>
    %4 = vector.extract_strided_slice %0 {offsets = [1, 0, 0], sizes = [1, 24, 28], strides = [1, 1, 1]} : vector<2x28x28xf32> to vector<1x24x28xf32>
    %5 = vector.shape_cast %4 : vector<1x24x28xf32> to vector<24x28xf32>
    %6 = tpu.concatenate %3, %5 in 0 : vector<24x28xf32>, vector<24x28xf32> -> vector<48x28xf32>
    %c0_2 = arith.constant 0 : index
    %c0_3 = arith.constant 0 : index
    %c0_4 = arith.constant 0 : index
    %7 = vector.load %arg1[%c0_2, %c0_3, %c0_4] : memref<5x28x144xbf16, #tpu.memory_space<vmem>>, vector<1x28x144xbf16>
    %8 = vector.shape_cast %7 : vector<1x28x144xbf16> to vector<28x144xbf16>
    %9 = arith.truncf %6 : vector<48x28xf32> to vector<48x28xbf16>
    %cst_5 = arith.constant dense<0.000000e+00> : vector<48x144xf32>
    %10 = tpu.matmul %9, %8, %cst_5 {dimension_numbers = #tpu.dot_dimension_numbers<[1], [0], [0], [1], [0, 0, 1, 1], [], []>} : vector<48x28xbf16>, vector<28x144xbf16>, vector<48x144xf32> -> vector<48x144xf32>
    %11 = arith.addf %1, %10 : vector<48x144xf32>
    %12 = vector.extract_strided_slice %0 {offsets = [0, 1, 0], sizes = [1, 24, 28], strides = [1, 1, 1]} : vector<2x28x28xf32> to vector<1x24x28xf32>
    %13 = vector.shape_cast %12 : vector<1x24x28xf32> to vector<24x28xf32>
    %14 = vector.extract_strided_slice %0 {offsets = [1, 1, 0], sizes = [1, 24, 28], strides = [1, 1, 1]} : vector<2x28x28xf32> to vector<1x24x28xf32>
    %15 = vector.shape_cast %14 : vector<1x24x28xf32> to vector<24x28xf32>
    %16 = tpu.concatenate %13, %15 in 0 : vector<24x28xf32>, vector<24x28xf32> -> vector<48x28xf32>
    %c1 = arith.constant 1 : index
    %c0_6 = arith.constant 0 : index
    %c0_7 = arith.constant 0 : index
    %17 = vector.load %arg1[%c1, %c0_6, %c0_7] : memref<5x28x144xbf16, #tpu.memory_space<vmem>>, vector<1x28x144xbf16>
    %18 = vector.shape_cast %17 : vector<1x28x144xbf16> to vector<28x144xbf16>
    %19 = arith.truncf %16 : vector<48x28xf32> to vector<48x28xbf16>
    %cst_8 = arith.constant dense<0.000000e+00> : vector<48x144xf32>
    %20 = tpu.matmul %19, %18, %cst_8 {dimension_numbers = #tpu.dot_dimension_numbers<[1], [0], [0], [1], [0, 0, 1, 1], [], []>} : vector<48x28xbf16>, vector<28x144xbf16>, vector<48x144xf32> -> vector<48x144xf32>
    %21 = arith.addf %11, %20 : vector<48x144xf32>
    %22 = vector.extract_strided_slice %0 {offsets = [0, 2, 0], sizes = [1, 24, 28], strides = [1, 1, 1]} : vector<2x28x28xf32> to vector<1x24x28xf32>
    %23 = vector.shape_cast %22 : vector<1x24x28xf32> to vector<24x28xf32>
    %24 = vector.extract_strided_slice %0 {offsets = [1, 2, 0], sizes = [1, 24, 28], strides = [1, 1, 1]} : vector<2x28x28xf32> to vector<1x24x28xf32>
    %25 = vector.shape_cast %24 : vector<1x24x28xf32> to vector<24x28xf32>
    %26 = tpu.concatenate %23, %25 in 0 : vector<24x28xf32>, vector<24x28xf32> -> vector<48x28xf32>
    %c2 = arith.constant 2 : index
    %c0_9 = arith.constant 0 : index
    %c0_10 = arith.constant 0 : index
    %27 = vector.load %arg1[%c2, %c0_9, %c0_10] : memref<5x28x144xbf16, #tpu.memory_space<vmem>>, vector<1x28x144xbf16>
    %28 = vector.shape_cast %27 : vector<1x28x144xbf16> to vector<28x144xbf16>
    %29 = arith.truncf %26 : vector<48x28xf32> to vector<48x28xbf16>
    %cst_11 = arith.constant dense<0.000000e+00> : vector<48x144xf32>
    %30 = tpu.matmul %29, %28, %cst_11 {dimension_numbers = #tpu.dot_dimension_numbers<[1], [0], [0], [1], [0, 0, 1, 1], [], []>} : vector<48x28xbf16>, vector<28x144xbf16>, vector<48x144xf32> -> vector<48x144xf32>
    %31 = arith.addf %21, %30 : vector<48x144xf32>
    %32 = vector.extract_strided_slice %0 {offsets = [0, 3, 0], sizes = [1, 24, 28], strides = [1, 1, 1]} : vector<2x28x28xf32> to vector<1x24x28xf32>
    %33 = vector.shape_cast %32 : vector<1x24x28xf32> to vector<24x28xf32>
    %34 = vector.extract_strided_slice %0 {offsets = [1, 3, 0], sizes = [1, 24, 28], strides = [1, 1, 1]} : vector<2x28x28xf32> to vector<1x24x28xf32>
    %35 = vector.shape_cast %34 : vector<1x24x28xf32> to vector<24x28xf32>
    %36 = tpu.concatenate %33, %35 in 0 : vector<24x28xf32>, vector<24x28xf32> -> vector<48x28xf32>
    %c3 = arith.constant 3 : index
    %c0_12 = arith.constant 0 : index
    %c0_13 = arith.constant 0 : index
    %37 = vector.load %arg1[%c3, %c0_12, %c0_13] : memref<5x28x144xbf16, #tpu.memory_space<vmem>>, vector<1x28x144xbf16>
    %38 = vector.shape_cast %37 : vector<1x28x144xbf16> to vector<28x144xbf16>
    %39 = arith.truncf %36 : vector<48x28xf32> to vector<48x28xbf16>
    %cst_14 = arith.constant dense<0.000000e+00> : vector<48x144xf32>
    %40 = tpu.matmul %39, %38, %cst_14 {dimension_numbers = #tpu.dot_dimension_numbers<[1], [0], [0], [1], [0, 0, 1, 1], [], []>} : vector<48x28xbf16>, vector<28x144xbf16>, vector<48x144xf32> -> vector<48x144xf32>
    %41 = arith.addf %31, %40 : vector<48x144xf32>
    %42 = vector.extract_strided_slice %0 {offsets = [0, 4, 0], sizes = [1, 24, 28], strides = [1, 1, 1]} : vector<2x28x28xf32> to vector<1x24x28xf32>
    %43 = vector.shape_cast %42 : vector<1x24x28xf32> to vector<24x28xf32>
    %44 = vector.extract_strided_slice %0 {offsets = [1, 4, 0], sizes = [1, 24, 28], strides = [1, 1, 1]} : vector<2x28x28xf32> to vector<1x24x28xf32>
    %45 = vector.shape_cast %44 : vector<1x24x28xf32> to vector<24x28xf32>
    %46 = tpu.concatenate %43, %45 in 0 : vector<24x28xf32>, vector<24x28xf32> -> vector<48x28xf32>
    %c4 = arith.constant 4 : index
    %c0_15 = arith.constant 0 : index
    %c0_16 = arith.constant 0 : index
    %47 = vector.load %arg1[%c4, %c0_15, %c0_16] : memref<5x28x144xbf16, #tpu.memory_space<vmem>>, vector<1x28x144xbf16>
    %48 = vector.shape_cast %47 : vector<1x28x144xbf16> to vector<28x144xbf16>
    %49 = arith.truncf %46 : vector<48x28xf32> to vector<48x28xbf16>
    %cst_17 = arith.constant dense<0.000000e+00> : vector<48x144xf32>
    %50 = tpu.matmul %49, %48, %cst_17 {dimension_numbers = #tpu.dot_dimension_numbers<[1], [0], [0], [1], [0, 0, 1, 1], [], []>} : vector<48x28xbf16>, vector<28x144xbf16>, vector<48x144xf32> -> vector<48x144xf32>
    %51 = arith.addf %41, %50 : vector<48x144xf32>
    %c0_18 = arith.constant 0 : index
    %c0_19 = arith.constant 0 : index
    %52 = vector.load %arg2[%c0_18, %c0_19] : memref<1x144xf32, #tpu.memory_space<vmem>>, vector<1x144xf32>
    %53 = vector.broadcast %52 : vector<1x144xf32> to vector<48x144xf32>
    %54 = arith.addf %51, %53 : vector<48x144xf32>
    %cst_20 = arith.constant 0.000000e+00 : f32
    %55 = vector.broadcast %cst_20 : f32 to vector<48x144xf32>
    %56 = arith.maximumf %54, %55 : vector<48x144xf32>
    %57 = tpu.iota {dimensions = array<i32: 0>} : vector<24x48xi32>
    %58 = tpu.iota {dimensions = array<i32: 1>} : vector<24x48xi32>
    %c2_i32 = arith.constant 2 : i32
    %59 = vector.broadcast %c2_i32 : i32 to vector<24x48xi32>
    %60 = arith.muli %59, %57 : vector<24x48xi32>
    %c0_i32 = arith.constant 0 : i32
    %61 = vector.broadcast %c0_i32 : i32 to vector<24x48xi32>
    %62 = arith.addi %60, %61 : vector<24x48xi32>
    %63 = arith.cmpi eq, %58, %62 : vector<24x48xi32>
    %cst_21 = arith.constant 1.000000e+00 : f32
    %cst_22 = arith.constant 0.000000e+00 : f32
    %64 = vector.broadcast %cst_21 : f32 to vector<24x48xf32>
    %65 = vector.broadcast %cst_22 : f32 to vector<24x48xf32>
    %66 = arith.select %63, %64, %65 : vector<24x48xi1>, vector<24x48xf32>
    %67 = arith.truncf %66 : vector<24x48xf32> to vector<24x48xbf16>
    %68 = arith.truncf %56 : vector<48x144xf32> to vector<48x144xbf16>
    %cst_23 = arith.constant dense<0.000000e+00> : vector<24x144xf32>
    %69 = tpu.matmul %67, %68, %cst_23 {dimension_numbers = #tpu.dot_dimension_numbers<[1], [0], [0], [1], [0, 0, 1, 1], [], []>} : vector<24x48xbf16>, vector<48x144xbf16>, vector<24x144xf32> -> vector<24x144xf32>
    %70 = tpu.iota {dimensions = array<i32: 0>} : vector<24x48xi32>
    %71 = tpu.iota {dimensions = array<i32: 1>} : vector<24x48xi32>
    %c2_i32_24 = arith.constant 2 : i32
    %72 = vector.broadcast %c2_i32_24 : i32 to vector<24x48xi32>
    %73 = arith.muli %72, %70 : vector<24x48xi32>
    %c1_i32 = arith.constant 1 : i32
    %74 = vector.broadcast %c1_i32 : i32 to vector<24x48xi32>
    %75 = arith.addi %73, %74 : vector<24x48xi32>
    %76 = arith.cmpi eq, %71, %75 : vector<24x48xi32>
    %cst_25 = arith.constant 1.000000e+00 : f32
    %cst_26 = arith.constant 0.000000e+00 : f32
    %77 = vector.broadcast %cst_25 : f32 to vector<24x48xf32>
    %78 = vector.broadcast %cst_26 : f32 to vector<24x48xf32>
    %79 = arith.select %76, %77, %78 : vector<24x48xi1>, vector<24x48xf32>
    %80 = arith.truncf %79 : vector<24x48xf32> to vector<24x48xbf16>
    %81 = arith.truncf %56 : vector<48x144xf32> to vector<48x144xbf16>
    %cst_27 = arith.constant dense<0.000000e+00> : vector<24x144xf32>
    %82 = tpu.matmul %80, %81, %cst_27 {dimension_numbers = #tpu.dot_dimension_numbers<[1], [0], [0], [1], [0, 0, 1, 1], [], []>} : vector<24x48xbf16>, vector<48x144xbf16>, vector<24x144xf32> -> vector<24x144xf32>
    %83 = arith.maximumf %69, %82 : vector<24x144xf32>
    %84 = tpu.iota {dimensions = array<i32: 0>} : vector<144x72xi32>
    %85 = tpu.iota {dimensions = array<i32: 1>} : vector<144x72xi32>
    %c2_i32_28 = arith.constant 2 : i32
    %86 = vector.broadcast %c2_i32_28 : i32 to vector<144x72xi32>
    %87 = arith.muli %86, %85 : vector<144x72xi32>
    %c0_i32_29 = arith.constant 0 : i32
    %88 = vector.broadcast %c0_i32_29 : i32 to vector<144x72xi32>
    %89 = arith.addi %87, %88 : vector<144x72xi32>
    %90 = arith.cmpi eq, %84, %89 : vector<144x72xi32>
    %cst_30 = arith.constant 1.000000e+00 : f32
    %cst_31 = arith.constant 0.000000e+00 : f32
    %91 = vector.broadcast %cst_30 : f32 to vector<144x72xf32>
    %92 = vector.broadcast %cst_31 : f32 to vector<144x72xf32>
    %93 = arith.select %90, %91, %92 : vector<144x72xi1>, vector<144x72xf32>
    %94 = arith.truncf %93 : vector<144x72xf32> to vector<144x72xbf16>
    %95 = arith.truncf %83 : vector<24x144xf32> to vector<24x144xbf16>
    %cst_32 = arith.constant dense<0.000000e+00> : vector<24x72xf32>
    %96 = tpu.matmul %95, %94, %cst_32 {dimension_numbers = #tpu.dot_dimension_numbers<[1], [0], [0], [1], [0, 0, 1, 1], [], []>} : vector<24x144xbf16>, vector<144x72xbf16>, vector<24x72xf32> -> vector<24x72xf32>
    %97 = tpu.iota {dimensions = array<i32: 0>} : vector<144x72xi32>
    %98 = tpu.iota {dimensions = array<i32: 1>} : vector<144x72xi32>
    %c2_i32_33 = arith.constant 2 : i32
    %99 = vector.broadcast %c2_i32_33 : i32 to vector<144x72xi32>
    %100 = arith.muli %99, %98 : vector<144x72xi32>
    %c1_i32_34 = arith.constant 1 : i32
    %101 = vector.broadcast %c1_i32_34 : i32 to vector<144x72xi32>
    %102 = arith.addi %100, %101 : vector<144x72xi32>
    %103 = arith.cmpi eq, %97, %102 : vector<144x72xi32>
    %cst_35 = arith.constant 1.000000e+00 : f32
    %cst_36 = arith.constant 0.000000e+00 : f32
    %104 = vector.broadcast %cst_35 : f32 to vector<144x72xf32>
    %105 = vector.broadcast %cst_36 : f32 to vector<144x72xf32>
    %106 = arith.select %103, %104, %105 : vector<144x72xi1>, vector<144x72xf32>
    %107 = arith.truncf %106 : vector<144x72xf32> to vector<144x72xbf16>
    %108 = arith.truncf %83 : vector<24x144xf32> to vector<24x144xbf16>
    %cst_37 = arith.constant dense<0.000000e+00> : vector<24x72xf32>
    %109 = tpu.matmul %108, %107, %cst_37 {dimension_numbers = #tpu.dot_dimension_numbers<[1], [0], [0], [1], [0, 0, 1, 1], [], []>} : vector<24x144xbf16>, vector<144x72xbf16>, vector<24x72xf32> -> vector<24x72xf32>
    %110 = arith.maximumf %96, %109 : vector<24x72xf32>
    %cst_38 = arith.constant 0.000000e+00 : f32
    %111 = vector.broadcast %cst_38 : f32 to vector<16x128xf32>
    %112 = vector.extract_strided_slice %110 {offsets = [0, 0], sizes = [8, 12], strides = [1, 1]} : vector<24x72xf32> to vector<8x12xf32>
    %113 = vector.extract_strided_slice %110 {offsets = [12, 0], sizes = [8, 12], strides = [1, 1]} : vector<24x72xf32> to vector<8x12xf32>
    %114 = tpu.concatenate %112, %113 in 0 : vector<8x12xf32>, vector<8x12xf32> -> vector<16x12xf32>
    %c0_39 = arith.constant 0 : index
    %c0_40 = arith.constant 0 : index
    %c0_41 = arith.constant 0 : index
    %115 = vector.load %arg3[%c0_39, %c0_40, %c0_41] : memref<30x12x128xbf16, #tpu.memory_space<vmem>>, vector<1x12x128xbf16>
    %116 = vector.shape_cast %115 : vector<1x12x128xbf16> to vector<12x128xbf16>
    %117 = arith.truncf %114 : vector<16x12xf32> to vector<16x12xbf16>
    %cst_42 = arith.constant dense<0.000000e+00> : vector<16x128xf32>
    %118 = tpu.matmul %117, %116, %cst_42 {dimension_numbers = #tpu.dot_dimension_numbers<[1], [0], [0], [1], [0, 0, 1, 1], [], []>} : vector<16x12xbf16>, vector<12x128xbf16>, vector<16x128xf32> -> vector<16x128xf32>
    %119 = arith.addf %111, %118 : vector<16x128xf32>
    %120 = vector.extract_strided_slice %110 {offsets = [1, 0], sizes = [8, 12], strides = [1, 1]} : vector<24x72xf32> to vector<8x12xf32>
    %121 = vector.extract_strided_slice %110 {offsets = [13, 0], sizes = [8, 12], strides = [1, 1]} : vector<24x72xf32> to vector<8x12xf32>
    %122 = tpu.concatenate %120, %121 in 0 : vector<8x12xf32>, vector<8x12xf32> -> vector<16x12xf32>
    %c1_43 = arith.constant 1 : index
    %c0_44 = arith.constant 0 : index
    %c0_45 = arith.constant 0 : index
    %123 = vector.load %arg3[%c1_43, %c0_44, %c0_45] : memref<30x12x128xbf16, #tpu.memory_space<vmem>>, vector<1x12x128xbf16>
    %124 = vector.shape_cast %123 : vector<1x12x128xbf16> to vector<12x128xbf16>
    %125 = arith.truncf %122 : vector<16x12xf32> to vector<16x12xbf16>
    %cst_46 = arith.constant dense<0.000000e+00> : vector<16x128xf32>
    %126 = tpu.matmul %125, %124, %cst_46 {dimension_numbers = #tpu.dot_dimension_numbers<[1], [0], [0], [1], [0, 0, 1, 1], [], []>} : vector<16x12xbf16>, vector<12x128xbf16>, vector<16x128xf32> -> vector<16x128xf32>
    %127 = arith.addf %119, %126 : vector<16x128xf32>
    %128 = vector.extract_strided_slice %110 {offsets = [2, 0], sizes = [8, 12], strides = [1, 1]} : vector<24x72xf32> to vector<8x12xf32>
    %129 = vector.extract_strided_slice %110 {offsets = [14, 0], sizes = [8, 12], strides = [1, 1]} : vector<24x72xf32> to vector<8x12xf32>
    %130 = tpu.concatenate %128, %129 in 0 : vector<8x12xf32>, vector<8x12xf32> -> vector<16x12xf32>
    %c2_47 = arith.constant 2 : index
    %c0_48 = arith.constant 0 : index
    %c0_49 = arith.constant 0 : index
    %131 = vector.load %arg3[%c2_47, %c0_48, %c0_49] : memref<30x12x128xbf16, #tpu.memory_space<vmem>>, vector<1x12x128xbf16>
    %132 = vector.shape_cast %131 : vector<1x12x128xbf16> to vector<12x128xbf16>
    %133 = arith.truncf %130 : vector<16x12xf32> to vector<16x12xbf16>
    %cst_50 = arith.constant dense<0.000000e+00> : vector<16x128xf32>
    %134 = tpu.matmul %133, %132, %cst_50 {dimension_numbers = #tpu.dot_dimension_numbers<[1], [0], [0], [1], [0, 0, 1, 1], [], []>} : vector<16x12xbf16>, vector<12x128xbf16>, vector<16x128xf32> -> vector<16x128xf32>
    %135 = arith.addf %127, %134 : vector<16x128xf32>
    %136 = vector.extract_strided_slice %110 {offsets = [3, 0], sizes = [8, 12], strides = [1, 1]} : vector<24x72xf32> to vector<8x12xf32>
    %137 = vector.extract_strided_slice %110 {offsets = [15, 0], sizes = [8, 12], strides = [1, 1]} : vector<24x72xf32> to vector<8x12xf32>
    %138 = tpu.concatenate %136, %137 in 0 : vector<8x12xf32>, vector<8x12xf32> -> vector<16x12xf32>
    %c3_51 = arith.constant 3 : index
    %c0_52 = arith.constant 0 : index
    %c0_53 = arith.constant 0 : index
    %139 = vector.load %arg3[%c3_51, %c0_52, %c0_53] : memref<30x12x128xbf16, #tpu.memory_space<vmem>>, vector<1x12x128xbf16>
    %140 = vector.shape_cast %139 : vector<1x12x128xbf16> to vector<12x128xbf16>
    %141 = arith.truncf %138 : vector<16x12xf32> to vector<16x12xbf16>
    %cst_54 = arith.constant dense<0.000000e+00> : vector<16x128xf32>
    %142 = tpu.matmul %141, %140, %cst_54 {dimension_numbers = #tpu.dot_dimension_numbers<[1], [0], [0], [1], [0, 0, 1, 1], [], []>} : vector<16x12xbf16>, vector<12x128xbf16>, vector<16x128xf32> -> vector<16x128xf32>
    %143 = arith.addf %135, %142 : vector<16x128xf32>
    %144 = vector.extract_strided_slice %110 {offsets = [4, 0], sizes = [8, 12], strides = [1, 1]} : vector<24x72xf32> to vector<8x12xf32>
    %145 = vector.extract_strided_slice %110 {offsets = [16, 0], sizes = [8, 12], strides = [1, 1]} : vector<24x72xf32> to vector<8x12xf32>
    %146 = tpu.concatenate %144, %145 in 0 : vector<8x12xf32>, vector<8x12xf32> -> vector<16x12xf32>
    %c4_55 = arith.constant 4 : index
    %c0_56 = arith.constant 0 : index
    %c0_57 = arith.constant 0 : index
    %147 = vector.load %arg3[%c4_55, %c0_56, %c0_57] : memref<30x12x128xbf16, #tpu.memory_space<vmem>>, vector<1x12x128xbf16>
    %148 = vector.shape_cast %147 : vector<1x12x128xbf16> to vector<12x128xbf16>
    %149 = arith.truncf %146 : vector<16x12xf32> to vector<16x12xbf16>
    %cst_58 = arith.constant dense<0.000000e+00> : vector<16x128xf32>
    %150 = tpu.matmul %149, %148, %cst_58 {dimension_numbers = #tpu.dot_dimension_numbers<[1], [0], [0], [1], [0, 0, 1, 1], [], []>} : vector<16x12xbf16>, vector<12x128xbf16>, vector<16x128xf32> -> vector<16x128xf32>
    %151 = arith.addf %143, %150 : vector<16x128xf32>
    %152 = vector.extract_strided_slice %110 {offsets = [0, 12], sizes = [8, 12], strides = [1, 1]} : vector<24x72xf32> to vector<8x12xf32>
    %153 = vector.extract_strided_slice %110 {offsets = [12, 12], sizes = [8, 12], strides = [1, 1]} : vector<24x72xf32> to vector<8x12xf32>
    %154 = tpu.concatenate %152, %153 in 0 : vector<8x12xf32>, vector<8x12xf32> -> vector<16x12xf32>
    %c5 = arith.constant 5 : index
    %c0_59 = arith.constant 0 : index
    %c0_60 = arith.constant 0 : index
    %155 = vector.load %arg3[%c5, %c0_59, %c0_60] : memref<30x12x128xbf16, #tpu.memory_space<vmem>>, vector<1x12x128xbf16>
    %156 = vector.shape_cast %155 : vector<1x12x128xbf16> to vector<12x128xbf16>
    %157 = arith.truncf %154 : vector<16x12xf32> to vector<16x12xbf16>
    %cst_61 = arith.constant dense<0.000000e+00> : vector<16x128xf32>
    %158 = tpu.matmul %157, %156, %cst_61 {dimension_numbers = #tpu.dot_dimension_numbers<[1], [0], [0], [1], [0, 0, 1, 1], [], []>} : vector<16x12xbf16>, vector<12x128xbf16>, vector<16x128xf32> -> vector<16x128xf32>
    %159 = arith.addf %151, %158 : vector<16x128xf32>
    %160 = vector.extract_strided_slice %110 {offsets = [1, 12], sizes = [8, 12], strides = [1, 1]} : vector<24x72xf32> to vector<8x12xf32>
    %161 = vector.extract_strided_slice %110 {offsets = [13, 12], sizes = [8, 12], strides = [1, 1]} : vector<24x72xf32> to vector<8x12xf32>
    %162 = tpu.concatenate %160, %161 in 0 : vector<8x12xf32>, vector<8x12xf32> -> vector<16x12xf32>
    %c6 = arith.constant 6 : index
    %c0_62 = arith.constant 0 : index
    %c0_63 = arith.constant 0 : index
    %163 = vector.load %arg3[%c6, %c0_62, %c0_63] : memref<30x12x128xbf16, #tpu.memory_space<vmem>>, vector<1x12x128xbf16>
    %164 = vector.shape_cast %163 : vector<1x12x128xbf16> to vector<12x128xbf16>
    %165 = arith.truncf %162 : vector<16x12xf32> to vector<16x12xbf16>
    %cst_64 = arith.constant dense<0.000000e+00> : vector<16x128xf32>
    %166 = tpu.matmul %165, %164, %cst_64 {dimension_numbers = #tpu.dot_dimension_numbers<[1], [0], [0], [1], [0, 0, 1, 1], [], []>} : vector<16x12xbf16>, vector<12x128xbf16>, vector<16x128xf32> -> vector<16x128xf32>
    %167 = arith.addf %159, %166 : vector<16x128xf32>
    %168 = vector.extract_strided_slice %110 {offsets = [2, 12], sizes = [8, 12], strides = [1, 1]} : vector<24x72xf32> to vector<8x12xf32>
    %169 = vector.extract_strided_slice %110 {offsets = [14, 12], sizes = [8, 12], strides = [1, 1]} : vector<24x72xf32> to vector<8x12xf32>
    %170 = tpu.concatenate %168, %169 in 0 : vector<8x12xf32>, vector<8x12xf32> -> vector<16x12xf32>
    %c7 = arith.constant 7 : index
    %c0_65 = arith.constant 0 : index
    %c0_66 = arith.constant 0 : index
    %171 = vector.load %arg3[%c7, %c0_65, %c0_66] : memref<30x12x128xbf16, #tpu.memory_space<vmem>>, vector<1x12x128xbf16>
    %172 = vector.shape_cast %171 : vector<1x12x128xbf16> to vector<12x128xbf16>
    %173 = arith.truncf %170 : vector<16x12xf32> to vector<16x12xbf16>
    %cst_67 = arith.constant dense<0.000000e+00> : vector<16x128xf32>
    %174 = tpu.matmul %173, %172, %cst_67 {dimension_numbers = #tpu.dot_dimension_numbers<[1], [0], [0], [1], [0, 0, 1, 1], [], []>} : vector<16x12xbf16>, vector<12x128xbf16>, vector<16x128xf32> -> vector<16x128xf32>
    %175 = arith.addf %167, %174 : vector<16x128xf32>
    %176 = vector.extract_strided_slice %110 {offsets = [3, 12], sizes = [8, 12], strides = [1, 1]} : vector<24x72xf32> to vector<8x12xf32>
    %177 = vector.extract_strided_slice %110 {offsets = [15, 12], sizes = [8, 12], strides = [1, 1]} : vector<24x72xf32> to vector<8x12xf32>
    %178 = tpu.concatenate %176, %177 in 0 : vector<8x12xf32>, vector<8x12xf32> -> vector<16x12xf32>
    %c8 = arith.constant 8 : index
    %c0_68 = arith.constant 0 : index
    %c0_69 = arith.constant 0 : index
    %179 = vector.load %arg3[%c8, %c0_68, %c0_69] : memref<30x12x128xbf16, #tpu.memory_space<vmem>>, vector<1x12x128xbf16>
    %180 = vector.shape_cast %179 : vector<1x12x128xbf16> to vector<12x128xbf16>
    %181 = arith.truncf %178 : vector<16x12xf32> to vector<16x12xbf16>
    %cst_70 = arith.constant dense<0.000000e+00> : vector<16x128xf32>
    %182 = tpu.matmul %181, %180, %cst_70 {dimension_numbers = #tpu.dot_dimension_numbers<[1], [0], [0], [1], [0, 0, 1, 1], [], []>} : vector<16x12xbf16>, vector<12x128xbf16>, vector<16x128xf32> -> vector<16x128xf32>
    %183 = arith.addf %175, %182 : vector<16x128xf32>
    %184 = vector.extract_strided_slice %110 {offsets = [4, 12], sizes = [8, 12], strides = [1, 1]} : vector<24x72xf32> to vector<8x12xf32>
    %185 = vector.extract_strided_slice %110 {offsets = [16, 12], sizes = [8, 12], strides = [1, 1]} : vector<24x72xf32> to vector<8x12xf32>
    %186 = tpu.concatenate %184, %185 in 0 : vector<8x12xf32>, vector<8x12xf32> -> vector<16x12xf32>
    %c9 = arith.constant 9 : index
    %c0_71 = arith.constant 0 : index
    %c0_72 = arith.constant 0 : index
    %187 = vector.load %arg3[%c9, %c0_71, %c0_72] : memref<30x12x128xbf16, #tpu.memory_space<vmem>>, vector<1x12x128xbf16>
    %188 = vector.shape_cast %187 : vector<1x12x128xbf16> to vector<12x128xbf16>
    %189 = arith.truncf %186 : vector<16x12xf32> to vector<16x12xbf16>
    %cst_73 = arith.constant dense<0.000000e+00> : vector<16x128xf32>
    %190 = tpu.matmul %189, %188, %cst_73 {dimension_numbers = #tpu.dot_dimension_numbers<[1], [0], [0], [1], [0, 0, 1, 1], [], []>} : vector<16x12xbf16>, vector<12x128xbf16>, vector<16x128xf32> -> vector<16x128xf32>
    %191 = arith.addf %183, %190 : vector<16x128xf32>
    %192 = vector.extract_strided_slice %110 {offsets = [0, 24], sizes = [8, 12], strides = [1, 1]} : vector<24x72xf32> to vector<8x12xf32>
    %193 = vector.extract_strided_slice %110 {offsets = [12, 24], sizes = [8, 12], strides = [1, 1]} : vector<24x72xf32> to vector<8x12xf32>
    %194 = tpu.concatenate %192, %193 in 0 : vector<8x12xf32>, vector<8x12xf32> -> vector<16x12xf32>
    %c10 = arith.constant 10 : index
    %c0_74 = arith.constant 0 : index
    %c0_75 = arith.constant 0 : index
    %195 = vector.load %arg3[%c10, %c0_74, %c0_75] : memref<30x12x128xbf16, #tpu.memory_space<vmem>>, vector<1x12x128xbf16>
    %196 = vector.shape_cast %195 : vector<1x12x128xbf16> to vector<12x128xbf16>
    %197 = arith.truncf %194 : vector<16x12xf32> to vector<16x12xbf16>
    %cst_76 = arith.constant dense<0.000000e+00> : vector<16x128xf32>
    %198 = tpu.matmul %197, %196, %cst_76 {dimension_numbers = #tpu.dot_dimension_numbers<[1], [0], [0], [1], [0, 0, 1, 1], [], []>} : vector<16x12xbf16>, vector<12x128xbf16>, vector<16x128xf32> -> vector<16x128xf32>
    %199 = arith.addf %191, %198 : vector<16x128xf32>
    %200 = vector.extract_strided_slice %110 {offsets = [1, 24], sizes = [8, 12], strides = [1, 1]} : vector<24x72xf32> to vector<8x12xf32>
    %201 = vector.extract_strided_slice %110 {offsets = [13, 24], sizes = [8, 12], strides = [1, 1]} : vector<24x72xf32> to vector<8x12xf32>
    %202 = tpu.concatenate %200, %201 in 0 : vector<8x12xf32>, vector<8x12xf32> -> vector<16x12xf32>
    %c11 = arith.constant 11 : index
    %c0_77 = arith.constant 0 : index
    %c0_78 = arith.constant 0 : index
    %203 = vector.load %arg3[%c11, %c0_77, %c0_78] : memref<30x12x128xbf16, #tpu.memory_space<vmem>>, vector<1x12x128xbf16>
    %204 = vector.shape_cast %203 : vector<1x12x128xbf16> to vector<12x128xbf16>
    %205 = arith.truncf %202 : vector<16x12xf32> to vector<16x12xbf16>
    %cst_79 = arith.constant dense<0.000000e+00> : vector<16x128xf32>
    %206 = tpu.matmul %205, %204, %cst_79 {dimension_numbers = #tpu.dot_dimension_numbers<[1], [0], [0], [1], [0, 0, 1, 1], [], []>} : vector<16x12xbf16>, vector<12x128xbf16>, vector<16x128xf32> -> vector<16x128xf32>
    %207 = arith.addf %199, %206 : vector<16x128xf32>
    %208 = vector.extract_strided_slice %110 {offsets = [2, 24], sizes = [8, 12], strides = [1, 1]} : vector<24x72xf32> to vector<8x12xf32>
    %209 = vector.extract_strided_slice %110 {offsets = [14, 24], sizes = [8, 12], strides = [1, 1]} : vector<24x72xf32> to vector<8x12xf32>
    %210 = tpu.concatenate %208, %209 in 0 : vector<8x12xf32>, vector<8x12xf32> -> vector<16x12xf32>
    %c12 = arith.constant 12 : index
    %c0_80 = arith.constant 0 : index
    %c0_81 = arith.constant 0 : index
    %211 = vector.load %arg3[%c12, %c0_80, %c0_81] : memref<30x12x128xbf16, #tpu.memory_space<vmem>>, vector<1x12x128xbf16>
    %212 = vector.shape_cast %211 : vector<1x12x128xbf16> to vector<12x128xbf16>
    %213 = arith.truncf %210 : vector<16x12xf32> to vector<16x12xbf16>
    %cst_82 = arith.constant dense<0.000000e+00> : vector<16x128xf32>
    %214 = tpu.matmul %213, %212, %cst_82 {dimension_numbers = #tpu.dot_dimension_numbers<[1], [0], [0], [1], [0, 0, 1, 1], [], []>} : vector<16x12xbf16>, vector<12x128xbf16>, vector<16x128xf32> -> vector<16x128xf32>
    %215 = arith.addf %207, %214 : vector<16x128xf32>
    %216 = vector.extract_strided_slice %110 {offsets = [3, 24], sizes = [8, 12], strides = [1, 1]} : vector<24x72xf32> to vector<8x12xf32>
    %217 = vector.extract_strided_slice %110 {offsets = [15, 24], sizes = [8, 12], strides = [1, 1]} : vector<24x72xf32> to vector<8x12xf32>
    %218 = tpu.concatenate %216, %217 in 0 : vector<8x12xf32>, vector<8x12xf32> -> vector<16x12xf32>
    %c13 = arith.constant 13 : index
    %c0_83 = arith.constant 0 : index
    %c0_84 = arith.constant 0 : index
    %219 = vector.load %arg3[%c13, %c0_83, %c0_84] : memref<30x12x128xbf16, #tpu.memory_space<vmem>>, vector<1x12x128xbf16>
    %220 = vector.shape_cast %219 : vector<1x12x128xbf16> to vector<12x128xbf16>
    %221 = arith.truncf %218 : vector<16x12xf32> to vector<16x12xbf16>
    %cst_85 = arith.constant dense<0.000000e+00> : vector<16x128xf32>
    %222 = tpu.matmul %221, %220, %cst_85 {dimension_numbers = #tpu.dot_dimension_numbers<[1], [0], [0], [1], [0, 0, 1, 1], [], []>} : vector<16x12xbf16>, vector<12x128xbf16>, vector<16x128xf32> -> vector<16x128xf32>
    %223 = arith.addf %215, %222 : vector<16x128xf32>
    %224 = vector.extract_strided_slice %110 {offsets = [4, 24], sizes = [8, 12], strides = [1, 1]} : vector<24x72xf32> to vector<8x12xf32>
    %225 = vector.extract_strided_slice %110 {offsets = [16, 24], sizes = [8, 12], strides = [1, 1]} : vector<24x72xf32> to vector<8x12xf32>
    %226 = tpu.concatenate %224, %225 in 0 : vector<8x12xf32>, vector<8x12xf32> -> vector<16x12xf32>
    %c14 = arith.constant 14 : index
    %c0_86 = arith.constant 0 : index
    %c0_87 = arith.constant 0 : index
    %227 = vector.load %arg3[%c14, %c0_86, %c0_87] : memref<30x12x128xbf16, #tpu.memory_space<vmem>>, vector<1x12x128xbf16>
    %228 = vector.shape_cast %227 : vector<1x12x128xbf16> to vector<12x128xbf16>
    %229 = arith.truncf %226 : vector<16x12xf32> to vector<16x12xbf16>
    %cst_88 = arith.constant dense<0.000000e+00> : vector<16x128xf32>
    %230 = tpu.matmul %229, %228, %cst_88 {dimension_numbers = #tpu.dot_dimension_numbers<[1], [0], [0], [1], [0, 0, 1, 1], [], []>} : vector<16x12xbf16>, vector<12x128xbf16>, vector<16x128xf32> -> vector<16x128xf32>
    %231 = arith.addf %223, %230 : vector<16x128xf32>
    %232 = vector.extract_strided_slice %110 {offsets = [0, 36], sizes = [8, 12], strides = [1, 1]} : vector<24x72xf32> to vector<8x12xf32>
    %233 = vector.extract_strided_slice %110 {offsets = [12, 36], sizes = [8, 12], strides = [1, 1]} : vector<24x72xf32> to vector<8x12xf32>
    %234 = tpu.concatenate %232, %233 in 0 : vector<8x12xf32>, vector<8x12xf32> -> vector<16x12xf32>
    %c15 = arith.constant 15 : index
    %c0_89 = arith.constant 0 : index
    %c0_90 = arith.constant 0 : index
    %235 = vector.load %arg3[%c15, %c0_89, %c0_90] : memref<30x12x128xbf16, #tpu.memory_space<vmem>>, vector<1x12x128xbf16>
    %236 = vector.shape_cast %235 : vector<1x12x128xbf16> to vector<12x128xbf16>
    %237 = arith.truncf %234 : vector<16x12xf32> to vector<16x12xbf16>
    %cst_91 = arith.constant dense<0.000000e+00> : vector<16x128xf32>
    %238 = tpu.matmul %237, %236, %cst_91 {dimension_numbers = #tpu.dot_dimension_numbers<[1], [0], [0], [1], [0, 0, 1, 1], [], []>} : vector<16x12xbf16>, vector<12x128xbf16>, vector<16x128xf32> -> vector<16x128xf32>
    %239 = arith.addf %231, %238 : vector<16x128xf32>
    %240 = vector.extract_strided_slice %110 {offsets = [1, 36], sizes = [8, 12], strides = [1, 1]} : vector<24x72xf32> to vector<8x12xf32>
    %241 = vector.extract_strided_slice %110 {offsets = [13, 36], sizes = [8, 12], strides = [1, 1]} : vector<24x72xf32> to vector<8x12xf32>
    %242 = tpu.concatenate %240, %241 in 0 : vector<8x12xf32>, vector<8x12xf32> -> vector<16x12xf32>
    %c16 = arith.constant 16 : index
    %c0_92 = arith.constant 0 : index
    %c0_93 = arith.constant 0 : index
    %243 = vector.load %arg3[%c16, %c0_92, %c0_93] : memref<30x12x128xbf16, #tpu.memory_space<vmem>>, vector<1x12x128xbf16>
    %244 = vector.shape_cast %243 : vector<1x12x128xbf16> to vector<12x128xbf16>
    %245 = arith.truncf %242 : vector<16x12xf32> to vector<16x12xbf16>
    %cst_94 = arith.constant dense<0.000000e+00> : vector<16x128xf32>
    %246 = tpu.matmul %245, %244, %cst_94 {dimension_numbers = #tpu.dot_dimension_numbers<[1], [0], [0], [1], [0, 0, 1, 1], [], []>} : vector<16x12xbf16>, vector<12x128xbf16>, vector<16x128xf32> -> vector<16x128xf32>
    %247 = arith.addf %239, %246 : vector<16x128xf32>
    %248 = vector.extract_strided_slice %110 {offsets = [2, 36], sizes = [8, 12], strides = [1, 1]} : vector<24x72xf32> to vector<8x12xf32>
    %249 = vector.extract_strided_slice %110 {offsets = [14, 36], sizes = [8, 12], strides = [1, 1]} : vector<24x72xf32> to vector<8x12xf32>
    %250 = tpu.concatenate %248, %249 in 0 : vector<8x12xf32>, vector<8x12xf32> -> vector<16x12xf32>
    %c17 = arith.constant 17 : index
    %c0_95 = arith.constant 0 : index
    %c0_96 = arith.constant 0 : index
    %251 = vector.load %arg3[%c17, %c0_95, %c0_96] : memref<30x12x128xbf16, #tpu.memory_space<vmem>>, vector<1x12x128xbf16>
    %252 = vector.shape_cast %251 : vector<1x12x128xbf16> to vector<12x128xbf16>
    %253 = arith.truncf %250 : vector<16x12xf32> to vector<16x12xbf16>
    %cst_97 = arith.constant dense<0.000000e+00> : vector<16x128xf32>
    %254 = tpu.matmul %253, %252, %cst_97 {dimension_numbers = #tpu.dot_dimension_numbers<[1], [0], [0], [1], [0, 0, 1, 1], [], []>} : vector<16x12xbf16>, vector<12x128xbf16>, vector<16x128xf32> -> vector<16x128xf32>
    %255 = arith.addf %247, %254 : vector<16x128xf32>
    %256 = vector.extract_strided_slice %110 {offsets = [3, 36], sizes = [8, 12], strides = [1, 1]} : vector<24x72xf32> to vector<8x12xf32>
    %257 = vector.extract_strided_slice %110 {offsets = [15, 36], sizes = [8, 12], strides = [1, 1]} : vector<24x72xf32> to vector<8x12xf32>
    %258 = tpu.concatenate %256, %257 in 0 : vector<8x12xf32>, vector<8x12xf32> -> vector<16x12xf32>
    %c18 = arith.constant 18 : index
    %c0_98 = arith.constant 0 : index
    %c0_99 = arith.constant 0 : index
    %259 = vector.load %arg3[%c18, %c0_98, %c0_99] : memref<30x12x128xbf16, #tpu.memory_space<vmem>>, vector<1x12x128xbf16>
    %260 = vector.shape_cast %259 : vector<1x12x128xbf16> to vector<12x128xbf16>
    %261 = arith.truncf %258 : vector<16x12xf32> to vector<16x12xbf16>
    %cst_100 = arith.constant dense<0.000000e+00> : vector<16x128xf32>
    %262 = tpu.matmul %261, %260, %cst_100 {dimension_numbers = #tpu.dot_dimension_numbers<[1], [0], [0], [1], [0, 0, 1, 1], [], []>} : vector<16x12xbf16>, vector<12x128xbf16>, vector<16x128xf32> -> vector<16x128xf32>
    %263 = arith.addf %255, %262 : vector<16x128xf32>
    %264 = vector.extract_strided_slice %110 {offsets = [4, 36], sizes = [8, 12], strides = [1, 1]} : vector<24x72xf32> to vector<8x12xf32>
    %265 = vector.extract_strided_slice %110 {offsets = [16, 36], sizes = [8, 12], strides = [1, 1]} : vector<24x72xf32> to vector<8x12xf32>
    %266 = tpu.concatenate %264, %265 in 0 : vector<8x12xf32>, vector<8x12xf32> -> vector<16x12xf32>
    %c19 = arith.constant 19 : index
    %c0_101 = arith.constant 0 : index
    %c0_102 = arith.constant 0 : index
    %267 = vector.load %arg3[%c19, %c0_101, %c0_102] : memref<30x12x128xbf16, #tpu.memory_space<vmem>>, vector<1x12x128xbf16>
    %268 = vector.shape_cast %267 : vector<1x12x128xbf16> to vector<12x128xbf16>
    %269 = arith.truncf %266 : vector<16x12xf32> to vector<16x12xbf16>
    %cst_103 = arith.constant dense<0.000000e+00> : vector<16x128xf32>
    %270 = tpu.matmul %269, %268, %cst_103 {dimension_numbers = #tpu.dot_dimension_numbers<[1], [0], [0], [1], [0, 0, 1, 1], [], []>} : vector<16x12xbf16>, vector<12x128xbf16>, vector<16x128xf32> -> vector<16x128xf32>
    %271 = arith.addf %263, %270 : vector<16x128xf32>
    %272 = vector.extract_strided_slice %110 {offsets = [0, 48], sizes = [8, 12], strides = [1, 1]} : vector<24x72xf32> to vector<8x12xf32>
    %273 = vector.extract_strided_slice %110 {offsets = [12, 48], sizes = [8, 12], strides = [1, 1]} : vector<24x72xf32> to vector<8x12xf32>
    %274 = tpu.concatenate %272, %273 in 0 : vector<8x12xf32>, vector<8x12xf32> -> vector<16x12xf32>
    %c20 = arith.constant 20 : index
    %c0_104 = arith.constant 0 : index
    %c0_105 = arith.constant 0 : index
    %275 = vector.load %arg3[%c20, %c0_104, %c0_105] : memref<30x12x128xbf16, #tpu.memory_space<vmem>>, vector<1x12x128xbf16>
    %276 = vector.shape_cast %275 : vector<1x12x128xbf16> to vector<12x128xbf16>
    %277 = arith.truncf %274 : vector<16x12xf32> to vector<16x12xbf16>
    %cst_106 = arith.constant dense<0.000000e+00> : vector<16x128xf32>
    %278 = tpu.matmul %277, %276, %cst_106 {dimension_numbers = #tpu.dot_dimension_numbers<[1], [0], [0], [1], [0, 0, 1, 1], [], []>} : vector<16x12xbf16>, vector<12x128xbf16>, vector<16x128xf32> -> vector<16x128xf32>
    %279 = arith.addf %271, %278 : vector<16x128xf32>
    %280 = vector.extract_strided_slice %110 {offsets = [1, 48], sizes = [8, 12], strides = [1, 1]} : vector<24x72xf32> to vector<8x12xf32>
    %281 = vector.extract_strided_slice %110 {offsets = [13, 48], sizes = [8, 12], strides = [1, 1]} : vector<24x72xf32> to vector<8x12xf32>
    %282 = tpu.concatenate %280, %281 in 0 : vector<8x12xf32>, vector<8x12xf32> -> vector<16x12xf32>
    %c21 = arith.constant 21 : index
    %c0_107 = arith.constant 0 : index
    %c0_108 = arith.constant 0 : index
    %283 = vector.load %arg3[%c21, %c0_107, %c0_108] : memref<30x12x128xbf16, #tpu.memory_space<vmem>>, vector<1x12x128xbf16>
    %284 = vector.shape_cast %283 : vector<1x12x128xbf16> to vector<12x128xbf16>
    %285 = arith.truncf %282 : vector<16x12xf32> to vector<16x12xbf16>
    %cst_109 = arith.constant dense<0.000000e+00> : vector<16x128xf32>
    %286 = tpu.matmul %285, %284, %cst_109 {dimension_numbers = #tpu.dot_dimension_numbers<[1], [0], [0], [1], [0, 0, 1, 1], [], []>} : vector<16x12xbf16>, vector<12x128xbf16>, vector<16x128xf32> -> vector<16x128xf32>
    %287 = arith.addf %279, %286 : vector<16x128xf32>
    %288 = vector.extract_strided_slice %110 {offsets = [2, 48], sizes = [8, 12], strides = [1, 1]} : vector<24x72xf32> to vector<8x12xf32>
    %289 = vector.extract_strided_slice %110 {offsets = [14, 48], sizes = [8, 12], strides = [1, 1]} : vector<24x72xf32> to vector<8x12xf32>
    %290 = tpu.concatenate %288, %289 in 0 : vector<8x12xf32>, vector<8x12xf32> -> vector<16x12xf32>
    %c22 = arith.constant 22 : index
    %c0_110 = arith.constant 0 : index
    %c0_111 = arith.constant 0 : index
    %291 = vector.load %arg3[%c22, %c0_110, %c0_111] : memref<30x12x128xbf16, #tpu.memory_space<vmem>>, vector<1x12x128xbf16>
    %292 = vector.shape_cast %291 : vector<1x12x128xbf16> to vector<12x128xbf16>
    %293 = arith.truncf %290 : vector<16x12xf32> to vector<16x12xbf16>
    %cst_112 = arith.constant dense<0.000000e+00> : vector<16x128xf32>
    %294 = tpu.matmul %293, %292, %cst_112 {dimension_numbers = #tpu.dot_dimension_numbers<[1], [0], [0], [1], [0, 0, 1, 1], [], []>} : vector<16x12xbf16>, vector<12x128xbf16>, vector<16x128xf32> -> vector<16x128xf32>
    %295 = arith.addf %287, %294 : vector<16x128xf32>
    %296 = vector.extract_strided_slice %110 {offsets = [3, 48], sizes = [8, 12], strides = [1, 1]} : vector<24x72xf32> to vector<8x12xf32>
    %297 = vector.extract_strided_slice %110 {offsets = [15, 48], sizes = [8, 12], strides = [1, 1]} : vector<24x72xf32> to vector<8x12xf32>
    %298 = tpu.concatenate %296, %297 in 0 : vector<8x12xf32>, vector<8x12xf32> -> vector<16x12xf32>
    %c23 = arith.constant 23 : index
    %c0_113 = arith.constant 0 : index
    %c0_114 = arith.constant 0 : index
    %299 = vector.load %arg3[%c23, %c0_113, %c0_114] : memref<30x12x128xbf16, #tpu.memory_space<vmem>>, vector<1x12x128xbf16>
    %300 = vector.shape_cast %299 : vector<1x12x128xbf16> to vector<12x128xbf16>
    %301 = arith.truncf %298 : vector<16x12xf32> to vector<16x12xbf16>
    %cst_115 = arith.constant dense<0.000000e+00> : vector<16x128xf32>
    %302 = tpu.matmul %301, %300, %cst_115 {dimension_numbers = #tpu.dot_dimension_numbers<[1], [0], [0], [1], [0, 0, 1, 1], [], []>} : vector<16x12xbf16>, vector<12x128xbf16>, vector<16x128xf32> -> vector<16x128xf32>
    %303 = arith.addf %295, %302 : vector<16x128xf32>
    %304 = vector.extract_strided_slice %110 {offsets = [4, 48], sizes = [8, 12], strides = [1, 1]} : vector<24x72xf32> to vector<8x12xf32>
    %305 = vector.extract_strided_slice %110 {offsets = [16, 48], sizes = [8, 12], strides = [1, 1]} : vector<24x72xf32> to vector<8x12xf32>
    %306 = tpu.concatenate %304, %305 in 0 : vector<8x12xf32>, vector<8x12xf32> -> vector<16x12xf32>
    %c24 = arith.constant 24 : index
    %c0_116 = arith.constant 0 : index
    %c0_117 = arith.constant 0 : index
    %307 = vector.load %arg3[%c24, %c0_116, %c0_117] : memref<30x12x128xbf16, #tpu.memory_space<vmem>>, vector<1x12x128xbf16>
    %308 = vector.shape_cast %307 : vector<1x12x128xbf16> to vector<12x128xbf16>
    %309 = arith.truncf %306 : vector<16x12xf32> to vector<16x12xbf16>
    %cst_118 = arith.constant dense<0.000000e+00> : vector<16x128xf32>
    %310 = tpu.matmul %309, %308, %cst_118 {dimension_numbers = #tpu.dot_dimension_numbers<[1], [0], [0], [1], [0, 0, 1, 1], [], []>} : vector<16x12xbf16>, vector<12x128xbf16>, vector<16x128xf32> -> vector<16x128xf32>
    %311 = arith.addf %303, %310 : vector<16x128xf32>
    %312 = vector.extract_strided_slice %110 {offsets = [0, 60], sizes = [8, 12], strides = [1, 1]} : vector<24x72xf32> to vector<8x12xf32>
    %313 = vector.extract_strided_slice %110 {offsets = [12, 60], sizes = [8, 12], strides = [1, 1]} : vector<24x72xf32> to vector<8x12xf32>
    %314 = tpu.concatenate %312, %313 in 0 : vector<8x12xf32>, vector<8x12xf32> -> vector<16x12xf32>
    %c25 = arith.constant 25 : index
    %c0_119 = arith.constant 0 : index
    %c0_120 = arith.constant 0 : index
    %315 = vector.load %arg3[%c25, %c0_119, %c0_120] : memref<30x12x128xbf16, #tpu.memory_space<vmem>>, vector<1x12x128xbf16>
    %316 = vector.shape_cast %315 : vector<1x12x128xbf16> to vector<12x128xbf16>
    %317 = arith.truncf %314 : vector<16x12xf32> to vector<16x12xbf16>
    %cst_121 = arith.constant dense<0.000000e+00> : vector<16x128xf32>
    %318 = tpu.matmul %317, %316, %cst_121 {dimension_numbers = #tpu.dot_dimension_numbers<[1], [0], [0], [1], [0, 0, 1, 1], [], []>} : vector<16x12xbf16>, vector<12x128xbf16>, vector<16x128xf32> -> vector<16x128xf32>
    %319 = arith.addf %311, %318 : vector<16x128xf32>
    %320 = vector.extract_strided_slice %110 {offsets = [1, 60], sizes = [8, 12], strides = [1, 1]} : vector<24x72xf32> to vector<8x12xf32>
    %321 = vector.extract_strided_slice %110 {offsets = [13, 60], sizes = [8, 12], strides = [1, 1]} : vector<24x72xf32> to vector<8x12xf32>
    %322 = tpu.concatenate %320, %321 in 0 : vector<8x12xf32>, vector<8x12xf32> -> vector<16x12xf32>
    %c26 = arith.constant 26 : index
    %c0_122 = arith.constant 0 : index
    %c0_123 = arith.constant 0 : index
    %323 = vector.load %arg3[%c26, %c0_122, %c0_123] : memref<30x12x128xbf16, #tpu.memory_space<vmem>>, vector<1x12x128xbf16>
    %324 = vector.shape_cast %323 : vector<1x12x128xbf16> to vector<12x128xbf16>
    %325 = arith.truncf %322 : vector<16x12xf32> to vector<16x12xbf16>
    %cst_124 = arith.constant dense<0.000000e+00> : vector<16x128xf32>
    %326 = tpu.matmul %325, %324, %cst_124 {dimension_numbers = #tpu.dot_dimension_numbers<[1], [0], [0], [1], [0, 0, 1, 1], [], []>} : vector<16x12xbf16>, vector<12x128xbf16>, vector<16x128xf32> -> vector<16x128xf32>
    %327 = arith.addf %319, %326 : vector<16x128xf32>
    %328 = vector.extract_strided_slice %110 {offsets = [2, 60], sizes = [8, 12], strides = [1, 1]} : vector<24x72xf32> to vector<8x12xf32>
    %329 = vector.extract_strided_slice %110 {offsets = [14, 60], sizes = [8, 12], strides = [1, 1]} : vector<24x72xf32> to vector<8x12xf32>
    %330 = tpu.concatenate %328, %329 in 0 : vector<8x12xf32>, vector<8x12xf32> -> vector<16x12xf32>
    %c27 = arith.constant 27 : index
    %c0_125 = arith.constant 0 : index
    %c0_126 = arith.constant 0 : index
    %331 = vector.load %arg3[%c27, %c0_125, %c0_126] : memref<30x12x128xbf16, #tpu.memory_space<vmem>>, vector<1x12x128xbf16>
    %332 = vector.shape_cast %331 : vector<1x12x128xbf16> to vector<12x128xbf16>
    %333 = arith.truncf %330 : vector<16x12xf32> to vector<16x12xbf16>
    %cst_127 = arith.constant dense<0.000000e+00> : vector<16x128xf32>
    %334 = tpu.matmul %333, %332, %cst_127 {dimension_numbers = #tpu.dot_dimension_numbers<[1], [0], [0], [1], [0, 0, 1, 1], [], []>} : vector<16x12xbf16>, vector<12x128xbf16>, vector<16x128xf32> -> vector<16x128xf32>
    %335 = arith.addf %327, %334 : vector<16x128xf32>
    %336 = vector.extract_strided_slice %110 {offsets = [3, 60], sizes = [8, 12], strides = [1, 1]} : vector<24x72xf32> to vector<8x12xf32>
    %337 = vector.extract_strided_slice %110 {offsets = [15, 60], sizes = [8, 12], strides = [1, 1]} : vector<24x72xf32> to vector<8x12xf32>
    %338 = tpu.concatenate %336, %337 in 0 : vector<8x12xf32>, vector<8x12xf32> -> vector<16x12xf32>
    %c28 = arith.constant 28 : index
    %c0_128 = arith.constant 0 : index
    %c0_129 = arith.constant 0 : index
    %339 = vector.load %arg3[%c28, %c0_128, %c0_129] : memref<30x12x128xbf16, #tpu.memory_space<vmem>>, vector<1x12x128xbf16>
    %340 = vector.shape_cast %339 : vector<1x12x128xbf16> to vector<12x128xbf16>
    %341 = arith.truncf %338 : vector<16x12xf32> to vector<16x12xbf16>
    %cst_130 = arith.constant dense<0.000000e+00> : vector<16x128xf32>
    %342 = tpu.matmul %341, %340, %cst_130 {dimension_numbers = #tpu.dot_dimension_numbers<[1], [0], [0], [1], [0, 0, 1, 1], [], []>} : vector<16x12xbf16>, vector<12x128xbf16>, vector<16x128xf32> -> vector<16x128xf32>
    %343 = arith.addf %335, %342 : vector<16x128xf32>
    %344 = vector.extract_strided_slice %110 {offsets = [4, 60], sizes = [8, 12], strides = [1, 1]} : vector<24x72xf32> to vector<8x12xf32>
    %345 = vector.extract_strided_slice %110 {offsets = [16, 60], sizes = [8, 12], strides = [1, 1]} : vector<24x72xf32> to vector<8x12xf32>
    %346 = tpu.concatenate %344, %345 in 0 : vector<8x12xf32>, vector<8x12xf32> -> vector<16x12xf32>
    %c29 = arith.constant 29 : index
    %c0_131 = arith.constant 0 : index
    %c0_132 = arith.constant 0 : index
    %347 = vector.load %arg3[%c29, %c0_131, %c0_132] : memref<30x12x128xbf16, #tpu.memory_space<vmem>>, vector<1x12x128xbf16>
    %348 = vector.shape_cast %347 : vector<1x12x128xbf16> to vector<12x128xbf16>
    %349 = arith.truncf %346 : vector<16x12xf32> to vector<16x12xbf16>
    %cst_133 = arith.constant dense<0.000000e+00> : vector<16x128xf32>
    %350 = tpu.matmul %349, %348, %cst_133 {dimension_numbers = #tpu.dot_dimension_numbers<[1], [0], [0], [1], [0, 0, 1, 1], [], []>} : vector<16x12xbf16>, vector<12x128xbf16>, vector<16x128xf32> -> vector<16x128xf32>
    %351 = arith.addf %343, %350 : vector<16x128xf32>
    %c0_134 = arith.constant 0 : index
    %c0_135 = arith.constant 0 : index
    %352 = vector.load %arg4[%c0_134, %c0_135] : memref<1x128xf32, #tpu.memory_space<vmem>>, vector<1x128xf32>
    %353 = vector.broadcast %352 : vector<1x128xf32> to vector<16x128xf32>
    %354 = arith.addf %351, %353 : vector<16x128xf32>
    %cst_136 = arith.constant 0.000000e+00 : f32
    %355 = vector.broadcast %cst_136 : f32 to vector<16x128xf32>
    %356 = arith.maximumf %354, %355 : vector<16x128xf32>
    %357 = tpu.iota {dimensions = array<i32: 0>} : vector<8x16xi32>
    %358 = tpu.iota {dimensions = array<i32: 1>} : vector<8x16xi32>
    %c2_i32_137 = arith.constant 2 : i32
    %359 = vector.broadcast %c2_i32_137 : i32 to vector<8x16xi32>
    %360 = arith.muli %359, %357 : vector<8x16xi32>
    %c0_i32_138 = arith.constant 0 : i32
    %361 = vector.broadcast %c0_i32_138 : i32 to vector<8x16xi32>
    %362 = arith.addi %360, %361 : vector<8x16xi32>
    %363 = arith.cmpi eq, %358, %362 : vector<8x16xi32>
    %cst_139 = arith.constant 1.000000e+00 : f32
    %cst_140 = arith.constant 0.000000e+00 : f32
    %364 = vector.broadcast %cst_139 : f32 to vector<8x16xf32>
    %365 = vector.broadcast %cst_140 : f32 to vector<8x16xf32>
    %366 = arith.select %363, %364, %365 : vector<8x16xi1>, vector<8x16xf32>
    %367 = arith.truncf %366 : vector<8x16xf32> to vector<8x16xbf16>
    %368 = arith.truncf %356 : vector<16x128xf32> to vector<16x128xbf16>
    %cst_141 = arith.constant dense<0.000000e+00> : vector<8x128xf32>
    %369 = tpu.matmul %367, %368, %cst_141 {dimension_numbers = #tpu.dot_dimension_numbers<[1], [0], [0], [1], [0, 0, 1, 1], [], []>} : vector<8x16xbf16>, vector<16x128xbf16>, vector<8x128xf32> -> vector<8x128xf32>
    %370 = tpu.iota {dimensions = array<i32: 0>} : vector<8x16xi32>
    %371 = tpu.iota {dimensions = array<i32: 1>} : vector<8x16xi32>
    %c2_i32_142 = arith.constant 2 : i32
    %372 = vector.broadcast %c2_i32_142 : i32 to vector<8x16xi32>
    %373 = arith.muli %372, %370 : vector<8x16xi32>
    %c1_i32_143 = arith.constant 1 : i32
    %374 = vector.broadcast %c1_i32_143 : i32 to vector<8x16xi32>
    %375 = arith.addi %373, %374 : vector<8x16xi32>
    %376 = arith.cmpi eq, %371, %375 : vector<8x16xi32>
    %cst_144 = arith.constant 1.000000e+00 : f32
    %cst_145 = arith.constant 0.000000e+00 : f32
    %377 = vector.broadcast %cst_144 : f32 to vector<8x16xf32>
    %378 = vector.broadcast %cst_145 : f32 to vector<8x16xf32>
    %379 = arith.select %376, %377, %378 : vector<8x16xi1>, vector<8x16xf32>
    %380 = arith.truncf %379 : vector<8x16xf32> to vector<8x16xbf16>
    %381 = arith.truncf %356 : vector<16x128xf32> to vector<16x128xbf16>
    %cst_146 = arith.constant dense<0.000000e+00> : vector<8x128xf32>
    %382 = tpu.matmul %380, %381, %cst_146 {dimension_numbers = #tpu.dot_dimension_numbers<[1], [0], [0], [1], [0, 0, 1, 1], [], []>} : vector<8x16xbf16>, vector<16x128xbf16>, vector<8x128xf32> -> vector<8x128xf32>
    %383 = arith.maximumf %369, %382 : vector<8x128xf32>
    %384 = tpu.iota {dimensions = array<i32: 0>} : vector<128x64xi32>
    %385 = tpu.iota {dimensions = array<i32: 1>} : vector<128x64xi32>
    %c2_i32_147 = arith.constant 2 : i32
    %386 = vector.broadcast %c2_i32_147 : i32 to vector<128x64xi32>
    %387 = arith.muli %386, %385 : vector<128x64xi32>
    %c0_i32_148 = arith.constant 0 : i32
    %388 = vector.broadcast %c0_i32_148 : i32 to vector<128x64xi32>
    %389 = arith.addi %387, %388 : vector<128x64xi32>
    %390 = arith.cmpi eq, %384, %389 : vector<128x64xi32>
    %cst_149 = arith.constant 1.000000e+00 : f32
    %cst_150 = arith.constant 0.000000e+00 : f32
    %391 = vector.broadcast %cst_149 : f32 to vector<128x64xf32>
    %392 = vector.broadcast %cst_150 : f32 to vector<128x64xf32>
    %393 = arith.select %390, %391, %392 : vector<128x64xi1>, vector<128x64xf32>
    %394 = arith.truncf %393 : vector<128x64xf32> to vector<128x64xbf16>
    %395 = arith.truncf %383 : vector<8x128xf32> to vector<8x128xbf16>
    %cst_151 = arith.constant dense<0.000000e+00> : vector<8x64xf32>
    %396 = tpu.matmul %395, %394, %cst_151 {dimension_numbers = #tpu.dot_dimension_numbers<[1], [0], [0], [1], [0, 0, 1, 1], [], []>} : vector<8x128xbf16>, vector<128x64xbf16>, vector<8x64xf32> -> vector<8x64xf32>
    %397 = tpu.iota {dimensions = array<i32: 0>} : vector<128x64xi32>
    %398 = tpu.iota {dimensions = array<i32: 1>} : vector<128x64xi32>
    %c2_i32_152 = arith.constant 2 : i32
    %399 = vector.broadcast %c2_i32_152 : i32 to vector<128x64xi32>
    %400 = arith.muli %399, %398 : vector<128x64xi32>
    %c1_i32_153 = arith.constant 1 : i32
    %401 = vector.broadcast %c1_i32_153 : i32 to vector<128x64xi32>
    %402 = arith.addi %400, %401 : vector<128x64xi32>
    %403 = arith.cmpi eq, %397, %402 : vector<128x64xi32>
    %cst_154 = arith.constant 1.000000e+00 : f32
    %cst_155 = arith.constant 0.000000e+00 : f32
    %404 = vector.broadcast %cst_154 : f32 to vector<128x64xf32>
    %405 = vector.broadcast %cst_155 : f32 to vector<128x64xf32>
    %406 = arith.select %403, %404, %405 : vector<128x64xi1>, vector<128x64xf32>
    %407 = arith.truncf %406 : vector<128x64xf32> to vector<128x64xbf16>
    %408 = arith.truncf %383 : vector<8x128xf32> to vector<8x128xbf16>
    %cst_156 = arith.constant dense<0.000000e+00> : vector<8x64xf32>
    %409 = tpu.matmul %408, %407, %cst_156 {dimension_numbers = #tpu.dot_dimension_numbers<[1], [0], [0], [1], [0, 0, 1, 1], [], []>} : vector<8x128xbf16>, vector<128x64xbf16>, vector<8x64xf32> -> vector<8x64xf32>
    %410 = arith.maximumf %396, %409 : vector<8x64xf32>
    %cst_157 = arith.constant 0.000000e+00 : f32
    %411 = vector.broadcast %cst_157 : f32 to vector<2x128xf32>
    %412 = tpu.iota {dimensions = array<i32: 0>} : vector<2x8xi32>
    %413 = tpu.iota {dimensions = array<i32: 1>} : vector<2x8xi32>
    %c4_i32 = arith.constant 4 : i32
    %414 = vector.broadcast %c4_i32 : i32 to vector<2x8xi32>
    %415 = arith.muli %414, %412 : vector<2x8xi32>
    %c0_i32_158 = arith.constant 0 : i32
    %416 = vector.broadcast %c0_i32_158 : i32 to vector<2x8xi32>
    %417 = arith.addi %415, %416 : vector<2x8xi32>
    %418 = arith.cmpi eq, %413, %417 : vector<2x8xi32>
    %cst_159 = arith.constant 1.000000e+00 : f32
    %cst_160 = arith.constant 0.000000e+00 : f32
    %419 = vector.broadcast %cst_159 : f32 to vector<2x8xf32>
    %420 = vector.broadcast %cst_160 : f32 to vector<2x8xf32>
    %421 = arith.select %418, %419, %420 : vector<2x8xi1>, vector<2x8xf32>
    %422 = arith.truncf %421 : vector<2x8xf32> to vector<2x8xbf16>
    %423 = arith.truncf %410 : vector<8x64xf32> to vector<8x64xbf16>
    %cst_161 = arith.constant dense<0.000000e+00> : vector<2x64xf32>
    %424 = tpu.matmul %422, %423, %cst_161 {dimension_numbers = #tpu.dot_dimension_numbers<[1], [0], [0], [1], [0, 0, 1, 1], [], []>} : vector<2x8xbf16>, vector<8x64xbf16>, vector<2x64xf32> -> vector<2x64xf32>
    %c0_162 = arith.constant 0 : index
    %c0_163 = arith.constant 0 : index
    %c0_164 = arith.constant 0 : index
    %425 = vector.load %arg5[%c0_162, %c0_163, %c0_164] : memref<4x64x128xbf16, #tpu.memory_space<vmem>>, vector<1x64x128xbf16>
    %426 = vector.shape_cast %425 : vector<1x64x128xbf16> to vector<64x128xbf16>
    %427 = arith.truncf %424 : vector<2x64xf32> to vector<2x64xbf16>
    %cst_165 = arith.constant dense<0.000000e+00> : vector<2x128xf32>
    %428 = tpu.matmul %427, %426, %cst_165 {dimension_numbers = #tpu.dot_dimension_numbers<[1], [0], [0], [1], [0, 0, 1, 1], [], []>} : vector<2x64xbf16>, vector<64x128xbf16>, vector<2x128xf32> -> vector<2x128xf32>
    %429 = arith.addf %411, %428 : vector<2x128xf32>
    %430 = tpu.iota {dimensions = array<i32: 0>} : vector<2x8xi32>
    %431 = tpu.iota {dimensions = array<i32: 1>} : vector<2x8xi32>
    %c4_i32_166 = arith.constant 4 : i32
    %432 = vector.broadcast %c4_i32_166 : i32 to vector<2x8xi32>
    %433 = arith.muli %432, %430 : vector<2x8xi32>
    %c1_i32_167 = arith.constant 1 : i32
    %434 = vector.broadcast %c1_i32_167 : i32 to vector<2x8xi32>
    %435 = arith.addi %433, %434 : vector<2x8xi32>
    %436 = arith.cmpi eq, %431, %435 : vector<2x8xi32>
    %cst_168 = arith.constant 1.000000e+00 : f32
    %cst_169 = arith.constant 0.000000e+00 : f32
    %437 = vector.broadcast %cst_168 : f32 to vector<2x8xf32>
    %438 = vector.broadcast %cst_169 : f32 to vector<2x8xf32>
    %439 = arith.select %436, %437, %438 : vector<2x8xi1>, vector<2x8xf32>
    %440 = arith.truncf %439 : vector<2x8xf32> to vector<2x8xbf16>
    %441 = arith.truncf %410 : vector<8x64xf32> to vector<8x64xbf16>
    %cst_170 = arith.constant dense<0.000000e+00> : vector<2x64xf32>
    %442 = tpu.matmul %440, %441, %cst_170 {dimension_numbers = #tpu.dot_dimension_numbers<[1], [0], [0], [1], [0, 0, 1, 1], [], []>} : vector<2x8xbf16>, vector<8x64xbf16>, vector<2x64xf32> -> vector<2x64xf32>
    %c1_171 = arith.constant 1 : index
    %c0_172 = arith.constant 0 : index
    %c0_173 = arith.constant 0 : index
    %443 = vector.load %arg5[%c1_171, %c0_172, %c0_173] : memref<4x64x128xbf16, #tpu.memory_space<vmem>>, vector<1x64x128xbf16>
    %444 = vector.shape_cast %443 : vector<1x64x128xbf16> to vector<64x128xbf16>
    %445 = arith.truncf %442 : vector<2x64xf32> to vector<2x64xbf16>
    %cst_174 = arith.constant dense<0.000000e+00> : vector<2x128xf32>
    %446 = tpu.matmul %445, %444, %cst_174 {dimension_numbers = #tpu.dot_dimension_numbers<[1], [0], [0], [1], [0, 0, 1, 1], [], []>} : vector<2x64xbf16>, vector<64x128xbf16>, vector<2x128xf32> -> vector<2x128xf32>
    %447 = arith.addf %429, %446 : vector<2x128xf32>
    %448 = tpu.iota {dimensions = array<i32: 0>} : vector<2x8xi32>
    %449 = tpu.iota {dimensions = array<i32: 1>} : vector<2x8xi32>
    %c4_i32_175 = arith.constant 4 : i32
    %450 = vector.broadcast %c4_i32_175 : i32 to vector<2x8xi32>
    %451 = arith.muli %450, %448 : vector<2x8xi32>
    %c2_i32_176 = arith.constant 2 : i32
    %452 = vector.broadcast %c2_i32_176 : i32 to vector<2x8xi32>
    %453 = arith.addi %451, %452 : vector<2x8xi32>
    %454 = arith.cmpi eq, %449, %453 : vector<2x8xi32>
    %cst_177 = arith.constant 1.000000e+00 : f32
    %cst_178 = arith.constant 0.000000e+00 : f32
    %455 = vector.broadcast %cst_177 : f32 to vector<2x8xf32>
    %456 = vector.broadcast %cst_178 : f32 to vector<2x8xf32>
    %457 = arith.select %454, %455, %456 : vector<2x8xi1>, vector<2x8xf32>
    %458 = arith.truncf %457 : vector<2x8xf32> to vector<2x8xbf16>
    %459 = arith.truncf %410 : vector<8x64xf32> to vector<8x64xbf16>
    %cst_179 = arith.constant dense<0.000000e+00> : vector<2x64xf32>
    %460 = tpu.matmul %458, %459, %cst_179 {dimension_numbers = #tpu.dot_dimension_numbers<[1], [0], [0], [1], [0, 0, 1, 1], [], []>} : vector<2x8xbf16>, vector<8x64xbf16>, vector<2x64xf32> -> vector<2x64xf32>
    %c2_180 = arith.constant 2 : index
    %c0_181 = arith.constant 0 : index
    %c0_182 = arith.constant 0 : index
    %461 = vector.load %arg5[%c2_180, %c0_181, %c0_182] : memref<4x64x128xbf16, #tpu.memory_space<vmem>>, vector<1x64x128xbf16>
    %462 = vector.shape_cast %461 : vector<1x64x128xbf16> to vector<64x128xbf16>
    %463 = arith.truncf %460 : vector<2x64xf32> to vector<2x64xbf16>
    %cst_183 = arith.constant dense<0.000000e+00> : vector<2x128xf32>
    %464 = tpu.matmul %463, %462, %cst_183 {dimension_numbers = #tpu.dot_dimension_numbers<[1], [0], [0], [1], [0, 0, 1, 1], [], []>} : vector<2x64xbf16>, vector<64x128xbf16>, vector<2x128xf32> -> vector<2x128xf32>
    %465 = arith.addf %447, %464 : vector<2x128xf32>
    %466 = tpu.iota {dimensions = array<i32: 0>} : vector<2x8xi32>
    %467 = tpu.iota {dimensions = array<i32: 1>} : vector<2x8xi32>
    %c4_i32_184 = arith.constant 4 : i32
    %468 = vector.broadcast %c4_i32_184 : i32 to vector<2x8xi32>
    %469 = arith.muli %468, %466 : vector<2x8xi32>
    %c3_i32 = arith.constant 3 : i32
    %470 = vector.broadcast %c3_i32 : i32 to vector<2x8xi32>
    %471 = arith.addi %469, %470 : vector<2x8xi32>
    %472 = arith.cmpi eq, %467, %471 : vector<2x8xi32>
    %cst_185 = arith.constant 1.000000e+00 : f32
    %cst_186 = arith.constant 0.000000e+00 : f32
    %473 = vector.broadcast %cst_185 : f32 to vector<2x8xf32>
    %474 = vector.broadcast %cst_186 : f32 to vector<2x8xf32>
    %475 = arith.select %472, %473, %474 : vector<2x8xi1>, vector<2x8xf32>
    %476 = arith.truncf %475 : vector<2x8xf32> to vector<2x8xbf16>
    %477 = arith.truncf %410 : vector<8x64xf32> to vector<8x64xbf16>
    %cst_187 = arith.constant dense<0.000000e+00> : vector<2x64xf32>
    %478 = tpu.matmul %476, %477, %cst_187 {dimension_numbers = #tpu.dot_dimension_numbers<[1], [0], [0], [1], [0, 0, 1, 1], [], []>} : vector<2x8xbf16>, vector<8x64xbf16>, vector<2x64xf32> -> vector<2x64xf32>
    %c3_188 = arith.constant 3 : index
    %c0_189 = arith.constant 0 : index
    %c0_190 = arith.constant 0 : index
    %479 = vector.load %arg5[%c3_188, %c0_189, %c0_190] : memref<4x64x128xbf16, #tpu.memory_space<vmem>>, vector<1x64x128xbf16>
    %480 = vector.shape_cast %479 : vector<1x64x128xbf16> to vector<64x128xbf16>
    %481 = arith.truncf %478 : vector<2x64xf32> to vector<2x64xbf16>
    %cst_191 = arith.constant dense<0.000000e+00> : vector<2x128xf32>
    %482 = tpu.matmul %481, %480, %cst_191 {dimension_numbers = #tpu.dot_dimension_numbers<[1], [0], [0], [1], [0, 0, 1, 1], [], []>} : vector<2x64xbf16>, vector<64x128xbf16>, vector<2x128xf32> -> vector<2x128xf32>
    %483 = arith.addf %465, %482 : vector<2x128xf32>
    %c0_192 = arith.constant 0 : index
    %c0_193 = arith.constant 0 : index
    %484 = vector.load %arg6[%c0_192, %c0_193] : memref<1x128xf32, #tpu.memory_space<vmem>>, vector<1x128xf32>
    %485 = vector.broadcast %484 : vector<1x128xf32> to vector<2x128xf32>
    %486 = arith.addf %483, %485 : vector<2x128xf32>
    %cst_194 = arith.constant 0.000000e+00 : f32
    %487 = vector.broadcast %cst_194 : f32 to vector<2x128xf32>
    %488 = arith.maximumf %486, %487 : vector<2x128xf32>
    %c0_195 = arith.constant 0 : index
    %c0_196 = arith.constant 0 : index
    %489 = vector.load %arg7[%c0_195, %c0_196] : memref<128x128xbf16, #tpu.memory_space<vmem>>, vector<128x128xbf16>
    %490 = arith.truncf %488 : vector<2x128xf32> to vector<2x128xbf16>
    %cst_197 = arith.constant dense<0.000000e+00> : vector<2x128xf32>
    %491 = tpu.matmul %490, %489, %cst_197 {dimension_numbers = #tpu.dot_dimension_numbers<[1], [0], [0], [1], [0, 0, 1, 1], [], []>} : vector<2x128xbf16>, vector<128x128xbf16>, vector<2x128xf32> -> vector<2x128xf32>
    %c0_198 = arith.constant 0 : index
    %c0_199 = arith.constant 0 : index
    %492 = vector.load %arg8[%c0_198, %c0_199] : memref<1x128xf32, #tpu.memory_space<vmem>>, vector<1x128xf32>
    %493 = vector.broadcast %492 : vector<1x128xf32> to vector<2x128xf32>
    %494 = arith.addf %491, %493 : vector<2x128xf32>
    %cst_200 = arith.constant 0.000000e+00 : f32
    %495 = vector.broadcast %cst_200 : f32 to vector<2x128xf32>
    %496 = arith.maximumf %494, %495 : vector<2x128xf32>
    %c0_201 = arith.constant 0 : index
    %c0_202 = arith.constant 0 : index
    %497 = vector.load %arg9[%c0_201, %c0_202] : memref<128x10xbf16, #tpu.memory_space<vmem>>, vector<128x10xbf16>
    %498 = arith.truncf %496 : vector<2x128xf32> to vector<2x128xbf16>
    %cst_203 = arith.constant dense<0.000000e+00> : vector<2x10xf32>
    %499 = tpu.matmul %498, %497, %cst_203 {dimension_numbers = #tpu.dot_dimension_numbers<[1], [0], [0], [1], [0, 0, 1, 1], [], []>} : vector<2x128xbf16>, vector<128x10xbf16>, vector<2x10xf32> -> vector<2x10xf32>
    %c0_204 = arith.constant 0 : index
    %c0_205 = arith.constant 0 : index
    %500 = vector.load %arg10[%c0_204, %c0_205] : memref<1x10xf32, #tpu.memory_space<vmem>>, vector<1x10xf32>
    %501 = vector.broadcast %500 : vector<1x10xf32> to vector<2x10xf32>
    %502 = arith.addf %499, %501 : vector<2x10xf32>
    %cst_206 = arith.constant 0.000000e+00 : f32
    %503 = vector.broadcast %cst_206 : f32 to vector<2x10xf32>
    %504 = arith.maximumf %502, %503 : vector<2x10xf32>
    %c0_207 = arith.constant 0 : index
    %c0_208 = arith.constant 0 : index
    %505 = vector.load %arg11[%c0_207, %c0_208] : memref<2x10xf32, #tpu.memory_space<vmem>>, vector<2x10xf32>
    tpu.vector_store %arg11[%c0_207, %c0_208], %504 {strides = array<i32>} : memref<2x10xf32, #tpu.memory_space<vmem>>, vector<2x10xf32>,
    return
  }
}

</mosaic_0001>

<llo_original>
// kernel: lenet5_forward.1
$region0: #{lenet5_forward.1}
  #allocation0 [shape = 'u32[]', space=smem, size = 0x4, offset = 0x4, fixed_abs, tag = 'smem constant byte address 0x4 - core index']
  #allocation1 [shape = 'u32[144,128]{1,0:T(1,128)}', space=vmem, size = 0x12000, scoped, tag = 'internal scratch']
  %s0 = inlined_call_operand.vmem [shape: f32[2,28,28], index: 0, kind: input, shape index: {}]
  %s1 = inlined_call_operand.vmem [shape: bf16[5,28,144], index: 1, kind: input, shape index: {}]
  %s2 = inlined_call_operand.vmem [shape: f32[1,144], index: 2, kind: input, shape index: {}]
  %s3 = inlined_call_operand.vmem [shape: bf16[30,12,128], index: 3, kind: input, shape index: {}]
  %s4 = inlined_call_operand.vmem [shape: f32[1,128], index: 4, kind: input, shape index: {}]
  %s5 = inlined_call_operand.vmem [shape: bf16[4,64,128], index: 5, kind: input, shape index: {}]
  %s6 = inlined_call_operand.vmem [shape: f32[1,128], index: 6, kind: input, shape index: {}]
  %s7 = inlined_call_operand.vmem [shape: bf16[128,128], index: 7, kind: input, shape index: {}]
  %s8 = inlined_call_operand.vmem [shape: f32[1,128], index: 8, kind: input, shape index: {}]
  %s9 = inlined_call_operand.vmem [shape: bf16[128,10], index: 9, kind: input, shape index: {}]
  %s10 = inlined_call_operand.vmem [shape: f32[1,10], index: 10, kind: input, shape index: {}]
  %s11 = inlined_call_operand.hbm [shape: f32[2,10], index: 11, kind: output, shape index: {}]
  %s12 = sld [smem:[#allocation0]]
  $region54: #{lenet5_forward.1} parent=0
    _
  %s14 = ssub.s32 1, %s12
  %s15 = scalar_select 0, %s14, %s12
  $region1: #{lenet5_forward.1} parent=0
    #allocation2 [shape = 'u8[1024]{0}', space=vmem, size = 0x400, scoped, tag = 'output window, operand 0, single buffered']
    #allocation3 [shape = 's32[1]{0}', space=sflag, size = 0x4, scoped, tag = 'scoped memory for lenet5_forward.1']
    %16 = vsyncpa [#allocation3], 0
    // Predicated region
    $region2: #{lenet5_forward.1} parent=1 // pred_check
      _
    $region3: #{lenet5_forward.1} parent=1 // pred_check_branch
      %18 = sbr.rel (0) target = $region5
    $region4: #{lenet5_forward.1} parent=1 // pred_region
      _
    $region5: #{lenet5_forward.1} parent=1 // pred_fallthru
      _
    // Predicated region
    $region6: #{lenet5_forward.1} parent=1 // pred_check
      _
    $region7: #{lenet5_forward.1} parent=1 // pred_check_branch
      %20 = sbr.rel (0) target = $region9
    $region8: #{lenet5_forward.1} parent=1 // pred_region
      _
    $region9: #{lenet5_forward.1} parent=1 // pred_fallthru
      _
    // Predicated region
    $region10: #{lenet5_forward.1} parent=1 // pred_check
      _
    $region11: #{lenet5_forward.1} parent=1 // pred_check_branch
      %22 = sbr.rel (0) target = $region13
    $region12: #{lenet5_forward.1} parent=1 // pred_region
      _
    $region13: #{lenet5_forward.1} parent=1 // pred_fallthru
      _
    // Predicated region
    $region14: #{lenet5_forward.1} parent=1 // pred_check
      _
    $region15: #{lenet5_forward.1} parent=1 // pred_check_branch
      %24 = sbr.rel (0) target = $region17
    $region16: #{lenet5_forward.1} parent=1 // pred_region
      _
    $region17: #{lenet5_forward.1} parent=1 // pred_fallthru
      _
    // Predicated region
    $region18: #{lenet5_forward.1} parent=1 // pred_check
      _
    $region19: #{lenet5_forward.1} parent=1 // pred_check_branch
      %26 = sbr.rel (0) target = $region21
    $region20: #{lenet5_forward.1} parent=1 // pred_region
      _
    $region21: #{lenet5_forward.1} parent=1 // pred_fallthru
      _
    // Predicated region
    $region22: #{lenet5_forward.1} parent=1 // pred_check
      _
    $region23: #{lenet5_forward.1} parent=1 // pred_check_branch
      %28 = sbr.rel (0) target = $region25
    $region24: #{lenet5_forward.1} parent=1 // pred_region
      _
    $region25: #{lenet5_forward.1} parent=1 // pred_fallthru
      _
    // Predicated region
    $region26: #{lenet5_forward.1} parent=1 // pred_check
      _
    $region27: #{lenet5_forward.1} parent=1 // pred_check_branch
      %30 = sbr.rel (0) target = $region29
    $region28: #{lenet5_forward.1} parent=1 // pred_region
      _
    $region29: #{lenet5_forward.1} parent=1 // pred_fallthru
      _
    // Predicated region
    $region30: #{lenet5_forward.1} parent=1 // pred_check
      _
    $region31: #{lenet5_forward.1} parent=1 // pred_check_branch
      %32 = sbr.rel (0) target = $region33
    $region32: #{lenet5_forward.1} parent=1 // pred_region
      _
    $region33: #{lenet5_forward.1} parent=1 // pred_fallthru
      _
    // Predicated region
    $region34: #{lenet5_forward.1} parent=1 // pred_check
      _
    $region35: #{lenet5_forward.1} parent=1 // pred_check_branch
      %34 = sbr.rel (0) target = $region37
    $region36: #{lenet5_forward.1} parent=1 // pred_region
      _
    $region37: #{lenet5_forward.1} parent=1 // pred_fallthru
      _
    // Predicated region
    $region38: #{lenet5_forward.1} parent=1 // pred_check
      _
    $region39: #{lenet5_forward.1} parent=1 // pred_check_branch
      %36 = sbr.rel (0) target = $region41
    $region40: #{lenet5_forward.1} parent=1 // pred_region
      _
    $region41: #{lenet5_forward.1} parent=1 // pred_fallthru
      _
    // Predicated region
    $region42: #{lenet5_forward.1} parent=1 // pred_check
      _
    $region43: #{lenet5_forward.1} parent=1 // pred_check_branch
      %38 = sbr.rel (0) target = $region45
    $region44: #{lenet5_forward.1} parent=1 // pred_region
      _
    $region45: #{lenet5_forward.1} parent=1 // pred_fallthru
      _
    %v40 = vld [vmem:[%s0] sm:$0xff]
    %v41 = vld [vmem:[%s0 + $0x8] sm:$0xff]
    %v42 = vld [vmem:[%s0 + $0x10] sm:$0xff]
    %v43 = vld [vmem:[%s0 + $0x18] sm:$0xf]
    %v44 = vld [vmem:[%s0 + $0x20] sm:$0xff]
    %v45 = vld [vmem:[%s0 + $0x28] sm:$0xff]
    %v46 = vld [vmem:[%s0 + $0x30] sm:$0xff]
    %v47 = vld [vmem:[%s0 + $0x38] sm:$0xf]
    %v48 = vld [vmem:[%s1] sm:$0xff]
    %v49 = vld [vmem:[%s1 + $0x8] sm:$0xff]
    %v50 = vld [vmem:[%s1 + $0x10] sm:$0xff]
    %v51 = vld [vmem:[%s1 + $0x18] sm:$0x33]
    %v52 = vpack.c.bf16 %v41, %v40
    %v53 = vpack.c.bf16 %v44, %v42
    %v54 = vpack.c.bf16 %v46, %v45
    %vm59 = vcmask 1046528
    %v60 = vrot.slane %v40, 1
    %v61 = vrot.slane %v41, 1
    %v62 = vsel %vm59, %v60, %v61
    %v63 = vrot.slane %v42, 1
    %v64 = vsel %vm59, %v61, %v63
    %v65 = vrot.slane %v43, 1
    %v66 = vsel %vm59, %v63, %v65
    %v74 = vrot.slane %v44, 1
    %v75 = vrot.slane %v45, 1
    %v76 = vsel %vm59, %v74, %v75
    %v77 = vrot.slane %v46, 1
    %v78 = vsel %vm59, %v75, %v77
    %v79 = vrot.slane %v47, 1
    %v80 = vsel %vm59, %v77, %v79
    %s84 = scalar_lea.vmem %s1, 32
    %v85 = vld [vmem:[%s84] sm:$0xff]
    %v86 = vld [vmem:[%s84 + $0x8] sm:$0xff]
    %v87 = vld [vmem:[%s84 + $0x10] sm:$0xff]
    %v88 = vld [vmem:[%s84 + $0x18] sm:$0x33]
    %v89 = vpack.c.bf16 %v64, %v62
    %v90 = vpack.c.bf16 %v76, %v66
    %v91 = vpack.c.bf16 %v80, %v78
    %v96 = vunpack.c.l.b16 %v85
    %v97 = vunpack.c.h.b16 %v85
    %v98 = vunpack.c.l.b16 %v86
    %v99 = vunpack.c.h.b16 %v86
    %v100 = vunpack.c.l.b16 %v87
    %v101 = vunpack.c.h.b16 %v87
    %v102 = vunpack.c.l.b16 %v88
    %v103 = vunpack.c.h.b16 %v88
    %v104 = vpack.c.b16 %v98, %v96
    %v105 = vpack.c.b16 %v99, %v97
    %v106 = vpack.c.b16 %v102, %v100
    %v107 = vpack.c.b16 %v103, %v101
    %vm110 = vcmask 228352
    %v112 = vsel %vm110, %v89, 0
    %v115 = vsel %vm110, %v90, 0
    %v118 = vsel %vm110, %v91, 0
    %vm120 = vcmask 1045504
    %v122 = vsel %vm120, %v106, 0
    %v125 = vsel %vm120, %v107, 0
    %127 = vmatprep.subr.bf16.mxu0 0
    %128 = vmatpush1.bf16.msra.mxu0 0
    %129 = vmatprep.subr.bf16.mxu0 0
    %130 = vmatpush1.bf16.msra.mxu0 0
    %131 = vmatprep.subr.bf16.mxu0 0
    %132 = vmatpush1.bf16.msra.mxu0 0
    %133 = vmatprep.subr.bf16.mxu0 0
    %134 = vmatpush1.bf16.msra.mxu0 0
    %135 = vmatprep.subr.bf16.mxu0 0
    %136 = vmatpush1.bf16.msra.mxu0 0
    %137 = vmatprep.subr.bf16.mxu0 0
    %138 = vmatpush1.bf16.msra.mxu0 0
    %139 = vmatprep.subr.bf16.mxu0 %v125
    %140 = vmatpush1.bf16.msra.mxu0 %v122
    %141 = vmatprep.subr.bf16.mxu0 %v105
    %142 = vmatpush1.bf16.msra.mxu0 %v104
    %143 = vmatprep.subr.bf16.mxu0 0
    %144 = vmatpush2.bf16.msra.mxu0 0
    %145 = vmatprep.subr.bf16.mxu0 0
    %146 = vmatpush2.bf16.msra.mxu0 0
    %147 = vmatprep.subr.bf16.mxu0 0
    %148 = vmatpush2.bf16.msra.mxu0 0
    %149 = vmatprep.subr.bf16.mxu0 0
    %150 = vmatpush2.bf16.msra.mxu0 0
    %151 = vmatprep.subr.bf16.mxu0 0
    %152 = vmatpush2.bf16.msra.mxu0 0
    %153 = vmatprep.subr.bf16.mxu0 0
    %154 = vmatpush2.bf16.msra.mxu0 0
    %155 = vmatprep.subr.bf16.mxu0 0
    %156 = vmatpush2.bf16.msra.mxu0 0
    %157 = vmatprep.subr.bf16.mxu0 0
    %158 = vmatpush2.bf16.msra.mxu0 0
    %159 = vmatprep.mubr.bf16.mxu0 0
    %160 = vmatmul.mubr.bf16.gmra.mxu0 %v112
    %v161 = vpop.f32.mrf.mxu0
    %v162 = vadd.f32 0.0, %v161
    %v163 = vpop.f32.mrf.mxu0
    %v164 = vadd.f32 0.0, %v163
    %v165 = vpop.f32.mrf.mxu0
    %v166 = vadd.f32 0.0, %v165
    %v167 = vpop.f32.mrf.mxu0
    %v168 = vadd.f32 0.0, %v167
    %169 = vmatprep.mubr.bf16.mxu0 0
    %170 = vmatmul.mubr.bf16.gmra.mxu0 %v115
    %v171 = vpop.f32.mrf.mxu0
    %v172 = vadd.f32 0.0, %v171
    %v173 = vpop.f32.mrf.mxu0
    %v174 = vadd.f32 0.0, %v173
    %v175 = vpop.f32.mrf.mxu0
    %v176 = vadd.f32 0.0, %v175
    %v177 = vpop.f32.mrf.mxu0
    %v178 = vadd.f32 0.0, %v177
    %179 = vmatprep.mubr.bf16.mxu0 0
    %180 = vmatmul.mubr.bf16.gmra.mxu0 %v118
    %v181 = vpop.f32.mrf.mxu0
    %v182 = vadd.f32 0.0, %v181
    %v183 = vpop.f32.mrf.mxu0
    %v184 = vadd.f32 0.0, %v183
    %v185 = vpop.f32.mrf.mxu0
    %v186 = vadd.f32 0.0, %v185
    %v187 = vpop.f32.mrf.mxu0
    %v188 = vadd.f32 0.0, %v187
    %189 = vdwg.mxu0
    %v194 = vunpack.c.l.b16 %v48
    %v195 = vunpack.c.h.b16 %v48
    %v196 = vunpack.c.l.b16 %v49
    %v197 = vunpack.c.h.b16 %v49
    %v198 = vunpack.c.l.b16 %v50
    %v199 = vunpack.c.h.b16 %v50
    %v200 = vunpack.c.l.b16 %v51
    %v201 = vunpack.c.h.b16 %v51
    %v202 = vpack.c.b16 %v196, %v194
    %v203 = vpack.c.b16 %v197, %v195
    %v204 = vpack.c.b16 %v200, %v198
    %v205 = vpack.c.b16 %v201, %v199
    %v209 = vsel %vm110, %v52, 0
    %v212 = vsel %vm110, %v53, 0
    %v215 = vsel %vm110, %v54, 0
    %v218 = vsel %vm120, %v204, 0
    %v221 = vsel %vm120, %v205, 0
    %223 = vmatprep.subr.bf16.mxu0 0
    %224 = vmatpush1.bf16.msra.mxu0 0
    %225 = vmatprep.subr.bf16.mxu0 0
    %226 = vmatpush1.bf16.msra.mxu0 0
    %227 = vmatprep.subr.bf16.mxu0 0
    %228 = vmatpush1.bf16.msra.mxu0 0
    %229 = vmatprep.subr.bf16.mxu0 0
    %230 = vmatpush1.bf16.msra.mxu0 0
    %231 = vmatprep.subr.bf16.mxu0 0
    %232 = vmatpush1.bf16.msra.mxu0 0
    %233 = vmatprep.subr.bf16.mxu0 0
    %234 = vmatpush1.bf16.msra.mxu0 0
    %235 = vmatprep.subr.bf16.mxu0 %v221
    %236 = vmatpush1.bf16.msra.mxu0 %v218
    %237 = vmatprep.subr.bf16.mxu0 %v203
    %238 = vmatpush1.bf16.msra.mxu0 %v202
    %239 = vmatprep.subr.bf16.mxu0 0
    %240 = vmatpush2.bf16.msra.mxu0 0
    %241 = vmatprep.subr.bf16.mxu0 0
    %242 = vmatpush2.bf16.msra.mxu0 0
    %243 = vmatprep.subr.bf16.mxu0 0
    %244 = vmatpush2.bf16.msra.mxu0 0
    %245 = vmatprep.subr.bf16.mxu0 0
    %246 = vmatpush2.bf16.msra.mxu0 0
    %247 = vmatprep.subr.bf16.mxu0 0
    %248 = vmatpush2.bf16.msra.mxu0 0
    %249 = vmatprep.subr.bf16.mxu0 0
    %250 = vmatpush2.bf16.msra.mxu0 0
    %251 = vmatprep.subr.bf16.mxu0 0
    %252 = vmatpush2.bf16.msra.mxu0 0
    %253 = vmatprep.subr.bf16.mxu0 0
    %254 = vmatpush2.bf16.msra.mxu0 0
    %255 = vmatprep.mubr.bf16.mxu0 0
    %256 = vmatmul.mubr.bf16.gmra.mxu0 %v209
    %v257 = vpop.f32.mrf.mxu0
    %v258 = vadd.f32 %v162, %v257
    %v259 = vpop.f32.mrf.mxu0
    %v260 = vadd.f32 %v164, %v259
    %v261 = vpop.f32.mrf.mxu0
    %v262 = vadd.f32 %v166, %v261
    %v263 = vpop.f32.mrf.mxu0
    %v264 = vadd.f32 %v168, %v263
    %265 = vmatprep.mubr.bf16.mxu0 0
    %266 = vmatmul.mubr.bf16.gmra.mxu0 %v212
    %v267 = vpop.f32.mrf.mxu0
    %v268 = vadd.f32 %v172, %v267
    %v269 = vpop.f32.mrf.mxu0
    %v270 = vadd.f32 %v174, %v269
    %v271 = vpop.f32.mrf.mxu0
    %v272 = vadd.f32 %v176, %v271
    %v273 = vpop.f32.mrf.mxu0
    %v274 = vadd.f32 %v178, %v273
    %275 = vmatprep.mubr.bf16.mxu0 0
    %276 = vmatmul.mubr.bf16.gmra.mxu0 %v215
    %v277 = vpop.f32.mrf.mxu0
    %v278 = vadd.f32 %v182, %v277
    %v279 = vpop.f32.mrf.mxu0
    %v280 = vadd.f32 %v184, %v279
    %v281 = vpop.f32.mrf.mxu0
    %v282 = vadd.f32 %v186, %v281
    %v283 = vpop.f32.mrf.mxu0
    %v284 = vadd.f32 %v188, %v283
    %285 = vdwg.mxu0
    %v286 = vrot.slane %v40, 2
    %v287 = vrot.slane %v41, 2
    %v288 = vsel %vm120, %v286, %v287
    %v289 = vrot.slane %v42, 2
    %v290 = vsel %vm120, %v287, %v289
    %v291 = vrot.slane %v43, 2
    %v292 = vsel %vm120, %v289, %v291
    %v296 = vrot.slane %v44, 2
    %v297 = vrot.slane %v45, 2
    %v298 = vsel %vm120, %v296, %v297
    %v299 = vrot.slane %v46, 2
    %v300 = vsel %vm120, %v297, %v299
    %v301 = vrot.slane %v47, 2
    %v302 = vsel %vm120, %v299, %v301
    %s306 = scalar_lea.vmem %s1, 64
    %v307 = vld [vmem:[%s306] sm:$0xff]
    %v308 = vld [vmem:[%s306 + $0x8] sm:$0xff]
    %v309 = vld [vmem:[%s306 + $0x10] sm:$0xff]
    %v310 = vld [vmem:[%s306 + $0x18] sm:$0x33]
    %v311 = vpack.c.bf16 %v290, %v288
    %v312 = vpack.c.bf16 %v298, %v292
    %v313 = vpack.c.bf16 %v302, %v300
    %v318 = vunpack.c.l.b16 %v307
    %v319 = vunpack.c.h.b16 %v307
    %v320 = vunpack.c.l.b16 %v308
    %v321 = vunpack.c.h.b16 %v308
    %v322 = vunpack.c.l.b16 %v309
    %v323 = vunpack.c.h.b16 %v309
    %v324 = vunpack.c.l.b16 %v310
    %v325 = vunpack.c.h.b16 %v310
    %v326 = vpack.c.b16 %v320, %v318
    %v327 = vpack.c.b16 %v321, %v319
    %v328 = vpack.c.b16 %v324, %v322
    %v329 = vpack.c.b16 %v325, %v323
    %v333 = vsel %vm110, %v311, 0
    %v336 = vsel %vm110, %v312, 0
    %v339 = vsel %vm110, %v313, 0
    %v342 = vsel %vm120, %v328, 0
    %v345 = vsel %vm120, %v329, 0
    %347 = vmatprep.subr.bf16.mxu0 0
    %348 = vmatpush1.bf16.msra.mxu0 0
    %349 = vmatprep.subr.bf16.mxu0 0
    %350 = vmatpush1.bf16.msra.mxu0 0
    %351 = vmatprep.subr.bf16.mxu0 0
    %352 = vmatpush1.bf16.msra.mxu0 0
    %353 = vmatprep.subr.bf16.mxu0 0
    %354 = vmatpush1.bf16.msra.mxu0 0
    %355 = vmatprep.subr.bf16.mxu0 0
    %356 = vmatpush1.bf16.msra.mxu0 0
    %357 = vmatprep.subr.bf16.mxu0 0
    %358 = vmatpush1.bf16.msra.mxu0 0
    %359 = vmatprep.subr.bf16.mxu0 %v345
    %360 = vmatpush1.bf16.msra.mxu0 %v342
    %361 = vmatprep.subr.bf16.mxu0 %v327
    %362 = vmatpush1.bf16.msra.mxu0 %v326
    %363 = vmatprep.subr.bf16.mxu0 0
    %364 = vmatpush2.bf16.msra.mxu0 0
    %365 = vmatprep.subr.bf16.mxu0 0
    %366 = vmatpush2.bf16.msra.mxu0 0
    %367 = vmatprep.subr.bf16.mxu0 0
    %368 = vmatpush2.bf16.msra.mxu0 0
    %369 = vmatprep.subr.bf16.mxu0 0
    %370 = vmatpush2.bf16.msra.mxu0 0
    %371 = vmatprep.subr.bf16.mxu0 0
    %372 = vmatpush2.bf16.msra.mxu0 0
    %373 = vmatprep.subr.bf16.mxu0 0
    %374 = vmatpush2.bf16.msra.mxu0 0
    %375 = vmatprep.subr.bf16.mxu0 0
    %376 = vmatpush2.bf16.msra.mxu0 0
    %377 = vmatprep.subr.bf16.mxu0 0
    %378 = vmatpush2.bf16.msra.mxu0 0
    %379 = vmatprep.mubr.bf16.mxu0 0
    %380 = vmatmul.mubr.bf16.gmra.mxu0 %v333
    %v381 = vpop.f32.mrf.mxu0
    %v382 = vadd.f32 0.0, %v381
    %v383 = vpop.f32.mrf.mxu0
    %v384 = vadd.f32 0.0, %v383
    %v385 = vpop.f32.mrf.mxu0
    %v386 = vadd.f32 0.0, %v385
    %v387 = vpop.f32.mrf.mxu0
    %v388 = vadd.f32 0.0, %v387
    %389 = vmatprep.mubr.bf16.mxu0 0
    %390 = vmatmul.mubr.bf16.gmra.mxu0 %v336
    %v391 = vpop.f32.mrf.mxu0
    %v392 = vadd.f32 0.0, %v391
    %v393 = vpop.f32.mrf.mxu0
    %v394 = vadd.f32 0.0, %v393
    %v395 = vpop.f32.mrf.mxu0
    %v396 = vadd.f32 0.0, %v395
    %v397 = vpop.f32.mrf.mxu0
    %v398 = vadd.f32 0.0, %v397
    %399 = vmatprep.mubr.bf16.mxu0 0
    %400 = vmatmul.mubr.bf16.gmra.mxu0 %v339
    %v401 = vpop.f32.mrf.mxu0
    %v402 = vadd.f32 0.0, %v401
    %v403 = vpop.f32.mrf.mxu0
    %v404 = vadd.f32 0.0, %v403
    %v405 = vpop.f32.mrf.mxu0
    %v406 = vadd.f32 0.0, %v405
    %v407 = vpop.f32.mrf.mxu0
    %v408 = vadd.f32 0.0, %v407
    %409 = vdwg.mxu0
    %v410 = vadd.f32 %v258, %v382
    %v411 = vadd.f32 %v260, %v384
    %v412 = vadd.f32 %v262, %v386
    %v413 = vadd.f32 %v264, %v388
    %v414 = vadd.f32 %v268, %v392
    %v415 = vadd.f32 %v270, %v394
    %v416 = vadd.f32 %v272, %v396
    %v417 = vadd.f32 %v274, %v398
    %v418 = vadd.f32 %v278, %v402
    %v419 = vadd.f32 %v280, %v404
    %v420 = vadd.f32 %v282, %v406
    %v421 = vadd.f32 %v284, %v408
    %vm422 = vcmask 1044480
    %v423 = vrot.slane %v40, 3
    %v424 = vrot.slane %v41, 3
    %v425 = vsel %vm422, %v423, %v424
    %v426 = vrot.slane %v42, 3
    %v427 = vsel %vm422, %v424, %v426
    %v428 = vrot.slane %v43, 3
    %v429 = vsel %vm422, %v426, %v428
    %v433 = vrot.slane %v44, 3
    %v434 = vrot.slane %v45, 3
    %v435 = vsel %vm422, %v433, %v434
    %v436 = vrot.slane %v46, 3
    %v437 = vsel %vm422, %v434, %v436
    %v438 = vrot.slane %v47, 3
    %v439 = vsel %vm422, %v436, %v438
    %s443 = scalar_lea.vmem %s1, 96
    %v444 = vld [vmem:[%s443] sm:$0xff]
    %v445 = vld [vmem:[%s443 + $0x8] sm:$0xff]
    %v446 = vld [vmem:[%s443 + $0x10] sm:$0xff]
    %v447 = vld [vmem:[%s443 + $0x18] sm:$0x33]
    %v448 = vpack.c.bf16 %v427, %v425
    %v449 = vpack.c.bf16 %v435, %v429
    %v450 = vpack.c.bf16 %v439, %v437
    %v455 = vunpack.c.l.b16 %v444
    %v456 = vunpack.c.h.b16 %v444
    %v457 = vunpack.c.l.b16 %v445
    %v458 = vunpack.c.h.b16 %v445
    %v459 = vunpack.c.l.b16 %v446
    %v460 = vunpack.c.h.b16 %v446
    %v461 = vunpack.c.l.b16 %v447
    %v462 = vunpack.c.h.b16 %v447
    %v463 = vpack.c.b16 %v457, %v455
    %v464 = vpack.c.b16 %v458, %v456
    %v465 = vpack.c.b16 %v461, %v459
    %v466 = vpack.c.b16 %v462, %v460
    %v470 = vsel %vm110, %v448, 0
    %v473 = vsel %vm110, %v449, 0
    %v476 = vsel %vm110, %v450, 0
    %v479 = vsel %vm120, %v465, 0
    %v482 = vsel %vm120, %v466, 0
    %484 = vmatprep.subr.bf16.mxu0 0
    %485 = vmatpush1.bf16.msra.mxu0 0
    %486 = vmatprep.subr.bf16.mxu0 0
    %487 = vmatpush1.bf16.msra.mxu0 0
    %488 = vmatprep.subr.bf16.mxu0 0
    %489 = vmatpush1.bf16.msra.mxu0 0
    %490 = vmatprep.subr.bf16.mxu0 0
    %491 = vmatpush1.bf16.msra.mxu0 0
    %492 = vmatprep.subr.bf16.mxu0 0
    %493 = vmatpush1.bf16.msra.mxu0 0
    %494 = vmatprep.subr.bf16.mxu0 0
    %495 = vmatpush1.bf16.msra.mxu0 0
    %496 = vmatprep.subr.bf16.mxu0 %v482
    %497 = vmatpush1.bf16.msra.mxu0 %v479
    %498 = vmatprep.subr.bf16.mxu0 %v464
    %499 = vmatpush1.bf16.msra.mxu0 %v463
    %500 = vmatprep.subr.bf16.mxu0 0
    %501 = vmatpush2.bf16.msra.mxu0 0
    %502 = vmatprep.subr.bf16.mxu0 0
    %503 = vmatpush2.bf16.msra.mxu0 0
    %504 = vmatprep.subr.bf16.mxu0 0
    %505 = vmatpush2.bf16.msra.mxu0 0
    %506 = vmatprep.subr.bf16.mxu0 0
    %507 = vmatpush2.bf16.msra.mxu0 0
    %508 = vmatprep.subr.bf16.mxu0 0
    %509 = vmatpush2.bf16.msra.mxu0 0
    %510 = vmatprep.subr.bf16.mxu0 0
    %511 = vmatpush2.bf16.msra.mxu0 0
    %512 = vmatprep.subr.bf16.mxu0 0
    %513 = vmatpush2.bf16.msra.mxu0 0
    %514 = vmatprep.subr.bf16.mxu0 0
    %515 = vmatpush2.bf16.msra.mxu0 0
    %516 = vmatprep.mubr.bf16.mxu0 0
    %517 = vmatmul.mubr.bf16.gmra.mxu0 %v470
    %v518 = vpop.f32.mrf.mxu0
    %v519 = vadd.f32 0.0, %v518
    %v520 = vpop.f32.mrf.mxu0
    %v521 = vadd.f32 0.0, %v520
    %v522 = vpop.f32.mrf.mxu0
    %v523 = vadd.f32 0.0, %v522
    %v524 = vpop.f32.mrf.mxu0
    %v525 = vadd.f32 0.0, %v524
    %526 = vmatprep.mubr.bf16.mxu0 0
    %527 = vmatmul.mubr.bf16.gmra.mxu0 %v473
    %v528 = vpop.f32.mrf.mxu0
    %v529 = vadd.f32 0.0, %v528
    %v530 = vpop.f32.mrf.mxu0
    %v531 = vadd.f32 0.0, %v530
    %v532 = vpop.f32.mrf.mxu0
    %v533 = vadd.f32 0.0, %v532
    %v534 = vpop.f32.mrf.mxu0
    %v535 = vadd.f32 0.0, %v534
    %536 = vmatprep.mubr.bf16.mxu0 0
    %537 = vmatmul.mubr.bf16.gmra.mxu0 %v476
    %v538 = vpop.f32.mrf.mxu0
    %v539 = vadd.f32 0.0, %v538
    %v540 = vpop.f32.mrf.mxu0
    %v541 = vadd.f32 0.0, %v540
    %v542 = vpop.f32.mrf.mxu0
    %v543 = vadd.f32 0.0, %v542
    %v544 = vpop.f32.mrf.mxu0
    %v545 = vadd.f32 0.0, %v544
    %546 = vdwg.mxu0
    %v547 = vadd.f32 %v410, %v519
    %v548 = vadd.f32 %v411, %v521
    %v549 = vadd.f32 %v412, %v523
    %v550 = vadd.f32 %v413, %v525
    %v551 = vadd.f32 %v414, %v529
    %v552 = vadd.f32 %v415, %v531
    %v553 = vadd.f32 %v416, %v533
    %v554 = vadd.f32 %v417, %v535
    %v555 = vadd.f32 %v418, %v539
    %v556 = vadd.f32 %v419, %v541
    %v557 = vadd.f32 %v420, %v543
    %v558 = vadd.f32 %v421, %v545
    %vm559 = vcmask 1043456
    %v560 = vrot.slane %v40, 4
    %v561 = vrot.slane %v41, 4
    %v562 = vsel %vm559, %v560, %v561
    %v563 = vrot.slane %v42, 4
    %v564 = vsel %vm559, %v561, %v563
    %v565 = vrot.slane %v43, 4
    %v566 = vsel %vm559, %v563, %v565
    %v570 = vrot.slane %v44, 4
    %v571 = vrot.slane %v45, 4
    %v572 = vsel %vm559, %v570, %v571
    %v573 = vrot.slane %v46, 4
    %v574 = vsel %vm559, %v571, %v573
    %v575 = vrot.slane %v47, 4
    %v576 = vsel %vm559, %v573, %v575
    %s580 = scalar_lea.vmem %s1, 128
    %v581 = vld [vmem:[%s580] sm:$0xff]
    %v582 = vld [vmem:[%s580 + $0x8] sm:$0xff]
    %v583 = vld [vmem:[%s580 + $0x10] sm:$0xff]
    %v584 = vld [vmem:[%s580 + $0x18] sm:$0x33]
    %v585 = vpack.c.bf16 %v564, %v562
    %v586 = vpack.c.bf16 %v572, %v566
    %v587 = vpack.c.bf16 %v576, %v574
    %v592 = vunpack.c.l.b16 %v581
    %v593 = vunpack.c.h.b16 %v581
    %v594 = vunpack.c.l.b16 %v582
    %v595 = vunpack.c.h.b16 %v582
    %v596 = vunpack.c.l.b16 %v583
    %v597 = vunpack.c.h.b16 %v583
    %v598 = vunpack.c.l.b16 %v584
    %v599 = vunpack.c.h.b16 %v584
    %v600 = vpack.c.b16 %v594, %v592
    %v601 = vpack.c.b16 %v595, %v593
    %v602 = vpack.c.b16 %v598, %v596
    %v603 = vpack.c.b16 %v599, %v597
    %v607 = vsel %vm110, %v585, 0
    %v610 = vsel %vm110, %v586, 0
    %v613 = vsel %vm110, %v587, 0
    %v616 = vsel %vm120, %v602, 0
    %v619 = vsel %vm120, %v603, 0
    %621 = vmatprep.subr.bf16.mxu0 0
    %622 = vmatpush1.bf16.msra.mxu0 0
    %623 = vmatprep.subr.bf16.mxu0 0
    %624 = vmatpush1.bf16.msra.mxu0 0
    %625 = vmatprep.subr.bf16.mxu0 0
    %626 = vmatpush1.bf16.msra.mxu0 0
    %627 = vmatprep.subr.bf16.mxu0 0
    %628 = vmatpush1.bf16.msra.mxu0 0
    %629 = vmatprep.subr.bf16.mxu0 0
    %630 = vmatpush1.bf16.msra.mxu0 0
    %631 = vmatprep.subr.bf16.mxu0 0
    %632 = vmatpush1.bf16.msra.mxu0 0
    %633 = vmatprep.subr.bf16.mxu0 %v619
    %634 = vmatpush1.bf16.msra.mxu0 %v616
    %635 = vmatprep.subr.bf16.mxu0 %v601
    %636 = vmatpush1.bf16.msra.mxu0 %v600
    %637 = vmatprep.subr.bf16.mxu0 0
    %638 = vmatpush2.bf16.msra.mxu0 0
    %639 = vmatprep.subr.bf16.mxu0 0
    %640 = vmatpush2.bf16.msra.mxu0 0
    %641 = vmatprep.subr.bf16.mxu0 0
    %642 = vmatpush2.bf16.msra.mxu0 0
    %643 = vmatprep.subr.bf16.mxu0 0
    %644 = vmatpush2.bf16.msra.mxu0 0
    %645 = vmatprep.subr.bf16.mxu0 0
    %646 = vmatpush2.bf16.msra.mxu0 0
    %647 = vmatprep.subr.bf16.mxu0 0
    %648 = vmatpush2.bf16.msra.mxu0 0
    %649 = vmatprep.subr.bf16.mxu0 0
    %650 = vmatpush2.bf16.msra.mxu0 0
    %651 = vmatprep.subr.bf16.mxu0 0
    %652 = vmatpush2.bf16.msra.mxu0 0
    %653 = vmatprep.mubr.bf16.mxu0 0
    %654 = vmatmul.mubr.bf16.gmra.mxu0 %v607
    %v655 = vpop.f32.mrf.mxu0
    %v656 = vadd.f32 0.0, %v655
    %v657 = vpop.f32.mrf.mxu0
    %v658 = vadd.f32 0.0, %v657
    %v659 = vpop.f32.mrf.mxu0
    %v660 = vadd.f32 0.0, %v659
    %v661 = vpop.f32.mrf.mxu0
    %v662 = vadd.f32 0.0, %v661
    %663 = vmatprep.mubr.bf16.mxu0 0
    %664 = vmatmul.mubr.bf16.gmra.mxu0 %v610
    %v665 = vpop.f32.mrf.mxu0
    %v666 = vadd.f32 0.0, %v665
    %v667 = vpop.f32.mrf.mxu0
    %v668 = vadd.f32 0.0, %v667
    %v669 = vpop.f32.mrf.mxu0
    %v670 = vadd.f32 0.0, %v669
    %v671 = vpop.f32.mrf.mxu0
    %v672 = vadd.f32 0.0, %v671
    %673 = vmatprep.mubr.bf16.mxu0 0
    %674 = vmatmul.mubr.bf16.gmra.mxu0 %v613
    %v675 = vpop.f32.mrf.mxu0
    %v676 = vadd.f32 0.0, %v675
    %v677 = vpop.f32.mrf.mxu0
    %v678 = vadd.f32 0.0, %v677
    %v679 = vpop.f32.mrf.mxu0
    %v680 = vadd.f32 0.0, %v679
    %v681 = vpop.f32.mrf.mxu0
    %v682 = vadd.f32 0.0, %v681
    %683 = vdwg.mxu0
    %v684 = vadd.f32 %v547, %v656
    %v685 = vadd.f32 %v548, %v658
    %v686 = vadd.f32 %v549, %v660
    %v687 = vadd.f32 %v550, %v662
    %v688 = vadd.f32 %v551, %v666
    %v689 = vadd.f32 %v552, %v668
    %v690 = vadd.f32 %v553, %v670
    %v691 = vadd.f32 %v554, %v672
    %v692 = vadd.f32 %v555, %v676
    %v693 = vadd.f32 %v556, %v678
    %v694 = vadd.f32 %v557, %v680
    %v695 = vadd.f32 %v558, %v682
    %v696 = vld [vmem:[%s2] sm:$0x3]
    %v698 = vlaneseq
    %v699 = vshrl.u32 %v698, 7
    %v700 = vsub.s32 0, %v699
    %v701 = vrot.slane %v696, %v700
    %v702 = vlaneseq
    %v703 = vshrl.u32 %v702, 7
    %v704 = vsub.s32 1, %v703
    %v705 = vrot.slane %v696, %v704
    %v708 = vadd.f32 %v684, %v701
    %v709 = vadd.f32 %v685, %v705
    %v710 = vadd.f32 %v686, %v701
    %v711 = vadd.f32 %v687, %v705
    %v712 = vadd.f32 %v688, %v701
    %v713 = vadd.f32 %v689, %v705
    %v714 = vadd.f32 %v690, %v701
    %v715 = vadd.f32 %v691, %v705
    %v716 = vadd.f32 %v692, %v701
    %v717 = vadd.f32 %v693, %v705
    %v718 = vadd.f32 %v694, %v701
    %v719 = vadd.f32 %v695, %v705
    %v720 = vmax.f32 %v708, 0.0
    %v721 = vmax.f32 %v709, 0.0
    %v722 = vmax.f32 %v710, 0.0
    %v723 = vmax.f32 %v711, 0.0
    %v724 = vmax.f32 %v712, 0.0
    %v725 = vmax.f32 %v713, 0.0
    %v726 = vmax.f32 %v714, 0.0
    %v727 = vmax.f32 %v715, 0.0
    %v728 = vmax.f32 %v716, 0.0
    %v729 = vmax.f32 %v717, 0.0
    %v730 = vmax.f32 %v718, 0.0
    %v731 = vmax.f32 %v719, 0.0
    %v732 = vlaneseq
    %v733 = vshrl.u32 %v732, 7
    %v734 = vadd.s32 %v733, 8
    %v735 = vadd.s32 %v733, 16
    %v736 = vlaneseq
    %v737 = vand.u32 %v736, 127
    %v738 = vmul.u32 %v733, 2
    %v739 = vmul.u32 %v734, 2
    %v740 = vmul.u32 %v735, 2
    %vm741 = vcmp.eq.s32.totalorder %v737, %v738
    %vm742 = vcmp.eq.s32.totalorder %v737, %v739
    %vm743 = vcmp.eq.s32.totalorder %v737, %v740
    %v744 = vsel %vm741, 1.0, 0.0
    %v745 = vsel %vm742, 1.0, 0.0
    %v746 = vsel %vm743, 1.0, 0.0
    %v747 = vpack.c.bf16 %v745, %v744
    %v748 = vpack.c.bf16 %v746, %v746
    %v749 = vpack.c.bf16 %v722, %v720
    %v750 = vpack.c.bf16 %v723, %v721
    %v751 = vpack.c.bf16 %v726, %v724
    %v752 = vpack.c.bf16 %v727, %v725
    %v753 = vpack.c.bf16 %v730, %v728
    %v754 = vpack.c.bf16 %v731, %v729
    %vm755 = vcmask 392192
    %v757 = vsel %vm755, %v747, 0
    %v760 = vsel %vm755, %v748, 0
    %762 = vmatprep.subr.bf16.mxu0 0
    %763 = vmatpush1.bf16.msra.mxu0 0
    %764 = vmatprep.subr.bf16.mxu0 0
    %765 = vmatpush1.bf16.msra.mxu0 0
    %766 = vmatprep.subr.bf16.mxu0 0
    %767 = vmatpush1.bf16.msra.mxu0 0
    %768 = vmatprep.subr.bf16.mxu0 0
    %769 = vmatpush1.bf16.msra.mxu0 0
    %770 = vmatprep.subr.bf16.mxu0 0
    %771 = vmatpush1.bf16.msra.mxu0 0
    %772 = vmatprep.subr.bf16.mxu0 %v754
    %773 = vmatpush1.bf16.msra.mxu0 %v753
    %774 = vmatprep.subr.bf16.mxu0 %v752
    %775 = vmatpush1.bf16.msra.mxu0 %v751
    %776 = vmatprep.subr.bf16.mxu0 %v750
    %777 = vmatpush1.bf16.msra.mxu0 %v749
    %778 = vmatprep.subr.bf16.mxu0 0
    %779 = vmatpush2.bf16.msra.mxu0 0
    %780 = vmatprep.subr.bf16.mxu0 0
    %781 = vmatpush2.bf16.msra.mxu0 0
    %782 = vmatprep.subr.bf16.mxu0 0
    %783 = vmatpush2.bf16.msra.mxu0 0
    %784 = vmatprep.subr.bf16.mxu0 0
    %785 = vmatpush2.bf16.msra.mxu0 0
    %786 = vmatprep.subr.bf16.mxu0 0
    %787 = vmatpush2.bf16.msra.mxu0 0
    %788 = vmatprep.subr.bf16.mxu0 0
    %789 = vmatpush2.bf16.msra.mxu0 0
    %790 = vmatprep.subr.bf16.mxu0 0
    %791 = vmatpush2.bf16.msra.mxu0 0
    %792 = vmatprep.subr.bf16.mxu0 0
    %793 = vmatpush2.bf16.msra.mxu0 0
    %794 = vmatprep.mubr.bf16.mxu0 0
    %795 = vmatmul.mubr.bf16.gmra.mxu0 %v757
    %v796 = vpop.f32.mrf.mxu0
    %v797 = vadd.f32 0.0, %v796
    %v798 = vpop.f32.mrf.mxu0
    %v799 = vadd.f32 0.0, %v798
    %v800 = vpop.f32.mrf.mxu0
    %v801 = vadd.f32 0.0, %v800
    %v802 = vpop.f32.mrf.mxu0
    %v803 = vadd.f32 0.0, %v802
    %804 = vmatprep.mubr.bf16.mxu0 0
    %805 = vmatmul.mubr.bf16.gmra.mxu0 %v760
    %v806 = vpop.f32.mrf.mxu0
    %v807 = vadd.f32 0.0, %v806
    %v808 = vpop.f32.mrf.mxu0
    %v809 = vadd.f32 0.0, %v808
    %v810 = vpop.f32.mrf.mxu0
    %v811 = vpop.f32.mrf.mxu0
    %812 = vdwg.mxu0
    %v813 = vadd.s32 %v738, 1
    %v814 = vadd.s32 %v739, 1
    %v815 = vadd.s32 %v740, 1
    %vm816 = vcmp.eq.s32.totalorder %v737, %v813
    %vm817 = vcmp.eq.s32.totalorder %v737, %v814
    %vm818 = vcmp.eq.s32.totalorder %v737, %v815
    %v819 = vsel %vm816, 1.0, 0.0
    %v820 = vsel %vm817, 1.0, 0.0
    %v821 = vsel %vm818, 1.0, 0.0
    %v822 = vpack.c.bf16 %v820, %v819
    %v823 = vpack.c.bf16 %v821, %v821
    %v825 = vsel %vm755, %v822, 0
    %v828 = vsel %vm755, %v823, 0
    %830 = vmatprep.subr.bf16.mxu0 0
    %831 = vmatpush1.bf16.msra.mxu0 0
    %832 = vmatprep.subr.bf16.mxu0 0
    %833 = vmatpush1.bf16.msra.mxu0 0
    %834 = vmatprep.subr.bf16.mxu0 0
    %835 = vmatpush1.bf16.msra.mxu0 0
    %836 = vmatprep.subr.bf16.mxu0 0
    %837 = vmatpush1.bf16.msra.mxu0 0
    %838 = vmatprep.subr.bf16.mxu0 0
    %839 = vmatpush1.bf16.msra.mxu0 0
    %840 = vmatprep.subr.bf16.mxu0 %v754
    %841 = vmatpush1.bf16.msra.mxu0 %v753
    %842 = vmatprep.subr.bf16.mxu0 %v752
    %843 = vmatpush1.bf16.msra.mxu0 %v751
    %844 = vmatprep.subr.bf16.mxu0 %v750
    %845 = vmatpush1.bf16.msra.mxu0 %v749
    %846 = vmatprep.subr.bf16.mxu0 0
    %847 = vmatpush2.bf16.msra.mxu0 0
    %848 = vmatprep.subr.bf16.mxu0 0
    %849 = vmatpush2.bf16.msra.mxu0 0
    %850 = vmatprep.subr.bf16.mxu0 0
    %851 = vmatpush2.bf16.msra.mxu0 0
    %852 = vmatprep.subr.bf16.mxu0 0
    %853 = vmatpush2.bf16.msra.mxu0 0
    %854 = vmatprep.subr.bf16.mxu0 0
    %855 = vmatpush2.bf16.msra.mxu0 0
    %856 = vmatprep.subr.bf16.mxu0 0
    %857 = vmatpush2.bf16.msra.mxu0 0
    %858 = vmatprep.subr.bf16.mxu0 0
    %859 = vmatpush2.bf16.msra.mxu0 0
    %860 = vmatprep.subr.bf16.mxu0 0
    %861 = vmatpush2.bf16.msra.mxu0 0
    %862 = vmatprep.mubr.bf16.mxu0 0
    %863 = vmatmul.mubr.bf16.gmra.mxu0 %v825
    %v864 = vpop.f32.mrf.mxu0
    %v865 = vadd.f32 0.0, %v864
    %v866 = vpop.f32.mrf.mxu0
    %v867 = vadd.f32 0.0, %v866
    %v868 = vpop.f32.mrf.mxu0
    %v869 = vadd.f32 0.0, %v868
    %v870 = vpop.f32.mrf.mxu0
    %v871 = vadd.f32 0.0, %v870
    %872 = vmatprep.mubr.bf16.mxu0 0
    %873 = vmatmul.mubr.bf16.gmra.mxu0 %v828
    %v874 = vpop.f32.mrf.mxu0
    %v875 = vadd.f32 0.0, %v874
    %v876 = vpop.f32.mrf.mxu0
    %v877 = vadd.f32 0.0, %v876
    %v878 = vpop.f32.mrf.mxu0
    %v879 = vpop.f32.mrf.mxu0
    %880 = vdwg.mxu0
    %v881 = vmax.f32 %v797, %v865
    %v882 = vmax.f32 %v799, %v867
    %v883 = vmax.f32 %v801, %v869
    %v884 = vmax.f32 %v803, %v871
    %v885 = vmax.f32 %v807, %v875
    %v886 = vmax.f32 %v809, %v877
    %v887 = vadd.s32 %v733, 24
    %v888 = vadd.s32 %v733, 32
    %v889 = vadd.s32 %v733, 40
    %v890 = vadd.s32 %v733, 48
    %v891 = vadd.s32 %v733, 56
    %v892 = vadd.s32 %v733, 64
    %v893 = vadd.s32 %v733, 72
    %v894 = vadd.s32 %v733, 80
    %v895 = vadd.s32 %v733, 88
    %v896 = vadd.s32 %v733, 96
    %v897 = vadd.s32 %v733, 104
    %v898 = vadd.s32 %v733, 112
    %v899 = vadd.s32 %v733, 120
    %v900 = vadd.s32 %v733, 128
    %v901 = vadd.s32 %v733, 136
    %v902 = vmul.u32 %v737, 2
    %vm903 = vcmp.eq.s32.totalorder %v733, %v902
    %vm904 = vcmp.eq.s32.totalorder %v734, %v902
    %vm905 = vcmp.eq.s32.totalorder %v735, %v902
    %vm906 = vcmp.eq.s32.totalorder %v887, %v902
    %vm907 = vcmp.eq.s32.totalorder %v888, %v902
    %vm908 = vcmp.eq.s32.totalorder %v889, %v902
    %vm909 = vcmp.eq.s32.totalorder %v890, %v902
    %vm910 = vcmp.eq.s32.totalorder %v891, %v902
    %vm911 = vcmp.eq.s32.totalorder %v892, %v902
    %vm912 = vcmp.eq.s32.totalorder %v893, %v902
    %vm913 = vcmp.eq.s32.totalorder %v894, %v902
    %vm914 = vcmp.eq.s32.totalorder %v895, %v902
    %vm915 = vcmp.eq.s32.totalorder %v896, %v902
    %vm916 = vcmp.eq.s32.totalorder %v897, %v902
    %vm917 = vcmp.eq.s32.totalorder %v898, %v902
    %vm918 = vcmp.eq.s32.totalorder %v899, %v902
    %vm919 = vcmp.eq.s32.totalorder %v900, %v902
    %vm920 = vcmp.eq.s32.totalorder %v901, %v902
    %v921 = vsel %vm903, 1.0, 0.0
    %v922 = vsel %vm904, 1.0, 0.0
    %v923 = vsel %vm905, 1.0, 0.0
    %v924 = vsel %vm906, 1.0, 0.0
    %v925 = vsel %vm907, 1.0, 0.0
    %v926 = vsel %vm908, 1.0, 0.0
    %v927 = vsel %vm909, 1.0, 0.0
    %v928 = vsel %vm910, 1.0, 0.0
    %v929 = vsel %vm911, 1.0, 0.0
    %v930 = vsel %vm912, 1.0, 0.0
    %v931 = vsel %vm913, 1.0, 0.0
    %v932 = vsel %vm914, 1.0, 0.0
    %v933 = vsel %vm915, 1.0, 0.0
    %v934 = vsel %vm916, 1.0, 0.0
    %v935 = vsel %vm917, 1.0, 0.0
    %v936 = vsel %vm918, 1.0, 0.0
    %v937 = vsel %vm919, 1.0, 0.0
    %v938 = vsel %vm920, 1.0, 0.0
    %v939 = vpack.c.bf16 %v922, %v921
    %v940 = vpack.c.bf16 %v924, %v923
    %v941 = vpack.c.bf16 %v926, %v925
    %v942 = vpack.c.bf16 %v928, %v927
    %v943 = vpack.c.bf16 %v930, %v929
    %v944 = vpack.c.bf16 %v932, %v931
    %v945 = vpack.c.bf16 %v934, %v933
    %v946 = vpack.c.bf16 %v936, %v935
    %v947 = vpack.c.bf16 %v938, %v937
    %v948 = vpack.c.bf16 %v883, %v881
    %v949 = vpack.c.bf16 %v884, %v882
    %v950 = vpack.c.bf16 %v885, %v885
    %v951 = vpack.c.bf16 %v886, %v886
    %vm952 = vcmask 130048
    %v954 = vsel %vm952, %v949, 0
    %v957 = vsel %vm952, %v951, 0
    %959 = vmatprep.subr.bf16.mxu0 0
    %960 = vmatpush1.bf16.msra.mxu0 %v946
    %961 = vmatprep.subr.bf16.mxu0 0
    %962 = vmatpush1.bf16.msra.mxu0 %v945
    %963 = vmatprep.subr.bf16.mxu0 0
    %964 = vmatpush1.bf16.msra.mxu0 %v944
    %965 = vmatprep.subr.bf16.mxu0 0
    %966 = vmatpush1.bf16.msra.mxu0 %v943
    %967 = vmatprep.subr.bf16.mxu0 0
    %968 = vmatpush1.bf16.msra.mxu0 %v942
    %969 = vmatprep.subr.bf16.mxu0 0
    %970 = vmatpush1.bf16.msra.mxu0 %v941
    %971 = vmatprep.subr.bf16.mxu0 0
    %972 = vmatpush1.bf16.msra.mxu0 %v940
    %973 = vmatprep.subr.bf16.mxu0 0
    %974 = vmatpush1.bf16.msra.mxu0 %v939
    %975 = vmatprep.subr.bf16.mxu0 0
    %976 = vmatpush2.bf16.msra.mxu0 0
    %977 = vmatprep.subr.bf16.mxu0 0
    %978 = vmatpush2.bf16.msra.mxu0 0
    %979 = vmatprep.subr.bf16.mxu0 0
    %980 = vmatpush2.bf16.msra.mxu0 0
    %981 = vmatprep.subr.bf16.mxu0 0
    %982 = vmatpush2.bf16.msra.mxu0 0
    %983 = vmatprep.subr.bf16.mxu0 0
    %984 = vmatpush2.bf16.msra.mxu0 0
    %985 = vmatprep.subr.bf16.mxu0 0
    %986 = vmatpush2.bf16.msra.mxu0 0
    %987 = vmatprep.subr.bf16.mxu0 0
    %988 = vmatpush2.bf16.msra.mxu0 0
    %989 = vmatprep.subr.bf16.mxu0 0
    %990 = vmatpush2.bf16.msra.mxu0 %v947
    %991 = vmatprep.mubr.bf16.mxu0 %v954
    %992 = vmatmul.mubr.bf16.gmra.mxu0 %v948
    %v993 = vpop.f32.mrf.mxu0
    %v994 = vadd.f32 0.0, %v993
    %v995 = vpop.f32.mrf.mxu0
    %v996 = vpop.f32.mrf.mxu0
    %v997 = vadd.f32 0.0, %v996
    %v998 = vpop.f32.mrf.mxu0
    %999 = vmatprep.mubr.bf16.mxu0 %v957
    %1000 = vmatmul.mubr.bf16.gmra.mxu0 %v950
    %v1001 = vpop.f32.mrf.mxu0
    %v1002 = vadd.f32 0.0, %v1001
    %v1003 = vpop.f32.mrf.mxu0
    %v1004 = vpop.f32.mrf.mxu0
    %v1005 = vpop.f32.mrf.mxu0
    %1006 = vdwg.mxu0
    %v1007 = vadd.s32 %v902, 1
    %vm1008 = vcmp.eq.s32.totalorder %v733, %v1007
    %vm1009 = vcmp.eq.s32.totalorder %v734, %v1007
    %vm1010 = vcmp.eq.s32.totalorder %v735, %v1007
    %vm1011 = vcmp.eq.s32.totalorder %v887, %v1007
    %vm1012 = vcmp.eq.s32.totalorder %v888, %v1007
    %vm1013 = vcmp.eq.s32.totalorder %v889, %v1007
    %vm1014 = vcmp.eq.s32.totalorder %v890, %v1007
    %vm1015 = vcmp.eq.s32.totalorder %v891, %v1007
    %vm1016 = vcmp.eq.s32.totalorder %v892, %v1007
    %vm1017 = vcmp.eq.s32.totalorder %v893, %v1007
    %vm1018 = vcmp.eq.s32.totalorder %v894, %v1007
    %vm1019 = vcmp.eq.s32.totalorder %v895, %v1007
    %vm1020 = vcmp.eq.s32.totalorder %v896, %v1007
    %vm1021 = vcmp.eq.s32.totalorder %v897, %v1007
    %vm1022 = vcmp.eq.s32.totalorder %v898, %v1007
    %vm1023 = vcmp.eq.s32.totalorder %v899, %v1007
    %vm1024 = vcmp.eq.s32.totalorder %v900, %v1007
    %vm1025 = vcmp.eq.s32.totalorder %v901, %v1007
    %v1026 = vsel %vm1008, 1.0, 0.0
    %v1027 = vsel %vm1009, 1.0, 0.0
    %v1028 = vsel %vm1010, 1.0, 0.0
    %v1029 = vsel %vm1011, 1.0, 0.0
    %v1030 = vsel %vm1012, 1.0, 0.0
    %v1031 = vsel %vm1013, 1.0, 0.0
    %v1032 = vsel %vm1014, 1.0, 0.0
    %v1033 = vsel %vm1015, 1.0, 0.0
    %v1034 = vsel %vm1016, 1.0, 0.0
    %v1035 = vsel %vm1017, 1.0, 0.0
    %v1036 = vsel %vm1018, 1.0, 0.0
    %v1037 = vsel %vm1019, 1.0, 0.0
    %v1038 = vsel %vm1020, 1.0, 0.0
    %v1039 = vsel %vm1021, 1.0, 0.0
    %v1040 = vsel %vm1022, 1.0, 0.0
    %v1041 = vsel %vm1023, 1.0, 0.0
    %v1042 = vsel %vm1024, 1.0, 0.0
    %v1043 = vsel %vm1025, 1.0, 0.0
    %v1044 = vpack.c.bf16 %v1027, %v1026
    %v1045 = vpack.c.bf16 %v1029, %v1028
    %v1046 = vpack.c.bf16 %v1031, %v1030
    %v1047 = vpack.c.bf16 %v1033, %v1032
    %v1048 = vpack.c.bf16 %v1035, %v1034
    %v1049 = vpack.c.bf16 %v1037, %v1036
    %v1050 = vpack.c.bf16 %v1039, %v1038
    %v1051 = vpack.c.bf16 %v1041, %v1040
    %v1052 = vpack.c.bf16 %v1043, %v1042
    %1053 = vmatprep.subr.bf16.mxu0 0
    %1054 = vmatpush1.bf16.msra.mxu0 %v1051
    %1055 = vmatprep.subr.bf16.mxu0 0
    %1056 = vmatpush1.bf16.msra.mxu0 %v1050
    %1057 = vmatprep.subr.bf16.mxu0 0
    %1058 = vmatpush1.bf16.msra.mxu0 %v1049
    %1059 = vmatprep.subr.bf16.mxu0 0
    %1060 = vmatpush1.bf16.msra.mxu0 %v1048
    %1061 = vmatprep.subr.bf16.mxu0 0
    %1062 = vmatpush1.bf16.msra.mxu0 %v1047
    %1063 = vmatprep.subr.bf16.mxu0 0
    %1064 = vmatpush1.bf16.msra.mxu0 %v1046
    %1065 = vmatprep.subr.bf16.mxu0 0
    %1066 = vmatpush1.bf16.msra.mxu0 %v1045
    %1067 = vmatprep.subr.bf16.mxu0 0
    %1068 = vmatpush1.bf16.msra.mxu0 %v1044
    %1069 = vmatprep.subr.bf16.mxu0 0
    %1070 = vmatpush2.bf16.msra.mxu0 0
    %1071 = vmatprep.subr.bf16.mxu0 0
    %1072 = vmatpush2.bf16.msra.mxu0 0
    %1073 = vmatprep.subr.bf16.mxu0 0
    %1074 = vmatpush2.bf16.msra.mxu0 0
    %1075 = vmatprep.subr.bf16.mxu0 0
    %1076 = vmatpush2.bf16.msra.mxu0 0
    %1077 = vmatprep.subr.bf16.mxu0 0
    %1078 = vmatpush2.bf16.msra.mxu0 0
    %1079 = vmatprep.subr.bf16.mxu0 0
    %1080 = vmatpush2.bf16.msra.mxu0 0
    %1081 = vmatprep.subr.bf16.mxu0 0
    %1082 = vmatpush2.bf16.msra.mxu0 0
    %1083 = vmatprep.subr.bf16.mxu0 0
    %1084 = vmatpush2.bf16.msra.mxu0 %v1052
    %1085 = vmatprep.mubr.bf16.mxu0 %v954
    %1086 = vmatmul.mubr.bf16.gmra.mxu0 %v948
    %v1087 = vpop.f32.mrf.mxu0
    %v1088 = vadd.f32 0.0, %v1087
    %v1089 = vpop.f32.mrf.mxu0
    %v1090 = vpop.f32.mrf.mxu0
    %v1091 = vadd.f32 0.0, %v1090
    %v1092 = vpop.f32.mrf.mxu0
    %1093 = vmatprep.mubr.bf16.mxu0 %v957
    %1094 = vmatmul.mubr.bf16.gmra.mxu0 %v950
    %v1095 = vpop.f32.mrf.mxu0
    %v1096 = vadd.f32 0.0, %v1095
    %v1097 = vpop.f32.mrf.mxu0
    %v1098 = vpop.f32.mrf.mxu0
    %v1099 = vpop.f32.mrf.mxu0
    %1100 = vdwg.mxu0
    %v1101 = vmax.f32 %v994, %v1088
    %v1102 = vmax.f32 %v997, %v1091
    %v1103 = vmax.f32 %v1002, %v1096
    %v1106 = vrot.slane %v1102, 4
    %v1107 = vrot.slane %v1103, 4
    %v1108 = vsel %vm559, %v1106, %v1107
    %v1110 = vld [vmem:[%s3] sm:$0xf]
    %v1111 = vld [vmem:[%s3 + $0x4] sm:$0x3]
    %v1112 = vpack.c.bf16 %v1108, %v1101
    %v1114 = vrot.slane %v1101, 1
    %v1115 = vrot.slane %v1102, 1
    %v1116 = vsel %vm59, %v1114, %v1115
    %vm1118 = vcmask 1042432
    %v1119 = vrot.slane %v1102, 5
    %v1120 = vrot.slane %v1103, 5
    %v1121 = vsel %vm1118, %v1119, %v1120
    %s1123 = scalar_lea.vmem %s3, 8
    %v1124 = vld [vmem:[%s1123] sm:$0xf]
    %v1125 = vld [vmem:[%s1123 + $0x4] sm:$0x3]
    %v1126 = vpack.c.bf16 %v1121, %v1116
    %v1129 = vunpack.c.l.b16 %v1124
    %v1130 = vunpack.c.l.b16 %v1125
    %v1131 = vpack.c.b16 %v1130, %v1129
    %vm1132 = vcmask 97280
    %v1134 = vsel %vm1132, %v1126, 0
    %v1137 = vsel %vm120, %v1131, 0
    %1139 = vmatprep.subr.bf16.mxu0 0
    %1140 = vmatpush1.bf16.msra.mxu0 0
    %1141 = vmatprep.subr.bf16.mxu0 0
    %1142 = vmatpush1.bf16.msra.mxu0 0
    %1143 = vmatprep.subr.bf16.mxu0 0
    %1144 = vmatpush1.bf16.msra.mxu0 0
    %1145 = vmatprep.subr.bf16.mxu0 0
    %1146 = vmatpush1.bf16.msra.mxu0 0
    %1147 = vmatprep.subr.bf16.mxu0 0
    %1148 = vmatpush1.bf16.msra.mxu0 0
    %1149 = vmatprep.subr.bf16.mxu0 0
    %1150 = vmatpush1.bf16.msra.mxu0 0
    %1151 = vmatprep.subr.bf16.mxu0 0
    %1152 = vmatpush1.bf16.msra.mxu0 0
    %1153 = vmatprep.subr.bf16.mxu0 0
    %1154 = vmatpush1.bf16.msra.mxu0 %v1137
    %1155 = vmatprep.subr.bf16.mxu0 0
    %1156 = vmatpush2.bf16.msra.mxu0 0
    %1157 = vmatprep.subr.bf16.mxu0 0
    %1158 = vmatpush2.bf16.msra.mxu0 0
    %1159 = vmatprep.subr.bf16.mxu0 0
    %1160 = vmatpush2.bf16.msra.mxu0 0
    %1161 = vmatprep.subr.bf16.mxu0 0
    %1162 = vmatpush2.bf16.msra.mxu0 0
    %1163 = vmatprep.subr.bf16.mxu0 0
    %1164 = vmatpush2.bf16.msra.mxu0 0
    %1165 = vmatprep.subr.bf16.mxu0 0
    %1166 = vmatpush2.bf16.msra.mxu0 0
    %1167 = vmatprep.subr.bf16.mxu0 0
    %1168 = vmatpush2.bf16.msra.mxu0 0
    %1169 = vmatprep.subr.bf16.mxu0 0
    %1170 = vmatpush2.bf16.msra.mxu0 0
    %1171 = vmatprep.mubr.bf16.mxu0 0
    %1172 = vmatmul.mubr.bf16.gmra.mxu0 %v1134
    %v1173 = vpop.f32.mrf.mxu0
    %v1174 = vadd.f32 0.0, %v1173
    %v1175 = vpop.f32.mrf.mxu0
    %v1176 = vpop.f32.mrf.mxu0
    %v1177 = vadd.f32 0.0, %v1176
    %v1178 = vpop.f32.mrf.mxu0
    %1179 = vdwg.mxu0
    %v1182 = vunpack.c.l.b16 %v1110
    %v1183 = vunpack.c.l.b16 %v1111
    %v1184 = vpack.c.b16 %v1183, %v1182
    %v1186 = vsel %vm1132, %v1112, 0
    %v1189 = vsel %vm120, %v1184, 0
    %1191 = vmatprep.subr.bf16.mxu0 0
    %1192 = vmatpush1.bf16.msra.mxu0 0
    %1193 = vmatprep.subr.bf16.mxu0 0
    %1194 = vmatpush1.bf16.msra.mxu0 0
    %1195 = vmatprep.subr.bf16.mxu0 0
    %1196 = vmatpush1.bf16.msra.mxu0 0
    %1197 = vmatprep.subr.bf16.mxu0 0
    %1198 = vmatpush1.bf16.msra.mxu0 0
    %1199 = vmatprep.subr.bf16.mxu0 0
    %1200 = vmatpush1.bf16.msra.mxu0 0
    %1201 = vmatprep.subr.bf16.mxu0 0
    %1202 = vmatpush1.bf16.msra.mxu0 0
    %1203 = vmatprep.subr.bf16.mxu0 0
    %1204 = vmatpush1.bf16.msra.mxu0 0
    %1205 = vmatprep.subr.bf16.mxu0 0
    %1206 = vmatpush1.bf16.msra.mxu0 %v1189
    %1207 = vmatprep.subr.bf16.mxu0 0
    %1208 = vmatpush2.bf16.msra.mxu0 0
    %1209 = vmatprep.subr.bf16.mxu0 0
    %1210 = vmatpush2.bf16.msra.mxu0 0
    %1211 = vmatprep.subr.bf16.mxu0 0
    %1212 = vmatpush2.bf16.msra.mxu0 0
    %1213 = vmatprep.subr.bf16.mxu0 0
    %1214 = vmatpush2.bf16.msra.mxu0 0
    %1215 = vmatprep.subr.bf16.mxu0 0
    %1216 = vmatpush2.bf16.msra.mxu0 0
    %1217 = vmatprep.subr.bf16.mxu0 0
    %1218 = vmatpush2.bf16.msra.mxu0 0
    %1219 = vmatprep.subr.bf16.mxu0 0
    %1220 = vmatpush2.bf16.msra.mxu0 0
    %1221 = vmatprep.subr.bf16.mxu0 0
    %1222 = vmatpush2.bf16.msra.mxu0 0
    %1223 = vmatprep.mubr.bf16.mxu0 0
    %1224 = vmatmul.mubr.bf16.gmra.mxu0 %v1186
    %v1225 = vpop.f32.mrf.mxu0
    %v1226 = vadd.f32 %v1174, %v1225
    %v1227 = vpop.f32.mrf.mxu0
    %v1228 = vpop.f32.mrf.mxu0
    %v1229 = vadd.f32 %v1177, %v1228
    %v1230 = vpop.f32.mrf.mxu0
    %1231 = vdwg.mxu0
    %v1232 = vrot.slane %v1101, 2
    %v1233 = vrot.slane %v1102, 2
    %v1234 = vsel %vm120, %v1232, %v1233
    %vm1236 = vcmask 1041408
    %v1237 = vrot.slane %v1102, 6
    %v1238 = vrot.slane %v1103, 6
    %v1239 = vsel %vm1236, %v1237, %v1238
    %s1241 = scalar_lea.vmem %s3, 16
    %v1242 = vld [vmem:[%s1241] sm:$0xf]
    %v1243 = vld [vmem:[%s1241 + $0x4] sm:$0x3]
    %v1244 = vpack.c.bf16 %v1239, %v1234
    %v1247 = vunpack.c.l.b16 %v1242
    %v1248 = vunpack.c.l.b16 %v1243
    %v1249 = vpack.c.b16 %v1248, %v1247
    %v1251 = vsel %vm1132, %v1244, 0
    %v1254 = vsel %vm120, %v1249, 0
    %1256 = vmatprep.subr.bf16.mxu0 0
    %1257 = vmatpush1.bf16.msra.mxu0 0
    %1258 = vmatprep.subr.bf16.mxu0 0
    %1259 = vmatpush1.bf16.msra.mxu0 0
    %1260 = vmatprep.subr.bf16.mxu0 0
    %1261 = vmatpush1.bf16.msra.mxu0 0
    %1262 = vmatprep.subr.bf16.mxu0 0
    %1263 = vmatpush1.bf16.msra.mxu0 0
    %1264 = vmatprep.subr.bf16.mxu0 0
    %1265 = vmatpush1.bf16.msra.mxu0 0
    %1266 = vmatprep.subr.bf16.mxu0 0
    %1267 = vmatpush1.bf16.msra.mxu0 0
    %1268 = vmatprep.subr.bf16.mxu0 0
    %1269 = vmatpush1.bf16.msra.mxu0 0
    %1270 = vmatprep.subr.bf16.mxu0 0
    %1271 = vmatpush1.bf16.msra.mxu0 %v1254
    %1272 = vmatprep.subr.bf16.mxu0 0
    %1273 = vmatpush2.bf16.msra.mxu0 0
    %1274 = vmatprep.subr.bf16.mxu0 0
    %1275 = vmatpush2.bf16.msra.mxu0 0
    %1276 = vmatprep.subr.bf16.mxu0 0
    %1277 = vmatpush2.bf16.msra.mxu0 0
    %1278 = vmatprep.subr.bf16.mxu0 0
    %1279 = vmatpush2.bf16.msra.mxu0 0
    %1280 = vmatprep.subr.bf16.mxu0 0
    %1281 = vmatpush2.bf16.msra.mxu0 0
    %1282 = vmatprep.subr.bf16.mxu0 0
    %1283 = vmatpush2.bf16.msra.mxu0 0
    %1284 = vmatprep.subr.bf16.mxu0 0
    %1285 = vmatpush2.bf16.msra.mxu0 0
    %1286 = vmatprep.subr.bf16.mxu0 0
    %1287 = vmatpush2.bf16.msra.mxu0 0
    %1288 = vmatprep.mubr.bf16.mxu0 0
    %1289 = vmatmul.mubr.bf16.gmra.mxu0 %v1251
    %v1290 = vpop.f32.mrf.mxu0
    %v1291 = vadd.f32 0.0, %v1290
    %v1292 = vpop.f32.mrf.mxu0
    %v1293 = vpop.f32.mrf.mxu0
    %v1294 = vadd.f32 0.0, %v1293
    %v1295 = vpop.f32.mrf.mxu0
    %1296 = vdwg.mxu0
    %v1297 = vadd.f32 %v1226, %v1291
    %v1298 = vadd.f32 %v1229, %v1294
    %v1299 = vrot.slane %v1101, 3
    %v1300 = vrot.slane %v1102, 3
    %v1301 = vsel %vm422, %v1299, %v1300
    %vm1303 = vcmask 1040384
    %v1304 = vrot.slane %v1102, 7
    %v1305 = vrot.slane %v1103, 7
    %v1306 = vsel %vm1303, %v1304, %v1305
    %s1308 = scalar_lea.vmem %s3, 24
    %v1309 = vld [vmem:[%s1308] sm:$0xf]
    %v1310 = vld [vmem:[%s1308 + $0x4] sm:$0x3]
    %v1311 = vpack.c.bf16 %v1306, %v1301
    %v1314 = vunpack.c.l.b16 %v1309
    %v1315 = vunpack.c.l.b16 %v1310
    %v1316 = vpack.c.b16 %v1315, %v1314
    %v1318 = vsel %vm1132, %v1311, 0
    %v1321 = vsel %vm120, %v1316, 0
    %1323 = vmatprep.subr.bf16.mxu0 0
    %1324 = vmatpush1.bf16.msra.mxu0 0
    %1325 = vmatprep.subr.bf16.mxu0 0
    %1326 = vmatpush1.bf16.msra.mxu0 0
    %1327 = vmatprep.subr.bf16.mxu0 0
    %1328 = vmatpush1.bf16.msra.mxu0 0
    %1329 = vmatprep.subr.bf16.mxu0 0
    %1330 = vmatpush1.bf16.msra.mxu0 0
    %1331 = vmatprep.subr.bf16.mxu0 0
    %1332 = vmatpush1.bf16.msra.mxu0 0
    %1333 = vmatprep.subr.bf16.mxu0 0
    %1334 = vmatpush1.bf16.msra.mxu0 0
    %1335 = vmatprep.subr.bf16.mxu0 0
    %1336 = vmatpush1.bf16.msra.mxu0 0
    %1337 = vmatprep.subr.bf16.mxu0 0
    %1338 = vmatpush1.bf16.msra.mxu0 %v1321
    %1339 = vmatprep.subr.bf16.mxu0 0
    %1340 = vmatpush2.bf16.msra.mxu0 0
    %1341 = vmatprep.subr.bf16.mxu0 0
    %1342 = vmatpush2.bf16.msra.mxu0 0
    %1343 = vmatprep.subr.bf16.mxu0 0
    %1344 = vmatpush2.bf16.msra.mxu0 0
    %1345 = vmatprep.subr.bf16.mxu0 0
    %1346 = vmatpush2.bf16.msra.mxu0 0
    %1347 = vmatprep.subr.bf16.mxu0 0
    %1348 = vmatpush2.bf16.msra.mxu0 0
    %1349 = vmatprep.subr.bf16.mxu0 0
    %1350 = vmatpush2.bf16.msra.mxu0 0
    %1351 = vmatprep.subr.bf16.mxu0 0
    %1352 = vmatpush2.bf16.msra.mxu0 0
    %1353 = vmatprep.subr.bf16.mxu0 0
    %1354 = vmatpush2.bf16.msra.mxu0 0
    %1355 = vmatprep.mubr.bf16.mxu0 0
    %1356 = vmatmul.mubr.bf16.gmra.mxu0 %v1318
    %v1357 = vpop.f32.mrf.mxu0
    %v1358 = vadd.f32 0.0, %v1357
    %v1359 = vpop.f32.mrf.mxu0
    %v1360 = vpop.f32.mrf.mxu0
    %v1361 = vadd.f32 0.0, %v1360
    %v1362 = vpop.f32.mrf.mxu0
    %1363 = vdwg.mxu0
    %v1364 = vadd.f32 %v1297, %v1358
    %v1365 = vadd.f32 %v1298, %v1361
    %v1366 = vrot.slane %v1101, 4
    %v1367 = vsel %vm559, %v1366, %v1106
    %s1369 = scalar_lea.vmem %s3, 32
    %v1370 = vld [vmem:[%s1369] sm:$0xf]
    %v1371 = vld [vmem:[%s1369 + $0x4] sm:$0x3]
    %v1372 = vpack.c.bf16 %v1103, %v1367
    %v1375 = vunpack.c.l.b16 %v1370
    %v1376 = vunpack.c.l.b16 %v1371
    %v1377 = vpack.c.b16 %v1376, %v1375
    %v1379 = vsel %vm1132, %v1372, 0
    %v1382 = vsel %vm120, %v1377, 0
    %1384 = vmatprep.subr.bf16.mxu0 0
    %1385 = vmatpush1.bf16.msra.mxu0 0
    %1386 = vmatprep.subr.bf16.mxu0 0
    %1387 = vmatpush1.bf16.msra.mxu0 0
    %1388 = vmatprep.subr.bf16.mxu0 0
    %1389 = vmatpush1.bf16.msra.mxu0 0
    %1390 = vmatprep.subr.bf16.mxu0 0
    %1391 = vmatpush1.bf16.msra.mxu0 0
    %1392 = vmatprep.subr.bf16.mxu0 0
    %1393 = vmatpush1.bf16.msra.mxu0 0
    %1394 = vmatprep.subr.bf16.mxu0 0
    %1395 = vmatpush1.bf16.msra.mxu0 0
    %1396 = vmatprep.subr.bf16.mxu0 0
    %1397 = vmatpush1.bf16.msra.mxu0 0
    %1398 = vmatprep.subr.bf16.mxu0 0
    %1399 = vmatpush1.bf16.msra.mxu0 %v1382
    %1400 = vmatprep.subr.bf16.mxu0 0
    %1401 = vmatpush2.bf16.msra.mxu0 0
    %1402 = vmatprep.subr.bf16.mxu0 0
    %1403 = vmatpush2.bf16.msra.mxu0 0
    %1404 = vmatprep.subr.bf16.mxu0 0
    %1405 = vmatpush2.bf16.msra.mxu0 0
    %1406 = vmatprep.subr.bf16.mxu0 0
    %1407 = vmatpush2.bf16.msra.mxu0 0
    %1408 = vmatprep.subr.bf16.mxu0 0
    %1409 = vmatpush2.bf16.msra.mxu0 0
    %1410 = vmatprep.subr.bf16.mxu0 0
    %1411 = vmatpush2.bf16.msra.mxu0 0
    %1412 = vmatprep.subr.bf16.mxu0 0
    %1413 = vmatpush2.bf16.msra.mxu0 0
    %1414 = vmatprep.subr.bf16.mxu0 0
    %1415 = vmatpush2.bf16.msra.mxu0 0
    %1416 = vmatprep.mubr.bf16.mxu0 0
    %1417 = vmatmul.mubr.bf16.gmra.mxu0 %v1379
    %v1418 = vpop.f32.mrf.mxu0
    %v1419 = vadd.f32 0.0, %v1418
    %v1420 = vpop.f32.mrf.mxu0
    %v1421 = vpop.f32.mrf.mxu0
    %v1422 = vadd.f32 0.0, %v1421
    %v1423 = vpop.f32.mrf.mxu0
    %1424 = vdwg.mxu0
    %v1425 = vadd.f32 %v1364, %v1419
    %v1426 = vadd.f32 %v1365, %v1422
    %s1427 = scalar_lea.vmem %s3, 40
    %v1428 = vld [vmem:[%s1427] sm:$0xf]
    %v1429 = vld [vmem:[%s1427 + $0x4] sm:$0x3]
    %1431 = vrot.lane.b32.xlu0 %v1112, 116
    %v1432 = vpop.permute.xlu0 %1431
    %v1435 = vunpack.c.l.b16 %v1428
    %v1436 = vunpack.c.l.b16 %v1429
    %v1437 = vpack.c.b16 %v1436, %v1435
    %v1439 = vsel %vm1132, %v1432, 0
    %v1442 = vsel %vm120, %v1437, 0
    %1444 = vmatprep.subr.bf16.mxu0 0
    %1445 = vmatpush1.bf16.msra.mxu0 0
    %1446 = vmatprep.subr.bf16.mxu0 0
    %1447 = vmatpush1.bf16.msra.mxu0 0
    %1448 = vmatprep.subr.bf16.mxu0 0
    %1449 = vmatpush1.bf16.msra.mxu0 0
    %1450 = vmatprep.subr.bf16.mxu0 0
    %1451 = vmatpush1.bf16.msra.mxu0 0
    %1452 = vmatprep.subr.bf16.mxu0 0
    %1453 = vmatpush1.bf16.msra.mxu0 0
    %1454 = vmatprep.subr.bf16.mxu0 0
    %1455 = vmatpush1.bf16.msra.mxu0 0
    %1456 = vmatprep.subr.bf16.mxu0 0
    %1457 = vmatpush1.bf16.msra.mxu0 0
    %1458 = vmatprep.subr.bf16.mxu0 0
    %1459 = vmatpush1.bf16.msra.mxu0 %v1442
    %1460 = vmatprep.subr.bf16.mxu0 0
    %1461 = vmatpush2.bf16.msra.mxu0 0
    %1462 = vmatprep.subr.bf16.mxu0 0
    %1463 = vmatpush2.bf16.msra.mxu0 0
    %1464 = vmatprep.subr.bf16.mxu0 0
    %1465 = vmatpush2.bf16.msra.mxu0 0
    %1466 = vmatprep.subr.bf16.mxu0 0
    %1467 = vmatpush2.bf16.msra.mxu0 0
    %1468 = vmatprep.subr.bf16.mxu0 0
    %1469 = vmatpush2.bf16.msra.mxu0 0
    %1470 = vmatprep.subr.bf16.mxu0 0
    %1471 = vmatpush2.bf16.msra.mxu0 0
    %1472 = vmatprep.subr.bf16.mxu0 0
    %1473 = vmatpush2.bf16.msra.mxu0 0
    %1474 = vmatprep.subr.bf16.mxu0 0
    %1475 = vmatpush2.bf16.msra.mxu0 0
    %1476 = vmatprep.mubr.bf16.mxu0 0
    %1477 = vmatmul.mubr.bf16.gmra.mxu0 %v1439
    %v1478 = vpop.f32.mrf.mxu0
    %v1479 = vadd.f32 0.0, %v1478
    %v1480 = vpop.f32.mrf.mxu0
    %v1481 = vpop.f32.mrf.mxu0
    %v1482 = vadd.f32 0.0, %v1481
    %v1483 = vpop.f32.mrf.mxu0
    %1484 = vdwg.mxu0
    %v1485 = vadd.f32 %v1425, %v1479
    %v1486 = vadd.f32 %v1426, %v1482
    %s1487 = scalar_lea.vmem %s3, 48
    %v1488 = vld [vmem:[%s1487] sm:$0xf]
    %v1489 = vld [vmem:[%s1487 + $0x4] sm:$0x3]
    %1491 = vrot.lane.b32.xlu0 %v1126, 116
    %v1492 = vpop.permute.xlu0 %1491
    %v1495 = vunpack.c.l.b16 %v1488
    %v1496 = vunpack.c.l.b16 %v1489
    %v1497 = vpack.c.b16 %v1496, %v1495
    %v1499 = vsel %vm1132, %v1492, 0
    %v1502 = vsel %vm120, %v1497, 0
    %1504 = vmatprep.subr.bf16.mxu0 0
    %1505 = vmatpush1.bf16.msra.mxu0 0
    %1506 = vmatprep.subr.bf16.mxu0 0
    %1507 = vmatpush1.bf16.msra.mxu0 0
    %1508 = vmatprep.subr.bf16.mxu0 0
    %1509 = vmatpush1.bf16.msra.mxu0 0
    %1510 = vmatprep.subr.bf16.mxu0 0
    %1511 = vmatpush1.bf16.msra.mxu0 0
    %1512 = vmatprep.subr.bf16.mxu0 0
    %1513 = vmatpush1.bf16.msra.mxu0 0
    %1514 = vmatprep.subr.bf16.mxu0 0
    %1515 = vmatpush1.bf16.msra.mxu0 0
    %1516 = vmatprep.subr.bf16.mxu0 0
    %1517 = vmatpush1.bf16.msra.mxu0 0
    %1518 = vmatprep.subr.bf16.mxu0 0
    %1519 = vmatpush1.bf16.msra.mxu0 %v1502
    %1520 = vmatprep.subr.bf16.mxu0 0
    %1521 = vmatpush2.bf16.msra.mxu0 0
    %1522 = vmatprep.subr.bf16.mxu0 0
    %1523 = vmatpush2.bf16.msra.mxu0 0
    %1524 = vmatprep.subr.bf16.mxu0 0
    %1525 = vmatpush2.bf16.msra.mxu0 0
    %1526 = vmatprep.subr.bf16.mxu0 0
    %1527 = vmatpush2.bf16.msra.mxu0 0
    %1528 = vmatprep.subr.bf16.mxu0 0
    %1529 = vmatpush2.bf16.msra.mxu0 0
    %1530 = vmatprep.subr.bf16.mxu0 0
    %1531 = vmatpush2.bf16.msra.mxu0 0
    %1532 = vmatprep.subr.bf16.mxu0 0
    %1533 = vmatpush2.bf16.msra.mxu0 0
    %1534 = vmatprep.subr.bf16.mxu0 0
    %1535 = vmatpush2.bf16.msra.mxu0 0
    %1536 = vmatprep.mubr.bf16.mxu0 0
    %1537 = vmatmul.mubr.bf16.gmra.mxu0 %v1499
    %v1538 = vpop.f32.mrf.mxu0
    %v1539 = vadd.f32 0.0, %v1538
    %v1540 = vpop.f32.mrf.mxu0
    %v1541 = vpop.f32.mrf.mxu0
    %v1542 = vadd.f32 0.0, %v1541
    %v1543 = vpop.f32.mrf.mxu0
    %1544 = vdwg.mxu0
    %v1545 = vadd.f32 %v1485, %v1539
    %v1546 = vadd.f32 %v1486, %v1542
    %s1547 = scalar_lea.vmem %s3, 56
    %v1548 = vld [vmem:[%s1547] sm:$0xf]
    %v1549 = vld [vmem:[%s1547 + $0x4] sm:$0x3]
    %1551 = vrot.lane.b32.xlu0 %v1244, 116
    %v1552 = vpop.permute.xlu0 %1551
    %v1555 = vunpack.c.l.b16 %v1548
    %v1556 = vunpack.c.l.b16 %v1549
    %v1557 = vpack.c.b16 %v1556, %v1555
    %v1559 = vsel %vm1132, %v1552, 0
    %v1562 = vsel %vm120, %v1557, 0
    %1564 = vmatprep.subr.bf16.mxu0 0
    %1565 = vmatpush1.bf16.msra.mxu0 0
    %1566 = vmatprep.subr.bf16.mxu0 0
    %1567 = vmatpush1.bf16.msra.mxu0 0
    %1568 = vmatprep.subr.bf16.mxu0 0
    %1569 = vmatpush1.bf16.msra.mxu0 0
    %1570 = vmatprep.subr.bf16.mxu0 0
    %1571 = vmatpush1.bf16.msra.mxu0 0
    %1572 = vmatprep.subr.bf16.mxu0 0
    %1573 = vmatpush1.bf16.msra.mxu0 0
    %1574 = vmatprep.subr.bf16.mxu0 0
    %1575 = vmatpush1.bf16.msra.mxu0 0
    %1576 = vmatprep.subr.bf16.mxu0 0
    %1577 = vmatpush1.bf16.msra.mxu0 0
    %1578 = vmatprep.subr.bf16.mxu0 0
    %1579 = vmatpush1.bf16.msra.mxu0 %v1562
    %1580 = vmatprep.subr.bf16.mxu0 0
    %1581 = vmatpush2.bf16.msra.mxu0 0
    %1582 = vmatprep.subr.bf16.mxu0 0
    %1583 = vmatpush2.bf16.msra.mxu0 0
    %1584 = vmatprep.subr.bf16.mxu0 0
    %1585 = vmatpush2.bf16.msra.mxu0 0
    %1586 = vmatprep.subr.bf16.mxu0 0
    %1587 = vmatpush2.bf16.msra.mxu0 0
    %1588 = vmatprep.subr.bf16.mxu0 0
    %1589 = vmatpush2.bf16.msra.mxu0 0
    %1590 = vmatprep.subr.bf16.mxu0 0
    %1591 = vmatpush2.bf16.msra.mxu0 0
    %1592 = vmatprep.subr.bf16.mxu0 0
    %1593 = vmatpush2.bf16.msra.mxu0 0
    %1594 = vmatprep.subr.bf16.mxu0 0
    %1595 = vmatpush2.bf16.msra.mxu0 0
    %1596 = vmatprep.mubr.bf16.mxu0 0
    %1597 = vmatmul.mubr.bf16.gmra.mxu0 %v1559
    %v1598 = vpop.f32.mrf.mxu0
    %v1599 = vadd.f32 0.0, %v1598
    %v1600 = vpop.f32.mrf.mxu0
    %v1601 = vpop.f32.mrf.mxu0
    %v1602 = vadd.f32 0.0, %v1601
    %v1603 = vpop.f32.mrf.mxu0
    %1604 = vdwg.mxu0
    %v1605 = vadd.f32 %v1545, %v1599
    %v1606 = vadd.f32 %v1546, %v1602
    %s1607 = scalar_lea.vmem %s3, 64
    %v1608 = vld [vmem:[%s1607] sm:$0xf]
    %v1609 = vld [vmem:[%s1607 + $0x4] sm:$0x3]
    %1611 = vrot.lane.b32.xlu0 %v1311, 116
    %v1612 = vpop.permute.xlu0 %1611
    %v1615 = vunpack.c.l.b16 %v1608
    %v1616 = vunpack.c.l.b16 %v1609
    %v1617 = vpack.c.b16 %v1616, %v1615
    %v1619 = vsel %vm1132, %v1612, 0
    %v1622 = vsel %vm120, %v1617, 0
    %1624 = vmatprep.subr.bf16.mxu0 0
    %1625 = vmatpush1.bf16.msra.mxu0 0
    %1626 = vmatprep.subr.bf16.mxu0 0
    %1627 = vmatpush1.bf16.msra.mxu0 0
    %1628 = vmatprep.subr.bf16.mxu0 0
    %1629 = vmatpush1.bf16.msra.mxu0 0
    %1630 = vmatprep.subr.bf16.mxu0 0
    %1631 = vmatpush1.bf16.msra.mxu0 0
    %1632 = vmatprep.subr.bf16.mxu0 0
    %1633 = vmatpush1.bf16.msra.mxu0 0
    %1634 = vmatprep.subr.bf16.mxu0 0
    %1635 = vmatpush1.bf16.msra.mxu0 0
    %1636 = vmatprep.subr.bf16.mxu0 0
    %1637 = vmatpush1.bf16.msra.mxu0 0
    %1638 = vmatprep.subr.bf16.mxu0 0
    %1639 = vmatpush1.bf16.msra.mxu0 %v1622
    %1640 = vmatprep.subr.bf16.mxu0 0
    %1641 = vmatpush2.bf16.msra.mxu0 0
    %1642 = vmatprep.subr.bf16.mxu0 0
    %1643 = vmatpush2.bf16.msra.mxu0 0
    %1644 = vmatprep.subr.bf16.mxu0 0
    %1645 = vmatpush2.bf16.msra.mxu0 0
    %1646 = vmatprep.subr.bf16.mxu0 0
    %1647 = vmatpush2.bf16.msra.mxu0 0
    %1648 = vmatprep.subr.bf16.mxu0 0
    %1649 = vmatpush2.bf16.msra.mxu0 0
    %1650 = vmatprep.subr.bf16.mxu0 0
    %1651 = vmatpush2.bf16.msra.mxu0 0
    %1652 = vmatprep.subr.bf16.mxu0 0
    %1653 = vmatpush2.bf16.msra.mxu0 0
    %1654 = vmatprep.subr.bf16.mxu0 0
    %1655 = vmatpush2.bf16.msra.mxu0 0
    %1656 = vmatprep.mubr.bf16.mxu0 0
    %1657 = vmatmul.mubr.bf16.gmra.mxu0 %v1619
    %v1658 = vpop.f32.mrf.mxu0
    %v1659 = vadd.f32 0.0, %v1658
    %v1660 = vpop.f32.mrf.mxu0
    %v1661 = vpop.f32.mrf.mxu0
    %v1662 = vadd.f32 0.0, %v1661
    %v1663 = vpop.f32.mrf.mxu0
    %1664 = vdwg.mxu0
    %v1665 = vadd.f32 %v1605, %v1659
    %v1666 = vadd.f32 %v1606, %v1662
    %s1667 = scalar_lea.vmem %s3, 72
    %v1668 = vld [vmem:[%s1667] sm:$0xf]
    %v1669 = vld [vmem:[%s1667 + $0x4] sm:$0x3]
    %1671 = vrot.lane.b32.xlu0 %v1372, 116
    %v1672 = vpop.permute.xlu0 %1671
    %v1675 = vunpack.c.l.b16 %v1668
    %v1676 = vunpack.c.l.b16 %v1669
    %v1677 = vpack.c.b16 %v1676, %v1675
    %v1679 = vsel %vm1132, %v1672, 0
    %v1682 = vsel %vm120, %v1677, 0
    %1684 = vmatprep.subr.bf16.mxu0 0
    %1685 = vmatpush1.bf16.msra.mxu0 0
    %1686 = vmatprep.subr.bf16.mxu0 0
    %1687 = vmatpush1.bf16.msra.mxu0 0
    %1688 = vmatprep.subr.bf16.mxu0 0
    %1689 = vmatpush1.bf16.msra.mxu0 0
    %1690 = vmatprep.subr.bf16.mxu0 0
    %1691 = vmatpush1.bf16.msra.mxu0 0
    %1692 = vmatprep.subr.bf16.mxu0 0
    %1693 = vmatpush1.bf16.msra.mxu0 0
    %1694 = vmatprep.subr.bf16.mxu0 0
    %1695 = vmatpush1.bf16.msra.mxu0 0
    %1696 = vmatprep.subr.bf16.mxu0 0
    %1697 = vmatpush1.bf16.msra.mxu0 0
    %1698 = vmatprep.subr.bf16.mxu0 0
    %1699 = vmatpush1.bf16.msra.mxu0 %v1682
    %1700 = vmatprep.subr.bf16.mxu0 0
    %1701 = vmatpush2.bf16.msra.mxu0 0
    %1702 = vmatprep.subr.bf16.mxu0 0
    %1703 = vmatpush2.bf16.msra.mxu0 0
    %1704 = vmatprep.subr.bf16.mxu0 0
    %1705 = vmatpush2.bf16.msra.mxu0 0
    %1706 = vmatprep.subr.bf16.mxu0 0
    %1707 = vmatpush2.bf16.msra.mxu0 0
    %1708 = vmatprep.subr.bf16.mxu0 0
    %1709 = vmatpush2.bf16.msra.mxu0 0
    %1710 = vmatprep.subr.bf16.mxu0 0
    %1711 = vmatpush2.bf16.msra.mxu0 0
    %1712 = vmatprep.subr.bf16.mxu0 0
    %1713 = vmatpush2.bf16.msra.mxu0 0
    %1714 = vmatprep.subr.bf16.mxu0 0
    %1715 = vmatpush2.bf16.msra.mxu0 0
    %1716 = vmatprep.mubr.bf16.mxu0 0
    %1717 = vmatmul.mubr.bf16.gmra.mxu0 %v1679
    %v1718 = vpop.f32.mrf.mxu0
    %v1719 = vadd.f32 0.0, %v1718
    %v1720 = vpop.f32.mrf.mxu0
    %v1721 = vpop.f32.mrf.mxu0
    %v1722 = vadd.f32 0.0, %v1721
    %v1723 = vpop.f32.mrf.mxu0
    %1724 = vdwg.mxu0
    %v1725 = vadd.f32 %v1665, %v1719
    %v1726 = vadd.f32 %v1666, %v1722
    %s1727 = scalar_lea.vmem %s3, 80
    %v1728 = vld [vmem:[%s1727] sm:$0xf]
    %v1729 = vld [vmem:[%s1727 + $0x4] sm:$0x3]
    %1730 = vrot.lane.b32.xlu0 %v1112, 104
    %v1731 = vpop.permute.xlu0 %1730
    %v1734 = vunpack.c.l.b16 %v1728
    %v1735 = vunpack.c.l.b16 %v1729
    %v1736 = vpack.c.b16 %v1735, %v1734
    %v1738 = vsel %vm1132, %v1731, 0
    %v1741 = vsel %vm120, %v1736, 0
    %1743 = vmatprep.subr.bf16.mxu0 0
    %1744 = vmatpush1.bf16.msra.mxu0 0
    %1745 = vmatprep.subr.bf16.mxu0 0
    %1746 = vmatpush1.bf16.msra.mxu0 0
    %1747 = vmatprep.subr.bf16.mxu0 0
    %1748 = vmatpush1.bf16.msra.mxu0 0
    %1749 = vmatprep.subr.bf16.mxu0 0
    %1750 = vmatpush1.bf16.msra.mxu0 0
    %1751 = vmatprep.subr.bf16.mxu0 0
    %1752 = vmatpush1.bf16.msra.mxu0 0
    %1753 = vmatprep.subr.bf16.mxu0 0
    %1754 = vmatpush1.bf16.msra.mxu0 0
    %1755 = vmatprep.subr.bf16.mxu0 0
    %1756 = vmatpush1.bf16.msra.mxu0 0
    %1757 = vmatprep.subr.bf16.mxu0 0
    %1758 = vmatpush1.bf16.msra.mxu0 %v1741
    %1759 = vmatprep.subr.bf16.mxu0 0
    %1760 = vmatpush2.bf16.msra.mxu0 0
    %1761 = vmatprep.subr.bf16.mxu0 0
    %1762 = vmatpush2.bf16.msra.mxu0 0
    %1763 = vmatprep.subr.bf16.mxu0 0
    %1764 = vmatpush2.bf16.msra.mxu0 0
    %1765 = vmatprep.subr.bf16.mxu0 0
    %1766 = vmatpush2.bf16.msra.mxu0 0
    %1767 = vmatprep.subr.bf16.mxu0 0
    %1768 = vmatpush2.bf16.msra.mxu0 0
    %1769 = vmatprep.subr.bf16.mxu0 0
    %1770 = vmatpush2.bf16.msra.mxu0 0
    %1771 = vmatprep.subr.bf16.mxu0 0
    %1772 = vmatpush2.bf16.msra.mxu0 0
    %1773 = vmatprep.subr.bf16.mxu0 0
    %1774 = vmatpush2.bf16.msra.mxu0 0
    %1775 = vmatprep.mubr.bf16.mxu0 0
    %1776 = vmatmul.mubr.bf16.gmra.mxu0 %v1738
    %v1777 = vpop.f32.mrf.mxu0
    %v1778 = vadd.f32 0.0, %v1777
    %v1779 = vpop.f32.mrf.mxu0
    %v1780 = vpop.f32.mrf.mxu0
    %v1781 = vadd.f32 0.0, %v1780
    %v1782 = vpop.f32.mrf.mxu0
    %1783 = vdwg.mxu0
    %v1784 = vadd.f32 %v1725, %v1778
    %v1785 = vadd.f32 %v1726, %v1781
    %s1786 = scalar_lea.vmem %s3, 88
    %v1787 = vld [vmem:[%s1786] sm:$0xf]
    %v1788 = vld [vmem:[%s1786 + $0x4] sm:$0x3]
    %1789 = vrot.lane.b32.xlu0 %v1126, 104
    %v1790 = vpop.permute.xlu0 %1789
    %v1793 = vunpack.c.l.b16 %v1787
    %v1794 = vunpack.c.l.b16 %v1788
    %v1795 = vpack.c.b16 %v1794, %v1793
    %v1797 = vsel %vm1132, %v1790, 0
    %v1800 = vsel %vm120, %v1795, 0
    %1802 = vmatprep.subr.bf16.mxu0 0
    %1803 = vmatpush1.bf16.msra.mxu0 0
    %1804 = vmatprep.subr.bf16.mxu0 0
    %1805 = vmatpush1.bf16.msra.mxu0 0
    %1806 = vmatprep.subr.bf16.mxu0 0
    %1807 = vmatpush1.bf16.msra.mxu0 0
    %1808 = vmatprep.subr.bf16.mxu0 0
    %1809 = vmatpush1.bf16.msra.mxu0 0
    %1810 = vmatprep.subr.bf16.mxu0 0
    %1811 = vmatpush1.bf16.msra.mxu0 0
    %1812 = vmatprep.subr.bf16.mxu0 0
    %1813 = vmatpush1.bf16.msra.mxu0 0
    %1814 = vmatprep.subr.bf16.mxu0 0
    %1815 = vmatpush1.bf16.msra.mxu0 0
    %1816 = vmatprep.subr.bf16.mxu0 0
    %1817 = vmatpush1.bf16.msra.mxu0 %v1800
    %1818 = vmatprep.subr.bf16.mxu0 0
    %1819 = vmatpush2.bf16.msra.mxu0 0
    %1820 = vmatprep.subr.bf16.mxu0 0
    %1821 = vmatpush2.bf16.msra.mxu0 0
    %1822 = vmatprep.subr.bf16.mxu0 0
    %1823 = vmatpush2.bf16.msra.mxu0 0
    %1824 = vmatprep.subr.bf16.mxu0 0
    %1825 = vmatpush2.bf16.msra.mxu0 0
    %1826 = vmatprep.subr.bf16.mxu0 0
    %1827 = vmatpush2.bf16.msra.mxu0 0
    %1828 = vmatprep.subr.bf16.mxu0 0
    %1829 = vmatpush2.bf16.msra.mxu0 0
    %1830 = vmatprep.subr.bf16.mxu0 0
    %1831 = vmatpush2.bf16.msra.mxu0 0
    %1832 = vmatprep.subr.bf16.mxu0 0
    %1833 = vmatpush2.bf16.msra.mxu0 0
    %1834 = vmatprep.mubr.bf16.mxu0 0
    %1835 = vmatmul.mubr.bf16.gmra.mxu0 %v1797
    %v1836 = vpop.f32.mrf.mxu0
    %v1837 = vadd.f32 0.0, %v1836
    %v1838 = vpop.f32.mrf.mxu0
    %v1839 = vpop.f32.mrf.mxu0
    %v1840 = vadd.f32 0.0, %v1839
    %v1841 = vpop.f32.mrf.mxu0
    %1842 = vdwg.mxu0
    %v1843 = vadd.f32 %v1784, %v1837
    %v1844 = vadd.f32 %v1785, %v1840
    %s1845 = scalar_lea.vmem %s3, 96
    %v1846 = vld [vmem:[%s1845] sm:$0xf]
    %v1847 = vld [vmem:[%s1845 + $0x4] sm:$0x3]
    %1848 = vrot.lane.b32.xlu0 %v1244, 104
    %v1849 = vpop.permute.xlu0 %1848
    %v1852 = vunpack.c.l.b16 %v1846
    %v1853 = vunpack.c.l.b16 %v1847
    %v1854 = vpack.c.b16 %v1853, %v1852
    %v1856 = vsel %vm1132, %v1849, 0
    %v1859 = vsel %vm120, %v1854, 0
    %1861 = vmatprep.subr.bf16.mxu0 0
    %1862 = vmatpush1.bf16.msra.mxu0 0
    %1863 = vmatprep.subr.bf16.mxu0 0
    %1864 = vmatpush1.bf16.msra.mxu0 0
    %1865 = vmatprep.subr.bf16.mxu0 0
    %1866 = vmatpush1.bf16.msra.mxu0 0
    %1867 = vmatprep.subr.bf16.mxu0 0
    %1868 = vmatpush1.bf16.msra.mxu0 0
    %1869 = vmatprep.subr.bf16.mxu0 0
    %1870 = vmatpush1.bf16.msra.mxu0 0
    %1871 = vmatprep.subr.bf16.mxu0 0
    %1872 = vmatpush1.bf16.msra.mxu0 0
    %1873 = vmatprep.subr.bf16.mxu0 0
    %1874 = vmatpush1.bf16.msra.mxu0 0
    %1875 = vmatprep.subr.bf16.mxu0 0
    %1876 = vmatpush1.bf16.msra.mxu0 %v1859
    %1877 = vmatprep.subr.bf16.mxu0 0
    %1878 = vmatpush2.bf16.msra.mxu0 0
    %1879 = vmatprep.subr.bf16.mxu0 0
    %1880 = vmatpush2.bf16.msra.mxu0 0
    %1881 = vmatprep.subr.bf16.mxu0 0
    %1882 = vmatpush2.bf16.msra.mxu0 0
    %1883 = vmatprep.subr.bf16.mxu0 0
    %1884 = vmatpush2.bf16.msra.mxu0 0
    %1885 = vmatprep.subr.bf16.mxu0 0
    %1886 = vmatpush2.bf16.msra.mxu0 0
    %1887 = vmatprep.subr.bf16.mxu0 0
    %1888 = vmatpush2.bf16.msra.mxu0 0
    %1889 = vmatprep.subr.bf16.mxu0 0
    %1890 = vmatpush2.bf16.msra.mxu0 0
    %1891 = vmatprep.subr.bf16.mxu0 0
    %1892 = vmatpush2.bf16.msra.mxu0 0
    %1893 = vmatprep.mubr.bf16.mxu0 0
    %1894 = vmatmul.mubr.bf16.gmra.mxu0 %v1856
    %v1895 = vpop.f32.mrf.mxu0
    %v1896 = vadd.f32 0.0, %v1895
    %v1897 = vpop.f32.mrf.mxu0
    %v1898 = vpop.f32.mrf.mxu0
    %v1899 = vadd.f32 0.0, %v1898
    %v1900 = vpop.f32.mrf.mxu0
    %1901 = vdwg.mxu0
    %v1902 = vadd.f32 %v1843, %v1896
    %v1903 = vadd.f32 %v1844, %v1899
    %s1904 = scalar_lea.vmem %s3, 104
    %v1905 = vld [vmem:[%s1904] sm:$0xf]
    %v1906 = vld [vmem:[%s1904 + $0x4] sm:$0x3]
    %1907 = vrot.lane.b32.xlu0 %v1311, 104
    %v1908 = vpop.permute.xlu0 %1907
    %v1911 = vunpack.c.l.b16 %v1905
    %v1912 = vunpack.c.l.b16 %v1906
    %v1913 = vpack.c.b16 %v1912, %v1911
    %v1915 = vsel %vm1132, %v1908, 0
    %v1918 = vsel %vm120, %v1913, 0
    %1920 = vmatprep.subr.bf16.mxu0 0
    %1921 = vmatpush1.bf16.msra.mxu0 0
    %1922 = vmatprep.subr.bf16.mxu0 0
    %1923 = vmatpush1.bf16.msra.mxu0 0
    %1924 = vmatprep.subr.bf16.mxu0 0
    %1925 = vmatpush1.bf16.msra.mxu0 0
    %1926 = vmatprep.subr.bf16.mxu0 0
    %1927 = vmatpush1.bf16.msra.mxu0 0
    %1928 = vmatprep.subr.bf16.mxu0 0
    %1929 = vmatpush1.bf16.msra.mxu0 0
    %1930 = vmatprep.subr.bf16.mxu0 0
    %1931 = vmatpush1.bf16.msra.mxu0 0
    %1932 = vmatprep.subr.bf16.mxu0 0
    %1933 = vmatpush1.bf16.msra.mxu0 0
    %1934 = vmatprep.subr.bf16.mxu0 0
    %1935 = vmatpush1.bf16.msra.mxu0 %v1918
    %1936 = vmatprep.subr.bf16.mxu0 0
    %1937 = vmatpush2.bf16.msra.mxu0 0
    %1938 = vmatprep.subr.bf16.mxu0 0
    %1939 = vmatpush2.bf16.msra.mxu0 0
    %1940 = vmatprep.subr.bf16.mxu0 0
    %1941 = vmatpush2.bf16.msra.mxu0 0
    %1942 = vmatprep.subr.bf16.mxu0 0
    %1943 = vmatpush2.bf16.msra.mxu0 0
    %1944 = vmatprep.subr.bf16.mxu0 0
    %1945 = vmatpush2.bf16.msra.mxu0 0
    %1946 = vmatprep.subr.bf16.mxu0 0
    %1947 = vmatpush2.bf16.msra.mxu0 0
    %1948 = vmatprep.subr.bf16.mxu0 0
    %1949 = vmatpush2.bf16.msra.mxu0 0
    %1950 = vmatprep.subr.bf16.mxu0 0
    %1951 = vmatpush2.bf16.msra.mxu0 0
    %1952 = vmatprep.mubr.bf16.mxu0 0
    %1953 = vmatmul.mubr.bf16.gmra.mxu0 %v1915
    %v1954 = vpop.f32.mrf.mxu0
    %v1955 = vadd.f32 0.0, %v1954
    %v1956 = vpop.f32.mrf.mxu0
    %v1957 = vpop.f32.mrf.mxu0
    %v1958 = vadd.f32 0.0, %v1957
    %v1959 = vpop.f32.mrf.mxu0
    %1960 = vdwg.mxu0
    %v1961 = vadd.f32 %v1902, %v1955
    %v1962 = vadd.f32 %v1903, %v1958
    %s1963 = scalar_lea.vmem %s3, 112
    %v1964 = vld [vmem:[%s1963] sm:$0xf]
    %v1965 = vld [vmem:[%s1963 + $0x4] sm:$0x3]
    %1966 = vrot.lane.b32.xlu0 %v1372, 104
    %v1967 = vpop.permute.xlu0 %1966
    %v1970 = vunpack.c.l.b16 %v1964
    %v1971 = vunpack.c.l.b16 %v1965
    %v1972 = vpack.c.b16 %v1971, %v1970
    %v1974 = vsel %vm1132, %v1967, 0
    %v1977 = vsel %vm120, %v1972, 0
    %1979 = vmatprep.subr.bf16.mxu0 0
    %1980 = vmatpush1.bf16.msra.mxu0 0
    %1981 = vmatprep.subr.bf16.mxu0 0
    %1982 = vmatpush1.bf16.msra.mxu0 0
    %1983 = vmatprep.subr.bf16.mxu0 0
    %1984 = vmatpush1.bf16.msra.mxu0 0
    %1985 = vmatprep.subr.bf16.mxu0 0
    %1986 = vmatpush1.bf16.msra.mxu0 0
    %1987 = vmatprep.subr.bf16.mxu0 0
    %1988 = vmatpush1.bf16.msra.mxu0 0
    %1989 = vmatprep.subr.bf16.mxu0 0
    %1990 = vmatpush1.bf16.msra.mxu0 0
    %1991 = vmatprep.subr.bf16.mxu0 0
    %1992 = vmatpush1.bf16.msra.mxu0 0
    %1993 = vmatprep.subr.bf16.mxu0 0
    %1994 = vmatpush1.bf16.msra.mxu0 %v1977
    %1995 = vmatprep.subr.bf16.mxu0 0
    %1996 = vmatpush2.bf16.msra.mxu0 0
    %1997 = vmatprep.subr.bf16.mxu0 0
    %1998 = vmatpush2.bf16.msra.mxu0 0
    %1999 = vmatprep.subr.bf16.mxu0 0
    %2000 = vmatpush2.bf16.msra.mxu0 0
    %2001 = vmatprep.subr.bf16.mxu0 0
    %2002 = vmatpush2.bf16.msra.mxu0 0
    %2003 = vmatprep.subr.bf16.mxu0 0
    %2004 = vmatpush2.bf16.msra.mxu0 0
    %2005 = vmatprep.subr.bf16.mxu0 0
    %2006 = vmatpush2.bf16.msra.mxu0 0
    %2007 = vmatprep.subr.bf16.mxu0 0
    %2008 = vmatpush2.bf16.msra.mxu0 0
    %2009 = vmatprep.subr.bf16.mxu0 0
    %2010 = vmatpush2.bf16.msra.mxu0 0
    %2011 = vmatprep.mubr.bf16.mxu0 0
    %2012 = vmatmul.mubr.bf16.gmra.mxu0 %v1974
    %v2013 = vpop.f32.mrf.mxu0
    %v2014 = vadd.f32 0.0, %v2013
    %v2015 = vpop.f32.mrf.mxu0
    %v2016 = vpop.f32.mrf.mxu0
    %v2017 = vadd.f32 0.0, %v2016
    %v2018 = vpop.f32.mrf.mxu0
    %2019 = vdwg.mxu0
    %v2020 = vadd.f32 %v1961, %v2014
    %v2021 = vadd.f32 %v1962, %v2017
    %s2022 = scalar_lea.vmem %s3, 120
    %v2023 = vld [vmem:[%s2022] sm:$0xf]
    %v2024 = vld [vmem:[%s2022 + $0x4] sm:$0x3]
    %2025 = vrot.lane.b32.xlu0 %v1112, 92
    %v2026 = vpop.permute.xlu0 %2025
    %v2029 = vunpack.c.l.b16 %v2023
    %v2030 = vunpack.c.l.b16 %v2024
    %v2031 = vpack.c.b16 %v2030, %v2029
    %v2033 = vsel %vm1132, %v2026, 0
    %v2036 = vsel %vm120, %v2031, 0
    %2038 = vmatprep.subr.bf16.mxu0 0
    %2039 = vmatpush1.bf16.msra.mxu0 0
    %2040 = vmatprep.subr.bf16.mxu0 0
    %2041 = vmatpush1.bf16.msra.mxu0 0
    %2042 = vmatprep.subr.bf16.mxu0 0
    %2043 = vmatpush1.bf16.msra.mxu0 0
    %2044 = vmatprep.subr.bf16.mxu0 0
    %2045 = vmatpush1.bf16.msra.mxu0 0
    %2046 = vmatprep.subr.bf16.mxu0 0
    %2047 = vmatpush1.bf16.msra.mxu0 0
    %2048 = vmatprep.subr.bf16.mxu0 0
    %2049 = vmatpush1.bf16.msra.mxu0 0
    %2050 = vmatprep.subr.bf16.mxu0 0
    %2051 = vmatpush1.bf16.msra.mxu0 0
    %2052 = vmatprep.subr.bf16.mxu0 0
    %2053 = vmatpush1.bf16.msra.mxu0 %v2036
    %2054 = vmatprep.subr.bf16.mxu0 0
    %2055 = vmatpush2.bf16.msra.mxu0 0
    %2056 = vmatprep.subr.bf16.mxu0 0
    %2057 = vmatpush2.bf16.msra.mxu0 0
    %2058 = vmatprep.subr.bf16.mxu0 0
    %2059 = vmatpush2.bf16.msra.mxu0 0
    %2060 = vmatprep.subr.bf16.mxu0 0
    %2061 = vmatpush2.bf16.msra.mxu0 0
    %2062 = vmatprep.subr.bf16.mxu0 0
    %2063 = vmatpush2.bf16.msra.mxu0 0
    %2064 = vmatprep.subr.bf16.mxu0 0
    %2065 = vmatpush2.bf16.msra.mxu0 0
    %2066 = vmatprep.subr.bf16.mxu0 0
    %2067 = vmatpush2.bf16.msra.mxu0 0
    %2068 = vmatprep.subr.bf16.mxu0 0
    %2069 = vmatpush2.bf16.msra.mxu0 0
    %2070 = vmatprep.mubr.bf16.mxu0 0
    %2071 = vmatmul.mubr.bf16.gmra.mxu0 %v2033
    %v2072 = vpop.f32.mrf.mxu0
    %v2073 = vadd.f32 0.0, %v2072
    %v2074 = vpop.f32.mrf.mxu0
    %v2075 = vpop.f32.mrf.mxu0
    %v2076 = vadd.f32 0.0, %v2075
    %v2077 = vpop.f32.mrf.mxu0
    %2078 = vdwg.mxu0
    %v2079 = vadd.f32 %v2020, %v2073
    %v2080 = vadd.f32 %v2021, %v2076
    %s2081 = scalar_lea.vmem %s3, 128
    %v2082 = vld [vmem:[%s2081] sm:$0xf]
    %v2083 = vld [vmem:[%s2081 + $0x4] sm:$0x3]
    %2084 = vrot.lane.b32.xlu0 %v1126, 92
    %v2085 = vpop.permute.xlu0 %2084
    %v2088 = vunpack.c.l.b16 %v2082
    %v2089 = vunpack.c.l.b16 %v2083
    %v2090 = vpack.c.b16 %v2089, %v2088
    %v2092 = vsel %vm1132, %v2085, 0
    %v2095 = vsel %vm120, %v2090, 0
    %2097 = vmatprep.subr.bf16.mxu0 0
    %2098 = vmatpush1.bf16.msra.mxu0 0
    %2099 = vmatprep.subr.bf16.mxu0 0
    %2100 = vmatpush1.bf16.msra.mxu0 0
    %2101 = vmatprep.subr.bf16.mxu0 0
    %2102 = vmatpush1.bf16.msra.mxu0 0
    %2103 = vmatprep.subr.bf16.mxu0 0
    %2104 = vmatpush1.bf16.msra.mxu0 0
    %2105 = vmatprep.subr.bf16.mxu0 0
    %2106 = vmatpush1.bf16.msra.mxu0 0
    %2107 = vmatprep.subr.bf16.mxu0 0
    %2108 = vmatpush1.bf16.msra.mxu0 0
    %2109 = vmatprep.subr.bf16.mxu0 0
    %2110 = vmatpush1.bf16.msra.mxu0 0
    %2111 = vmatprep.subr.bf16.mxu0 0
    %2112 = vmatpush1.bf16.msra.mxu0 %v2095
    %2113 = vmatprep.subr.bf16.mxu0 0
    %2114 = vmatpush2.bf16.msra.mxu0 0
    %2115 = vmatprep.subr.bf16.mxu0 0
    %2116 = vmatpush2.bf16.msra.mxu0 0
    %2117 = vmatprep.subr.bf16.mxu0 0
    %2118 = vmatpush2.bf16.msra.mxu0 0
    %2119 = vmatprep.subr.bf16.mxu0 0
    %2120 = vmatpush2.bf16.msra.mxu0 0
    %2121 = vmatprep.subr.bf16.mxu0 0
    %2122 = vmatpush2.bf16.msra.mxu0 0
    %2123 = vmatprep.subr.bf16.mxu0 0
    %2124 = vmatpush2.bf16.msra.mxu0 0
    %2125 = vmatprep.subr.bf16.mxu0 0
    %2126 = vmatpush2.bf16.msra.mxu0 0
    %2127 = vmatprep.subr.bf16.mxu0 0
    %2128 = vmatpush2.bf16.msra.mxu0 0
    %2129 = vmatprep.mubr.bf16.mxu0 0
    %2130 = vmatmul.mubr.bf16.gmra.mxu0 %v2092
    %v2131 = vpop.f32.mrf.mxu0
    %v2132 = vadd.f32 0.0, %v2131
    %v2133 = vpop.f32.mrf.mxu0
    %v2134 = vpop.f32.mrf.mxu0
    %v2135 = vadd.f32 0.0, %v2134
    %v2136 = vpop.f32.mrf.mxu0
    %2137 = vdwg.mxu0
    %v2138 = vadd.f32 %v2079, %v2132
    %v2139 = vadd.f32 %v2080, %v2135
    %s2140 = scalar_lea.vmem %s3, 136
    %v2141 = vld [vmem:[%s2140] sm:$0xf]
    %v2142 = vld [vmem:[%s2140 + $0x4] sm:$0x3]
    %2143 = vrot.lane.b32.xlu0 %v1244, 92
    %v2144 = vpop.permute.xlu0 %2143
    %v2147 = vunpack.c.l.b16 %v2141
    %v2148 = vunpack.c.l.b16 %v2142
    %v2149 = vpack.c.b16 %v2148, %v2147
    %v2151 = vsel %vm1132, %v2144, 0
    %v2154 = vsel %vm120, %v2149, 0
    %2156 = vmatprep.subr.bf16.mxu0 0
    %2157 = vmatpush1.bf16.msra.mxu0 0
    %2158 = vmatprep.subr.bf16.mxu0 0
    %2159 = vmatpush1.bf16.msra.mxu0 0
    %2160 = vmatprep.subr.bf16.mxu0 0
    %2161 = vmatpush1.bf16.msra.mxu0 0
    %2162 = vmatprep.subr.bf16.mxu0 0
    %2163 = vmatpush1.bf16.msra.mxu0 0
    %2164 = vmatprep.subr.bf16.mxu0 0
    %2165 = vmatpush1.bf16.msra.mxu0 0
    %2166 = vmatprep.subr.bf16.mxu0 0
    %2167 = vmatpush1.bf16.msra.mxu0 0
    %2168 = vmatprep.subr.bf16.mxu0 0
    %2169 = vmatpush1.bf16.msra.mxu0 0
    %2170 = vmatprep.subr.bf16.mxu0 0
    %2171 = vmatpush1.bf16.msra.mxu0 %v2154
    %2172 = vmatprep.subr.bf16.mxu0 0
    %2173 = vmatpush2.bf16.msra.mxu0 0
    %2174 = vmatprep.subr.bf16.mxu0 0
    %2175 = vmatpush2.bf16.msra.mxu0 0
    %2176 = vmatprep.subr.bf16.mxu0 0
    %2177 = vmatpush2.bf16.msra.mxu0 0
    %2178 = vmatprep.subr.bf16.mxu0 0
    %2179 = vmatpush2.bf16.msra.mxu0 0
    %2180 = vmatprep.subr.bf16.mxu0 0
    %2181 = vmatpush2.bf16.msra.mxu0 0
    %2182 = vmatprep.subr.bf16.mxu0 0
    %2183 = vmatpush2.bf16.msra.mxu0 0
    %2184 = vmatprep.subr.bf16.mxu0 0
    %2185 = vmatpush2.bf16.msra.mxu0 0
    %2186 = vmatprep.subr.bf16.mxu0 0
    %2187 = vmatpush2.bf16.msra.mxu0 0
    %2188 = vmatprep.mubr.bf16.mxu0 0
    %2189 = vmatmul.mubr.bf16.gmra.mxu0 %v2151
    %v2190 = vpop.f32.mrf.mxu0
    %v2191 = vadd.f32 0.0, %v2190
    %v2192 = vpop.f32.mrf.mxu0
    %v2193 = vpop.f32.mrf.mxu0
    %v2194 = vadd.f32 0.0, %v2193
    %v2195 = vpop.f32.mrf.mxu0
    %2196 = vdwg.mxu0
    %v2197 = vadd.f32 %v2138, %v2191
    %v2198 = vadd.f32 %v2139, %v2194
    %s2199 = scalar_lea.vmem %s3, 144
    %v2200 = vld [vmem:[%s2199] sm:$0xf]
    %v2201 = vld [vmem:[%s2199 + $0x4] sm:$0x3]
    %2202 = vrot.lane.b32.xlu0 %v1311, 92
    %v2203 = vpop.permute.xlu0 %2202
    %v2206 = vunpack.c.l.b16 %v2200
    %v2207 = vunpack.c.l.b16 %v2201
    %v2208 = vpack.c.b16 %v2207, %v2206
    %v2210 = vsel %vm1132, %v2203, 0
    %v2213 = vsel %vm120, %v2208, 0
    %2215 = vmatprep.subr.bf16.mxu0 0
    %2216 = vmatpush1.bf16.msra.mxu0 0
    %2217 = vmatprep.subr.bf16.mxu0 0
    %2218 = vmatpush1.bf16.msra.mxu0 0
    %2219 = vmatprep.subr.bf16.mxu0 0
    %2220 = vmatpush1.bf16.msra.mxu0 0
    %2221 = vmatprep.subr.bf16.mxu0 0
    %2222 = vmatpush1.bf16.msra.mxu0 0
    %2223 = vmatprep.subr.bf16.mxu0 0
    %2224 = vmatpush1.bf16.msra.mxu0 0
    %2225 = vmatprep.subr.bf16.mxu0 0
    %2226 = vmatpush1.bf16.msra.mxu0 0
    %2227 = vmatprep.subr.bf16.mxu0 0
    %2228 = vmatpush1.bf16.msra.mxu0 0
    %2229 = vmatprep.subr.bf16.mxu0 0
    %2230 = vmatpush1.bf16.msra.mxu0 %v2213
    %2231 = vmatprep.subr.bf16.mxu0 0
    %2232 = vmatpush2.bf16.msra.mxu0 0
    %2233 = vmatprep.subr.bf16.mxu0 0
    %2234 = vmatpush2.bf16.msra.mxu0 0
    %2235 = vmatprep.subr.bf16.mxu0 0
    %2236 = vmatpush2.bf16.msra.mxu0 0
    %2237 = vmatprep.subr.bf16.mxu0 0
    %2238 = vmatpush2.bf16.msra.mxu0 0
    %2239 = vmatprep.subr.bf16.mxu0 0
    %2240 = vmatpush2.bf16.msra.mxu0 0
    %2241 = vmatprep.subr.bf16.mxu0 0
    %2242 = vmatpush2.bf16.msra.mxu0 0
    %2243 = vmatprep.subr.bf16.mxu0 0
    %2244 = vmatpush2.bf16.msra.mxu0 0
    %2245 = vmatprep.subr.bf16.mxu0 0
    %2246 = vmatpush2.bf16.msra.mxu0 0
    %2247 = vmatprep.mubr.bf16.mxu0 0
    %2248 = vmatmul.mubr.bf16.gmra.mxu0 %v2210
    %v2249 = vpop.f32.mrf.mxu0
    %v2250 = vadd.f32 0.0, %v2249
    %v2251 = vpop.f32.mrf.mxu0
    %v2252 = vpop.f32.mrf.mxu0
    %v2253 = vadd.f32 0.0, %v2252
    %v2254 = vpop.f32.mrf.mxu0
    %2255 = vdwg.mxu0
    %v2256 = vadd.f32 %v2197, %v2250
    %v2257 = vadd.f32 %v2198, %v2253
    %s2258 = scalar_lea.vmem %s3, 152
    %v2259 = vld [vmem:[%s2258] sm:$0xf]
    %v2260 = vld [vmem:[%s2258 + $0x4] sm:$0x3]
    %2261 = vrot.lane.b32.xlu0 %v1372, 92
    %v2262 = vpop.permute.xlu0 %2261
    %v2265 = vunpack.c.l.b16 %v2259
    %v2266 = vunpack.c.l.b16 %v2260
    %v2267 = vpack.c.b16 %v2266, %v2265
    %v2269 = vsel %vm1132, %v2262, 0
    %v2272 = vsel %vm120, %v2267, 0
    %2274 = vmatprep.subr.bf16.mxu0 0
    %2275 = vmatpush1.bf16.msra.mxu0 0
    %2276 = vmatprep.subr.bf16.mxu0 0
    %2277 = vmatpush1.bf16.msra.mxu0 0
    %2278 = vmatprep.subr.bf16.mxu0 0
    %2279 = vmatpush1.bf16.msra.mxu0 0
    %2280 = vmatprep.subr.bf16.mxu0 0
    %2281 = vmatpush1.bf16.msra.mxu0 0
    %2282 = vmatprep.subr.bf16.mxu0 0
    %2283 = vmatpush1.bf16.msra.mxu0 0
    %2284 = vmatprep.subr.bf16.mxu0 0
    %2285 = vmatpush1.bf16.msra.mxu0 0
    %2286 = vmatprep.subr.bf16.mxu0 0
    %2287 = vmatpush1.bf16.msra.mxu0 0
    %2288 = vmatprep.subr.bf16.mxu0 0
    %2289 = vmatpush1.bf16.msra.mxu0 %v2272
    %2290 = vmatprep.subr.bf16.mxu0 0
    %2291 = vmatpush2.bf16.msra.mxu0 0
    %2292 = vmatprep.subr.bf16.mxu0 0
    %2293 = vmatpush2.bf16.msra.mxu0 0
    %2294 = vmatprep.subr.bf16.mxu0 0
    %2295 = vmatpush2.bf16.msra.mxu0 0
    %2296 = vmatprep.subr.bf16.mxu0 0
    %2297 = vmatpush2.bf16.msra.mxu0 0
    %2298 = vmatprep.subr.bf16.mxu0 0
    %2299 = vmatpush2.bf16.msra.mxu0 0
    %2300 = vmatprep.subr.bf16.mxu0 0
    %2301 = vmatpush2.bf16.msra.mxu0 0
    %2302 = vmatprep.subr.bf16.mxu0 0
    %2303 = vmatpush2.bf16.msra.mxu0 0
    %2304 = vmatprep.subr.bf16.mxu0 0
    %2305 = vmatpush2.bf16.msra.mxu0 0
    %2306 = vmatprep.mubr.bf16.mxu0 0
    %2307 = vmatmul.mubr.bf16.gmra.mxu0 %v2269
    %v2308 = vpop.f32.mrf.mxu0
    %v2309 = vadd.f32 0.0, %v2308
    %v2310 = vpop.f32.mrf.mxu0
    %v2311 = vpop.f32.mrf.mxu0
    %v2312 = vadd.f32 0.0, %v2311
    %v2313 = vpop.f32.mrf.mxu0
    %2314 = vdwg.mxu0
    %v2315 = vadd.f32 %v2256, %v2309
    %v2316 = vadd.f32 %v2257, %v2312
    %s2317 = scalar_lea.vmem %s3, 160
    %v2318 = vld [vmem:[%s2317] sm:$0xf]
    %v2319 = vld [vmem:[%s2317 + $0x4] sm:$0x3]
    %2320 = vrot.lane.b32.xlu0 %v1112, 80
    %v2321 = vpop.permute.xlu0 %2320
    %v2324 = vunpack.c.l.b16 %v2318
    %v2325 = vunpack.c.l.b16 %v2319
    %v2326 = vpack.c.b16 %v2325, %v2324
    %v2328 = vsel %vm1132, %v2321, 0
    %v2331 = vsel %vm120, %v2326, 0
    %2333 = vmatprep.subr.bf16.mxu0 0
    %2334 = vmatpush1.bf16.msra.mxu0 0
    %2335 = vmatprep.subr.bf16.mxu0 0
    %2336 = vmatpush1.bf16.msra.mxu0 0
    %2337 = vmatprep.subr.bf16.mxu0 0
    %2338 = vmatpush1.bf16.msra.mxu0 0
    %2339 = vmatprep.subr.bf16.mxu0 0
    %2340 = vmatpush1.bf16.msra.mxu0 0
    %2341 = vmatprep.subr.bf16.mxu0 0
    %2342 = vmatpush1.bf16.msra.mxu0 0
    %2343 = vmatprep.subr.bf16.mxu0 0
    %2344 = vmatpush1.bf16.msra.mxu0 0
    %2345 = vmatprep.subr.bf16.mxu0 0
    %2346 = vmatpush1.bf16.msra.mxu0 0
    %2347 = vmatprep.subr.bf16.mxu0 0
    %2348 = vmatpush1.bf16.msra.mxu0 %v2331
    %2349 = vmatprep.subr.bf16.mxu0 0
    %2350 = vmatpush2.bf16.msra.mxu0 0
    %2351 = vmatprep.subr.bf16.mxu0 0
    %2352 = vmatpush2.bf16.msra.mxu0 0
    %2353 = vmatprep.subr.bf16.mxu0 0
    %2354 = vmatpush2.bf16.msra.mxu0 0
    %2355 = vmatprep.subr.bf16.mxu0 0
    %2356 = vmatpush2.bf16.msra.mxu0 0
    %2357 = vmatprep.subr.bf16.mxu0 0
    %2358 = vmatpush2.bf16.msra.mxu0 0
    %2359 = vmatprep.subr.bf16.mxu0 0
    %2360 = vmatpush2.bf16.msra.mxu0 0
    %2361 = vmatprep.subr.bf16.mxu0 0
    %2362 = vmatpush2.bf16.msra.mxu0 0
    %2363 = vmatprep.subr.bf16.mxu0 0
    %2364 = vmatpush2.bf16.msra.mxu0 0
    %2365 = vmatprep.mubr.bf16.mxu0 0
    %2366 = vmatmul.mubr.bf16.gmra.mxu0 %v2328
    %v2367 = vpop.f32.mrf.mxu0
    %v2368 = vadd.f32 0.0, %v2367
    %v2369 = vpop.f32.mrf.mxu0
    %v2370 = vpop.f32.mrf.mxu0
    %v2371 = vadd.f32 0.0, %v2370
    %v2372 = vpop.f32.mrf.mxu0
    %2373 = vdwg.mxu0
    %v2374 = vadd.f32 %v2315, %v2368
    %v2375 = vadd.f32 %v2316, %v2371
    %s2376 = scalar_lea.vmem %s3, 168
    %v2377 = vld [vmem:[%s2376] sm:$0xf]
    %v2378 = vld [vmem:[%s2376 + $0x4] sm:$0x3]
    %2379 = vrot.lane.b32.xlu0 %v1126, 80
    %v2380 = vpop.permute.xlu0 %2379
    %v2383 = vunpack.c.l.b16 %v2377
    %v2384 = vunpack.c.l.b16 %v2378
    %v2385 = vpack.c.b16 %v2384, %v2383
    %v2387 = vsel %vm1132, %v2380, 0
    %v2390 = vsel %vm120, %v2385, 0
    %2392 = vmatprep.subr.bf16.mxu0 0
    %2393 = vmatpush1.bf16.msra.mxu0 0
    %2394 = vmatprep.subr.bf16.mxu0 0
    %2395 = vmatpush1.bf16.msra.mxu0 0
    %2396 = vmatprep.subr.bf16.mxu0 0
    %2397 = vmatpush1.bf16.msra.mxu0 0
    %2398 = vmatprep.subr.bf16.mxu0 0
    %2399 = vmatpush1.bf16.msra.mxu0 0
    %2400 = vmatprep.subr.bf16.mxu0 0
    %2401 = vmatpush1.bf16.msra.mxu0 0
    %2402 = vmatprep.subr.bf16.mxu0 0
    %2403 = vmatpush1.bf16.msra.mxu0 0
    %2404 = vmatprep.subr.bf16.mxu0 0
    %2405 = vmatpush1.bf16.msra.mxu0 0
    %2406 = vmatprep.subr.bf16.mxu0 0
    %2407 = vmatpush1.bf16.msra.mxu0 %v2390
    %2408 = vmatprep.subr.bf16.mxu0 0
    %2409 = vmatpush2.bf16.msra.mxu0 0
    %2410 = vmatprep.subr.bf16.mxu0 0
    %2411 = vmatpush2.bf16.msra.mxu0 0
    %2412 = vmatprep.subr.bf16.mxu0 0
    %2413 = vmatpush2.bf16.msra.mxu0 0
    %2414 = vmatprep.subr.bf16.mxu0 0
    %2415 = vmatpush2.bf16.msra.mxu0 0
    %2416 = vmatprep.subr.bf16.mxu0 0
    %2417 = vmatpush2.bf16.msra.mxu0 0
    %2418 = vmatprep.subr.bf16.mxu0 0
    %2419 = vmatpush2.bf16.msra.mxu0 0
    %2420 = vmatprep.subr.bf16.mxu0 0
    %2421 = vmatpush2.bf16.msra.mxu0 0
    %2422 = vmatprep.subr.bf16.mxu0 0
    %2423 = vmatpush2.bf16.msra.mxu0 0
    %2424 = vmatprep.mubr.bf16.mxu0 0
    %2425 = vmatmul.mubr.bf16.gmra.mxu0 %v2387
    %v2426 = vpop.f32.mrf.mxu0
    %v2427 = vadd.f32 0.0, %v2426
    %v2428 = vpop.f32.mrf.mxu0
    %v2429 = vpop.f32.mrf.mxu0
    %v2430 = vadd.f32 0.0, %v2429
    %v2431 = vpop.f32.mrf.mxu0
    %2432 = vdwg.mxu0
    %v2433 = vadd.f32 %v2374, %v2427
    %v2434 = vadd.f32 %v2375, %v2430
    %s2435 = scalar_lea.vmem %s3, 176
    %v2436 = vld [vmem:[%s2435] sm:$0xf]
    %v2437 = vld [vmem:[%s2435 + $0x4] sm:$0x3]
    %2438 = vrot.lane.b32.xlu0 %v1244, 80
    %v2439 = vpop.permute.xlu0 %2438
    %v2442 = vunpack.c.l.b16 %v2436
    %v2443 = vunpack.c.l.b16 %v2437
    %v2444 = vpack.c.b16 %v2443, %v2442
    %v2446 = vsel %vm1132, %v2439, 0
    %v2449 = vsel %vm120, %v2444, 0
    %2451 = vmatprep.subr.bf16.mxu0 0
    %2452 = vmatpush1.bf16.msra.mxu0 0
    %2453 = vmatprep.subr.bf16.mxu0 0
    %2454 = vmatpush1.bf16.msra.mxu0 0
    %2455 = vmatprep.subr.bf16.mxu0 0
    %2456 = vmatpush1.bf16.msra.mxu0 0
    %2457 = vmatprep.subr.bf16.mxu0 0
    %2458 = vmatpush1.bf16.msra.mxu0 0
    %2459 = vmatprep.subr.bf16.mxu0 0
    %2460 = vmatpush1.bf16.msra.mxu0 0
    %2461 = vmatprep.subr.bf16.mxu0 0
    %2462 = vmatpush1.bf16.msra.mxu0 0
    %2463 = vmatprep.subr.bf16.mxu0 0
    %2464 = vmatpush1.bf16.msra.mxu0 0
    %2465 = vmatprep.subr.bf16.mxu0 0
    %2466 = vmatpush1.bf16.msra.mxu0 %v2449
    %2467 = vmatprep.subr.bf16.mxu0 0
    %2468 = vmatpush2.bf16.msra.mxu0 0
    %2469 = vmatprep.subr.bf16.mxu0 0
    %2470 = vmatpush2.bf16.msra.mxu0 0
    %2471 = vmatprep.subr.bf16.mxu0 0
    %2472 = vmatpush2.bf16.msra.mxu0 0
    %2473 = vmatprep.subr.bf16.mxu0 0
    %2474 = vmatpush2.bf16.msra.mxu0 0
    %2475 = vmatprep.subr.bf16.mxu0 0
    %2476 = vmatpush2.bf16.msra.mxu0 0
    %2477 = vmatprep.subr.bf16.mxu0 0
    %2478 = vmatpush2.bf16.msra.mxu0 0
    %2479 = vmatprep.subr.bf16.mxu0 0
    %2480 = vmatpush2.bf16.msra.mxu0 0
    %2481 = vmatprep.subr.bf16.mxu0 0
    %2482 = vmatpush2.bf16.msra.mxu0 0
    %2483 = vmatprep.mubr.bf16.mxu0 0
    %2484 = vmatmul.mubr.bf16.gmra.mxu0 %v2446
    %v2485 = vpop.f32.mrf.mxu0
    %v2486 = vadd.f32 0.0, %v2485
    %v2487 = vpop.f32.mrf.mxu0
    %v2488 = vpop.f32.mrf.mxu0
    %v2489 = vadd.f32 0.0, %v2488
    %v2490 = vpop.f32.mrf.mxu0
    %2491 = vdwg.mxu0
    %v2492 = vadd.f32 %v2433, %v2486
    %v2493 = vadd.f32 %v2434, %v2489
    %s2494 = scalar_lea.vmem %s3, 184
    %v2495 = vld [vmem:[%s2494] sm:$0xf]
    %v2496 = vld [vmem:[%s2494 + $0x4] sm:$0x3]
    %2497 = vrot.lane.b32.xlu0 %v1311, 80
    %v2498 = vpop.permute.xlu0 %2497
    %v2501 = vunpack.c.l.b16 %v2495
    %v2502 = vunpack.c.l.b16 %v2496
    %v2503 = vpack.c.b16 %v2502, %v2501
    %v2505 = vsel %vm1132, %v2498, 0
    %v2508 = vsel %vm120, %v2503, 0
    %2510 = vmatprep.subr.bf16.mxu0 0
    %2511 = vmatpush1.bf16.msra.mxu0 0
    %2512 = vmatprep.subr.bf16.mxu0 0
    %2513 = vmatpush1.bf16.msra.mxu0 0
    %2514 = vmatprep.subr.bf16.mxu0 0
    %2515 = vmatpush1.bf16.msra.mxu0 0
    %2516 = vmatprep.subr.bf16.mxu0 0
    %2517 = vmatpush1.bf16.msra.mxu0 0
    %2518 = vmatprep.subr.bf16.mxu0 0
    %2519 = vmatpush1.bf16.msra.mxu0 0
    %2520 = vmatprep.subr.bf16.mxu0 0
    %2521 = vmatpush1.bf16.msra.mxu0 0
    %2522 = vmatprep.subr.bf16.mxu0 0
    %2523 = vmatpush1.bf16.msra.mxu0 0
    %2524 = vmatprep.subr.bf16.mxu0 0
    %2525 = vmatpush1.bf16.msra.mxu0 %v2508
    %2526 = vmatprep.subr.bf16.mxu0 0
    %2527 = vmatpush2.bf16.msra.mxu0 0
    %2528 = vmatprep.subr.bf16.mxu0 0
    %2529 = vmatpush2.bf16.msra.mxu0 0
    %2530 = vmatprep.subr.bf16.mxu0 0
    %2531 = vmatpush2.bf16.msra.mxu0 0
    %2532 = vmatprep.subr.bf16.mxu0 0
    %2533 = vmatpush2.bf16.msra.mxu0 0
    %2534 = vmatprep.subr.bf16.mxu0 0
    %2535 = vmatpush2.bf16.msra.mxu0 0
    %2536 = vmatprep.subr.bf16.mxu0 0
    %2537 = vmatpush2.bf16.msra.mxu0 0
    %2538 = vmatprep.subr.bf16.mxu0 0
    %2539 = vmatpush2.bf16.msra.mxu0 0
    %2540 = vmatprep.subr.bf16.mxu0 0
    %2541 = vmatpush2.bf16.msra.mxu0 0
    %2542 = vmatprep.mubr.bf16.mxu0 0
    %2543 = vmatmul.mubr.bf16.gmra.mxu0 %v2505
    %v2544 = vpop.f32.mrf.mxu0
    %v2545 = vadd.f32 0.0, %v2544
    %v2546 = vpop.f32.mrf.mxu0
    %v2547 = vpop.f32.mrf.mxu0
    %v2548 = vadd.f32 0.0, %v2547
    %v2549 = vpop.f32.mrf.mxu0
    %2550 = vdwg.mxu0
    %v2551 = vadd.f32 %v2492, %v2545
    %v2552 = vadd.f32 %v2493, %v2548
    %s2553 = scalar_lea.vmem %s3, 192
    %v2554 = vld [vmem:[%s2553] sm:$0xf]
    %v2555 = vld [vmem:[%s2553 + $0x4] sm:$0x3]
    %2556 = vrot.lane.b32.xlu0 %v1372, 80
    %v2557 = vpop.permute.xlu0 %2556
    %v2560 = vunpack.c.l.b16 %v2554
    %v2561 = vunpack.c.l.b16 %v2555
    %v2562 = vpack.c.b16 %v2561, %v2560
    %v2564 = vsel %vm1132, %v2557, 0
    %v2567 = vsel %vm120, %v2562, 0
    %2569 = vmatprep.subr.bf16.mxu0 0
    %2570 = vmatpush1.bf16.msra.mxu0 0
    %2571 = vmatprep.subr.bf16.mxu0 0
    %2572 = vmatpush1.bf16.msra.mxu0 0
    %2573 = vmatprep.subr.bf16.mxu0 0
    %2574 = vmatpush1.bf16.msra.mxu0 0
    %2575 = vmatprep.subr.bf16.mxu0 0
    %2576 = vmatpush1.bf16.msra.mxu0 0
    %2577 = vmatprep.subr.bf16.mxu0 0
    %2578 = vmatpush1.bf16.msra.mxu0 0
    %2579 = vmatprep.subr.bf16.mxu0 0
    %2580 = vmatpush1.bf16.msra.mxu0 0
    %2581 = vmatprep.subr.bf16.mxu0 0
    %2582 = vmatpush1.bf16.msra.mxu0 0
    %2583 = vmatprep.subr.bf16.mxu0 0
    %2584 = vmatpush1.bf16.msra.mxu0 %v2567
    %2585 = vmatprep.subr.bf16.mxu0 0
    %2586 = vmatpush2.bf16.msra.mxu0 0
    %2587 = vmatprep.subr.bf16.mxu0 0
    %2588 = vmatpush2.bf16.msra.mxu0 0
    %2589 = vmatprep.subr.bf16.mxu0 0
    %2590 = vmatpush2.bf16.msra.mxu0 0
    %2591 = vmatprep.subr.bf16.mxu0 0
    %2592 = vmatpush2.bf16.msra.mxu0 0
    %2593 = vmatprep.subr.bf16.mxu0 0
    %2594 = vmatpush2.bf16.msra.mxu0 0
    %2595 = vmatprep.subr.bf16.mxu0 0
    %2596 = vmatpush2.bf16.msra.mxu0 0
    %2597 = vmatprep.subr.bf16.mxu0 0
    %2598 = vmatpush2.bf16.msra.mxu0 0
    %2599 = vmatprep.subr.bf16.mxu0 0
    %2600 = vmatpush2.bf16.msra.mxu0 0
    %2601 = vmatprep.mubr.bf16.mxu0 0
    %2602 = vmatmul.mubr.bf16.gmra.mxu0 %v2564
    %v2603 = vpop.f32.mrf.mxu0
    %v2604 = vadd.f32 0.0, %v2603
    %v2605 = vpop.f32.mrf.mxu0
    %v2606 = vpop.f32.mrf.mxu0
    %v2607 = vadd.f32 0.0, %v2606
    %v2608 = vpop.f32.mrf.mxu0
    %2609 = vdwg.mxu0
    %v2610 = vadd.f32 %v2551, %v2604
    %v2611 = vadd.f32 %v2552, %v2607
    %s2612 = scalar_lea.vmem %s3, 200
    %v2613 = vld [vmem:[%s2612] sm:$0xf]
    %v2614 = vld [vmem:[%s2612 + $0x4] sm:$0x3]
    %2615 = vrot.lane.b32.xlu0 %v1112, 68
    %v2616 = vpop.permute.xlu0 %2615
    %v2619 = vunpack.c.l.b16 %v2613
    %v2620 = vunpack.c.l.b16 %v2614
    %v2621 = vpack.c.b16 %v2620, %v2619
    %v2623 = vsel %vm1132, %v2616, 0
    %v2626 = vsel %vm120, %v2621, 0
    %2628 = vmatprep.subr.bf16.mxu0 0
    %2629 = vmatpush1.bf16.msra.mxu0 0
    %2630 = vmatprep.subr.bf16.mxu0 0
    %2631 = vmatpush1.bf16.msra.mxu0 0
    %2632 = vmatprep.subr.bf16.mxu0 0
    %2633 = vmatpush1.bf16.msra.mxu0 0
    %2634 = vmatprep.subr.bf16.mxu0 0
    %2635 = vmatpush1.bf16.msra.mxu0 0
    %2636 = vmatprep.subr.bf16.mxu0 0
    %2637 = vmatpush1.bf16.msra.mxu0 0
    %2638 = vmatprep.subr.bf16.mxu0 0
    %2639 = vmatpush1.bf16.msra.mxu0 0
    %2640 = vmatprep.subr.bf16.mxu0 0
    %2641 = vmatpush1.bf16.msra.mxu0 0
    %2642 = vmatprep.subr.bf16.mxu0 0
    %2643 = vmatpush1.bf16.msra.mxu0 %v2626
    %2644 = vmatprep.subr.bf16.mxu0 0
    %2645 = vmatpush2.bf16.msra.mxu0 0
    %2646 = vmatprep.subr.bf16.mxu0 0
    %2647 = vmatpush2.bf16.msra.mxu0 0
    %2648 = vmatprep.subr.bf16.mxu0 0
    %2649 = vmatpush2.bf16.msra.mxu0 0
    %2650 = vmatprep.subr.bf16.mxu0 0
    %2651 = vmatpush2.bf16.msra.mxu0 0
    %2652 = vmatprep.subr.bf16.mxu0 0
    %2653 = vmatpush2.bf16.msra.mxu0 0
    %2654 = vmatprep.subr.bf16.mxu0 0
    %2655 = vmatpush2.bf16.msra.mxu0 0
    %2656 = vmatprep.subr.bf16.mxu0 0
    %2657 = vmatpush2.bf16.msra.mxu0 0
    %2658 = vmatprep.subr.bf16.mxu0 0
    %2659 = vmatpush2.bf16.msra.mxu0 0
    %2660 = vmatprep.mubr.bf16.mxu0 0
    %2661 = vmatmul.mubr.bf16.gmra.mxu0 %v2623
    %v2662 = vpop.f32.mrf.mxu0
    %v2663 = vadd.f32 0.0, %v2662
    %v2664 = vpop.f32.mrf.mxu0
    %v2665 = vpop.f32.mrf.mxu0
    %v2666 = vadd.f32 0.0, %v2665
    %v2667 = vpop.f32.mrf.mxu0
    %2668 = vdwg.mxu0
    %v2669 = vadd.f32 %v2610, %v2663
    %v2670 = vadd.f32 %v2611, %v2666
    %s2671 = scalar_lea.vmem %s3, 208
    %v2672 = vld [vmem:[%s2671] sm:$0xf]
    %v2673 = vld [vmem:[%s2671 + $0x4] sm:$0x3]
    %2674 = vrot.lane.b32.xlu0 %v1126, 68
    %v2675 = vpop.permute.xlu0 %2674
    %v2678 = vunpack.c.l.b16 %v2672
    %v2679 = vunpack.c.l.b16 %v2673
    %v2680 = vpack.c.b16 %v2679, %v2678
    %v2682 = vsel %vm1132, %v2675, 0
    %v2685 = vsel %vm120, %v2680, 0
    %2687 = vmatprep.subr.bf16.mxu0 0
    %2688 = vmatpush1.bf16.msra.mxu0 0
    %2689 = vmatprep.subr.bf16.mxu0 0
    %2690 = vmatpush1.bf16.msra.mxu0 0
    %2691 = vmatprep.subr.bf16.mxu0 0
    %2692 = vmatpush1.bf16.msra.mxu0 0
    %2693 = vmatprep.subr.bf16.mxu0 0
    %2694 = vmatpush1.bf16.msra.mxu0 0
    %2695 = vmatprep.subr.bf16.mxu0 0
    %2696 = vmatpush1.bf16.msra.mxu0 0
    %2697 = vmatprep.subr.bf16.mxu0 0
    %2698 = vmatpush1.bf16.msra.mxu0 0
    %2699 = vmatprep.subr.bf16.mxu0 0
    %2700 = vmatpush1.bf16.msra.mxu0 0
    %2701 = vmatprep.subr.bf16.mxu0 0
    %2702 = vmatpush1.bf16.msra.mxu0 %v2685
    %2703 = vmatprep.subr.bf16.mxu0 0
    %2704 = vmatpush2.bf16.msra.mxu0 0
    %2705 = vmatprep.subr.bf16.mxu0 0
    %2706 = vmatpush2.bf16.msra.mxu0 0
    %2707 = vmatprep.subr.bf16.mxu0 0
    %2708 = vmatpush2.bf16.msra.mxu0 0
    %2709 = vmatprep.subr.bf16.mxu0 0
    %2710 = vmatpush2.bf16.msra.mxu0 0
    %2711 = vmatprep.subr.bf16.mxu0 0
    %2712 = vmatpush2.bf16.msra.mxu0 0
    %2713 = vmatprep.subr.bf16.mxu0 0
    %2714 = vmatpush2.bf16.msra.mxu0 0
    %2715 = vmatprep.subr.bf16.mxu0 0
    %2716 = vmatpush2.bf16.msra.mxu0 0
    %2717 = vmatprep.subr.bf16.mxu0 0
    %2718 = vmatpush2.bf16.msra.mxu0 0
    %2719 = vmatprep.mubr.bf16.mxu0 0
    %2720 = vmatmul.mubr.bf16.gmra.mxu0 %v2682
    %v2721 = vpop.f32.mrf.mxu0
    %v2722 = vadd.f32 0.0, %v2721
    %v2723 = vpop.f32.mrf.mxu0
    %v2724 = vpop.f32.mrf.mxu0
    %v2725 = vadd.f32 0.0, %v2724
    %v2726 = vpop.f32.mrf.mxu0
    %2727 = vdwg.mxu0
    %v2728 = vadd.f32 %v2669, %v2722
    %v2729 = vadd.f32 %v2670, %v2725
    %s2730 = scalar_lea.vmem %s3, 216
    %v2731 = vld [vmem:[%s2730] sm:$0xf]
    %v2732 = vld [vmem:[%s2730 + $0x4] sm:$0x3]
    %2733 = vrot.lane.b32.xlu0 %v1244, 68
    %v2734 = vpop.permute.xlu0 %2733
    %v2737 = vunpack.c.l.b16 %v2731
    %v2738 = vunpack.c.l.b16 %v2732
    %v2739 = vpack.c.b16 %v2738, %v2737
    %v2741 = vsel %vm1132, %v2734, 0
    %v2744 = vsel %vm120, %v2739, 0
    %2746 = vmatprep.subr.bf16.mxu0 0
    %2747 = vmatpush1.bf16.msra.mxu0 0
    %2748 = vmatprep.subr.bf16.mxu0 0
    %2749 = vmatpush1.bf16.msra.mxu0 0
    %2750 = vmatprep.subr.bf16.mxu0 0
    %2751 = vmatpush1.bf16.msra.mxu0 0
    %2752 = vmatprep.subr.bf16.mxu0 0
    %2753 = vmatpush1.bf16.msra.mxu0 0
    %2754 = vmatprep.subr.bf16.mxu0 0
    %2755 = vmatpush1.bf16.msra.mxu0 0
    %2756 = vmatprep.subr.bf16.mxu0 0
    %2757 = vmatpush1.bf16.msra.mxu0 0
    %2758 = vmatprep.subr.bf16.mxu0 0
    %2759 = vmatpush1.bf16.msra.mxu0 0
    %2760 = vmatprep.subr.bf16.mxu0 0
    %2761 = vmatpush1.bf16.msra.mxu0 %v2744
    %2762 = vmatprep.subr.bf16.mxu0 0
    %2763 = vmatpush2.bf16.msra.mxu0 0
    %2764 = vmatprep.subr.bf16.mxu0 0
    %2765 = vmatpush2.bf16.msra.mxu0 0
    %2766 = vmatprep.subr.bf16.mxu0 0
    %2767 = vmatpush2.bf16.msra.mxu0 0
    %2768 = vmatprep.subr.bf16.mxu0 0
    %2769 = vmatpush2.bf16.msra.mxu0 0
    %2770 = vmatprep.subr.bf16.mxu0 0
    %2771 = vmatpush2.bf16.msra.mxu0 0
    %2772 = vmatprep.subr.bf16.mxu0 0
    %2773 = vmatpush2.bf16.msra.mxu0 0
    %2774 = vmatprep.subr.bf16.mxu0 0
    %2775 = vmatpush2.bf16.msra.mxu0 0
    %2776 = vmatprep.subr.bf16.mxu0 0
    %2777 = vmatpush2.bf16.msra.mxu0 0
    %2778 = vmatprep.mubr.bf16.mxu0 0
    %2779 = vmatmul.mubr.bf16.gmra.mxu0 %v2741
    %v2780 = vpop.f32.mrf.mxu0
    %v2781 = vadd.f32 0.0, %v2780
    %v2782 = vpop.f32.mrf.mxu0
    %v2783 = vpop.f32.mrf.mxu0
    %v2784 = vadd.f32 0.0, %v2783
    %v2785 = vpop.f32.mrf.mxu0
    %2786 = vdwg.mxu0
    %v2787 = vadd.f32 %v2728, %v2781
    %v2788 = vadd.f32 %v2729, %v2784
    %s2789 = scalar_lea.vmem %s3, 224
    %v2790 = vld [vmem:[%s2789] sm:$0xf]
    %v2791 = vld [vmem:[%s2789 + $0x4] sm:$0x3]
    %2792 = vrot.lane.b32.xlu0 %v1311, 68
    %v2793 = vpop.permute.xlu0 %2792
    %v2796 = vunpack.c.l.b16 %v2790
    %v2797 = vunpack.c.l.b16 %v2791
    %v2798 = vpack.c.b16 %v2797, %v2796
    %v2800 = vsel %vm1132, %v2793, 0
    %v2803 = vsel %vm120, %v2798, 0
    %2805 = vmatprep.subr.bf16.mxu0 0
    %2806 = vmatpush1.bf16.msra.mxu0 0
    %2807 = vmatprep.subr.bf16.mxu0 0
    %2808 = vmatpush1.bf16.msra.mxu0 0
    %2809 = vmatprep.subr.bf16.mxu0 0
    %2810 = vmatpush1.bf16.msra.mxu0 0
    %2811 = vmatprep.subr.bf16.mxu0 0
    %2812 = vmatpush1.bf16.msra.mxu0 0
    %2813 = vmatprep.subr.bf16.mxu0 0
    %2814 = vmatpush1.bf16.msra.mxu0 0
    %2815 = vmatprep.subr.bf16.mxu0 0
    %2816 = vmatpush1.bf16.msra.mxu0 0
    %2817 = vmatprep.subr.bf16.mxu0 0
    %2818 = vmatpush1.bf16.msra.mxu0 0
    %2819 = vmatprep.subr.bf16.mxu0 0
    %2820 = vmatpush1.bf16.msra.mxu0 %v2803
    %2821 = vmatprep.subr.bf16.mxu0 0
    %2822 = vmatpush2.bf16.msra.mxu0 0
    %2823 = vmatprep.subr.bf16.mxu0 0
    %2824 = vmatpush2.bf16.msra.mxu0 0
    %2825 = vmatprep.subr.bf16.mxu0 0
    %2826 = vmatpush2.bf16.msra.mxu0 0
    %2827 = vmatprep.subr.bf16.mxu0 0
    %2828 = vmatpush2.bf16.msra.mxu0 0
    %2829 = vmatprep.subr.bf16.mxu0 0
    %2830 = vmatpush2.bf16.msra.mxu0 0
    %2831 = vmatprep.subr.bf16.mxu0 0
    %2832 = vmatpush2.bf16.msra.mxu0 0
    %2833 = vmatprep.subr.bf16.mxu0 0
    %2834 = vmatpush2.bf16.msra.mxu0 0
    %2835 = vmatprep.subr.bf16.mxu0 0
    %2836 = vmatpush2.bf16.msra.mxu0 0
    %2837 = vmatprep.mubr.bf16.mxu0 0
    %2838 = vmatmul.mubr.bf16.gmra.mxu0 %v2800
    %v2839 = vpop.f32.mrf.mxu0
    %v2840 = vadd.f32 0.0, %v2839
    %v2841 = vpop.f32.mrf.mxu0
    %v2842 = vpop.f32.mrf.mxu0
    %v2843 = vadd.f32 0.0, %v2842
    %v2844 = vpop.f32.mrf.mxu0
    %2845 = vdwg.mxu0
    %v2846 = vadd.f32 %v2787, %v2840
    %v2847 = vadd.f32 %v2788, %v2843
    %s2848 = scalar_lea.vmem %s3, 232
    %v2849 = vld [vmem:[%s2848] sm:$0xf]
    %v2850 = vld [vmem:[%s2848 + $0x4] sm:$0x3]
    %2851 = vrot.lane.b32.xlu0 %v1372, 68
    %v2852 = vpop.permute.xlu0 %2851
    %v2855 = vunpack.c.l.b16 %v2849
    %v2856 = vunpack.c.l.b16 %v2850
    %v2857 = vpack.c.b16 %v2856, %v2855
    %v2859 = vsel %vm1132, %v2852, 0
    %v2862 = vsel %vm120, %v2857, 0
    %2864 = vmatprep.subr.bf16.mxu0 0
    %2865 = vmatpush1.bf16.msra.mxu0 0
    %2866 = vmatprep.subr.bf16.mxu0 0
    %2867 = vmatpush1.bf16.msra.mxu0 0
    %2868 = vmatprep.subr.bf16.mxu0 0
    %2869 = vmatpush1.bf16.msra.mxu0 0
    %2870 = vmatprep.subr.bf16.mxu0 0
    %2871 = vmatpush1.bf16.msra.mxu0 0
    %2872 = vmatprep.subr.bf16.mxu0 0
    %2873 = vmatpush1.bf16.msra.mxu0 0
    %2874 = vmatprep.subr.bf16.mxu0 0
    %2875 = vmatpush1.bf16.msra.mxu0 0
    %2876 = vmatprep.subr.bf16.mxu0 0
    %2877 = vmatpush1.bf16.msra.mxu0 0
    %2878 = vmatprep.subr.bf16.mxu0 0
    %2879 = vmatpush1.bf16.msra.mxu0 %v2862
    %2880 = vmatprep.subr.bf16.mxu0 0
    %2881 = vmatpush2.bf16.msra.mxu0 0
    %2882 = vmatprep.subr.bf16.mxu0 0
    %2883 = vmatpush2.bf16.msra.mxu0 0
    %2884 = vmatprep.subr.bf16.mxu0 0
    %2885 = vmatpush2.bf16.msra.mxu0 0
    %2886 = vmatprep.subr.bf16.mxu0 0
    %2887 = vmatpush2.bf16.msra.mxu0 0
    %2888 = vmatprep.subr.bf16.mxu0 0
    %2889 = vmatpush2.bf16.msra.mxu0 0
    %2890 = vmatprep.subr.bf16.mxu0 0
    %2891 = vmatpush2.bf16.msra.mxu0 0
    %2892 = vmatprep.subr.bf16.mxu0 0
    %2893 = vmatpush2.bf16.msra.mxu0 0
    %2894 = vmatprep.subr.bf16.mxu0 0
    %2895 = vmatpush2.bf16.msra.mxu0 0
    %2896 = vmatprep.mubr.bf16.mxu0 0
    %2897 = vmatmul.mubr.bf16.gmra.mxu0 %v2859
    %v2898 = vpop.f32.mrf.mxu0
    %v2899 = vadd.f32 0.0, %v2898
    %v2900 = vpop.f32.mrf.mxu0
    %v2901 = vpop.f32.mrf.mxu0
    %v2902 = vadd.f32 0.0, %v2901
    %v2903 = vpop.f32.mrf.mxu0
    %2904 = vdwg.mxu0
    %v2905 = vadd.f32 %v2846, %v2899
    %v2906 = vadd.f32 %v2847, %v2902
    %v2907 = vld [vmem:[%s4] sm:$0x1]
    %v2909 = vlaneseq
    %v2910 = vshrl.u32 %v2909, 7
    %v2911 = vsub.s32 0, %v2910
    %v2912 = vrot.slane %v2907, %v2911
    %v2914 = vadd.f32 %v2905, %v2912
    %v2915 = vadd.f32 %v2906, %v2912
    %v2916 = vmax.f32 %v2914, 0.0
    %v2917 = vmax.f32 %v2915, 0.0
    %v2918 = vpack.c.bf16 %v744, %v744
    %v2919 = vpack.c.bf16 %v2917, %v2916
    %v2921 = vsel %vm952, %v2918, 0
    %2923 = vmatprep.subr.bf16.mxu0 0
    %2924 = vmatpush1.bf16.msra.mxu0 0
    %2925 = vmatprep.subr.bf16.mxu0 0
    %2926 = vmatpush1.bf16.msra.mxu0 0
    %2927 = vmatprep.subr.bf16.mxu0 0
    %2928 = vmatpush1.bf16.msra.mxu0 0
    %2929 = vmatprep.subr.bf16.mxu0 0
    %2930 = vmatpush1.bf16.msra.mxu0 0
    %2931 = vmatprep.subr.bf16.mxu0 0
    %2932 = vmatpush1.bf16.msra.mxu0 0
    %2933 = vmatprep.subr.bf16.mxu0 0
    %2934 = vmatpush1.bf16.msra.mxu0 0
    %2935 = vmatprep.subr.bf16.mxu0 0
    %2936 = vmatpush1.bf16.msra.mxu0 0
    %2937 = vmatprep.subr.bf16.mxu0 0
    %2938 = vmatpush1.bf16.msra.mxu0 %v2919
    %2939 = vmatprep.subr.bf16.mxu0 0
    %2940 = vmatpush2.bf16.msra.mxu0 0
    %2941 = vmatprep.subr.bf16.mxu0 0
    %2942 = vmatpush2.bf16.msra.mxu0 0
    %2943 = vmatprep.subr.bf16.mxu0 0
    %2944 = vmatpush2.bf16.msra.mxu0 0
    %2945 = vmatprep.subr.bf16.mxu0 0
    %2946 = vmatpush2.bf16.msra.mxu0 0
    %2947 = vmatprep.subr.bf16.mxu0 0
    %2948 = vmatpush2.bf16.msra.mxu0 0
    %2949 = vmatprep.subr.bf16.mxu0 0
    %2950 = vmatpush2.bf16.msra.mxu0 0
    %2951 = vmatprep.subr.bf16.mxu0 0
    %2952 = vmatpush2.bf16.msra.mxu0 0
    %2953 = vmatprep.subr.bf16.mxu0 0
    %2954 = vmatpush2.bf16.msra.mxu0 0
    %2955 = vmatprep.mubr.bf16.mxu0 0
    %2956 = vmatmul.mubr.bf16.gmra.mxu0 %v2921
    %v2957 = vpop.f32.mrf.mxu0
    %v2958 = vadd.f32 0.0, %v2957
    %v2959 = vpop.f32.mrf.mxu0
    %v2960 = vpop.f32.mrf.mxu0
    %v2961 = vpop.f32.mrf.mxu0
    %2962 = vdwg.mxu0
    %v2963 = vpack.c.bf16 %v819, %v819
    %v2965 = vsel %vm952, %v2963, 0
    %2967 = vmatprep.subr.bf16.mxu0 0
    %2968 = vmatpush1.bf16.msra.mxu0 0
    %2969 = vmatprep.subr.bf16.mxu0 0
    %2970 = vmatpush1.bf16.msra.mxu0 0
    %2971 = vmatprep.subr.bf16.mxu0 0
    %2972 = vmatpush1.bf16.msra.mxu0 0
    %2973 = vmatprep.subr.bf16.mxu0 0
    %2974 = vmatpush1.bf16.msra.mxu0 0
    %2975 = vmatprep.subr.bf16.mxu0 0
    %2976 = vmatpush1.bf16.msra.mxu0 0
    %2977 = vmatprep.subr.bf16.mxu0 0
    %2978 = vmatpush1.bf16.msra.mxu0 0
    %2979 = vmatprep.subr.bf16.mxu0 0
    %2980 = vmatpush1.bf16.msra.mxu0 0
    %2981 = vmatprep.subr.bf16.mxu0 0
    %2982 = vmatpush1.bf16.msra.mxu0 %v2919
    %2983 = vmatprep.subr.bf16.mxu0 0
    %2984 = vmatpush2.bf16.msra.mxu0 0
    %2985 = vmatprep.subr.bf16.mxu0 0
    %2986 = vmatpush2.bf16.msra.mxu0 0
    %2987 = vmatprep.subr.bf16.mxu0 0
    %2988 = vmatpush2.bf16.msra.mxu0 0
    %2989 = vmatprep.subr.bf16.mxu0 0
    %2990 = vmatpush2.bf16.msra.mxu0 0
    %2991 = vmatprep.subr.bf16.mxu0 0
    %2992 = vmatpush2.bf16.msra.mxu0 0
    %2993 = vmatprep.subr.bf16.mxu0 0
    %2994 = vmatpush2.bf16.msra.mxu0 0
    %2995 = vmatprep.subr.bf16.mxu0 0
    %2996 = vmatpush2.bf16.msra.mxu0 0
    %2997 = vmatprep.subr.bf16.mxu0 0
    %2998 = vmatpush2.bf16.msra.mxu0 0
    %2999 = vmatprep.mubr.bf16.mxu0 0
    %3000 = vmatmul.mubr.bf16.gmra.mxu0 %v2965
    %v3001 = vpop.f32.mrf.mxu0
    %v3002 = vadd.f32 0.0, %v3001
    %v3003 = vpop.f32.mrf.mxu0
    %v3004 = vpop.f32.mrf.mxu0
    %v3005 = vpop.f32.mrf.mxu0
    %3006 = vdwg.mxu0
    %v3007 = vmax.f32 %v2958, %v3002
    %v3008 = vpack.c.bf16 %v3007, %v3007
    %3009 = vmatprep.subr.bf16.mxu0 0
    %3010 = vmatpush1.bf16.msra.mxu0 %v946
    %3011 = vmatprep.subr.bf16.mxu0 0
    %3012 = vmatpush1.bf16.msra.mxu0 %v945
    %3013 = vmatprep.subr.bf16.mxu0 0
    %3014 = vmatpush1.bf16.msra.mxu0 %v944
    %3015 = vmatprep.subr.bf16.mxu0 0
    %3016 = vmatpush1.bf16.msra.mxu0 %v943
    %3017 = vmatprep.subr.bf16.mxu0 0
    %3018 = vmatpush1.bf16.msra.mxu0 %v942
    %3019 = vmatprep.subr.bf16.mxu0 0
    %3020 = vmatpush1.bf16.msra.mxu0 %v941
    %3021 = vmatprep.subr.bf16.mxu0 0
    %3022 = vmatpush1.bf16.msra.mxu0 %v940
    %3023 = vmatprep.subr.bf16.mxu0 0
    %3024 = vmatpush1.bf16.msra.mxu0 %v939
    %3025 = vmatprep.subr.bf16.mxu0 0
    %3026 = vmatpush2.bf16.msra.mxu0 0
    %3027 = vmatprep.subr.bf16.mxu0 0
    %3028 = vmatpush2.bf16.msra.mxu0 0
    %3029 = vmatprep.subr.bf16.mxu0 0
    %3030 = vmatpush2.bf16.msra.mxu0 0
    %3031 = vmatprep.subr.bf16.mxu0 0
    %3032 = vmatpush2.bf16.msra.mxu0 0
    %3033 = vmatprep.subr.bf16.mxu0 0
    %3034 = vmatpush2.bf16.msra.mxu0 0
    %3035 = vmatprep.subr.bf16.mxu0 0
    %3036 = vmatpush2.bf16.msra.mxu0 0
    %3037 = vmatprep.subr.bf16.mxu0 0
    %3038 = vmatpush2.bf16.msra.mxu0 0
    %3039 = vmatprep.subr.bf16.mxu0 0
    %3040 = vmatpush2.bf16.msra.mxu0 0
    %3041 = vmatprep.mubr.bf16.mxu0 0
    %3042 = vmatmul.mubr.bf16.gmra.mxu0 %v3008
    %v3043 = vpop.f32.mrf.mxu0
    %v3044 = vadd.f32 0.0, %v3043
    %v3045 = vpop.f32.mrf.mxu0
    %v3046 = vpop.f32.mrf.mxu0
    %v3047 = vpop.f32.mrf.mxu0
    %3048 = vdwg.mxu0
    %3049 = vmatprep.subr.bf16.mxu0 0
    %3050 = vmatpush1.bf16.msra.mxu0 %v1051
    %3051 = vmatprep.subr.bf16.mxu0 0
    %3052 = vmatpush1.bf16.msra.mxu0 %v1050
    %3053 = vmatprep.subr.bf16.mxu0 0
    %3054 = vmatpush1.bf16.msra.mxu0 %v1049
    %3055 = vmatprep.subr.bf16.mxu0 0
    %3056 = vmatpush1.bf16.msra.mxu0 %v1048
    %3057 = vmatprep.subr.bf16.mxu0 0
    %3058 = vmatpush1.bf16.msra.mxu0 %v1047
    %3059 = vmatprep.subr.bf16.mxu0 0
    %3060 = vmatpush1.bf16.msra.mxu0 %v1046
    %3061 = vmatprep.subr.bf16.mxu0 0
    %3062 = vmatpush1.bf16.msra.mxu0 %v1045
    %3063 = vmatprep.subr.bf16.mxu0 0
    %3064 = vmatpush1.bf16.msra.mxu0 %v1044
    %3065 = vmatprep.subr.bf16.mxu0 0
    %3066 = vmatpush2.bf16.msra.mxu0 0
    %3067 = vmatprep.subr.bf16.mxu0 0
    %3068 = vmatpush2.bf16.msra.mxu0 0
    %3069 = vmatprep.subr.bf16.mxu0 0
    %3070 = vmatpush2.bf16.msra.mxu0 0
    %3071 = vmatprep.subr.bf16.mxu0 0
    %3072 = vmatpush2.bf16.msra.mxu0 0
    %3073 = vmatprep.subr.bf16.mxu0 0
    %3074 = vmatpush2.bf16.msra.mxu0 0
    %3075 = vmatprep.subr.bf16.mxu0 0
    %3076 = vmatpush2.bf16.msra.mxu0 0
    %3077 = vmatprep.subr.bf16.mxu0 0
    %3078 = vmatpush2.bf16.msra.mxu0 0
    %3079 = vmatprep.subr.bf16.mxu0 0
    %3080 = vmatpush2.bf16.msra.mxu0 0
    %3081 = vmatprep.mubr.bf16.mxu0 0
    %3082 = vmatmul.mubr.bf16.gmra.mxu0 %v3008
    %v3083 = vpop.f32.mrf.mxu0
    %v3084 = vadd.f32 0.0, %v3083
    %v3085 = vpop.f32.mrf.mxu0
    %v3086 = vpop.f32.mrf.mxu0
    %v3087 = vpop.f32.mrf.mxu0
    %3088 = vdwg.mxu0
    %v3089 = vmax.f32 %v3044, %v3084
    %v3090 = vmul.u32 %v733, 4
    %vm3091 = vcmp.eq.s32.totalorder %v737, %v3090
    %v3092 = vsel %vm3091, 1.0, 0.0
    %v3093 = vpack.c.bf16 %v3092, %v3092
    %v3094 = vpack.c.bf16 %v3089, %v3089
    %vm3095 = vcmask 64512
    %v3097 = vsel %vm3095, %v3093, 0
    %v3100 = vsel %vm559, %v3094, 0
    %3102 = vmatprep.subr.bf16.mxu0 0
    %3103 = vmatpush1.bf16.msra.mxu0 0
    %3104 = vmatprep.subr.bf16.mxu0 0
    %3105 = vmatpush1.bf16.msra.mxu0 0
    %3106 = vmatprep.subr.bf16.mxu0 0
    %3107 = vmatpush1.bf16.msra.mxu0 0
    %3108 = vmatprep.subr.bf16.mxu0 0
    %3109 = vmatpush1.bf16.msra.mxu0 0
    %3110 = vmatprep.subr.bf16.mxu0 0
    %3111 = vmatpush1.bf16.msra.mxu0 0
    %3112 = vmatprep.subr.bf16.mxu0 0
    %3113 = vmatpush1.bf16.msra.mxu0 0
    %3114 = vmatprep.subr.bf16.mxu0 0
    %3115 = vmatpush1.bf16.msra.mxu0 0
    %3116 = vmatprep.subr.bf16.mxu0 0
    %3117 = vmatpush1.bf16.msra.mxu0 %v3100
    %3118 = vmatprep.subr.bf16.mxu0 0
    %3119 = vmatpush2.bf16.msra.mxu0 0
    %3120 = vmatprep.subr.bf16.mxu0 0
    %3121 = vmatpush2.bf16.msra.mxu0 0
    %3122 = vmatprep.subr.bf16.mxu0 0
    %3123 = vmatpush2.bf16.msra.mxu0 0
    %3124 = vmatprep.subr.bf16.mxu0 0
    %3125 = vmatpush2.bf16.msra.mxu0 0
    %3126 = vmatprep.subr.bf16.mxu0 0
    %3127 = vmatpush2.bf16.msra.mxu0 0
    %3128 = vmatprep.subr.bf16.mxu0 0
    %3129 = vmatpush2.bf16.msra.mxu0 0
    %3130 = vmatprep.subr.bf16.mxu0 0
    %3131 = vmatpush2.bf16.msra.mxu0 0
    %3132 = vmatprep.subr.bf16.mxu0 0
    %3133 = vmatpush2.bf16.msra.mxu0 0
    %3134 = vmatprep.mubr.bf16.mxu0 0
    %3135 = vmatmul.mubr.bf16.gmra.mxu0 %v3097
    %v3136 = vpop.f32.mrf.mxu0
    %v3137 = vadd.f32 0.0, %v3136
    %v3138 = vpop.f32.mrf.mxu0
    %v3139 = vpop.f32.mrf.mxu0
    %v3140 = vpop.f32.mrf.mxu0
    %3141 = vdwg.mxu0
    %v3142 = vld [vmem:[%s5] sm:$0xf]
    %v3143 = vld [vmem:[%s5 + $0x4] sm:$0xf]
    %v3144 = vld [vmem:[%s5 + $0x8] sm:$0xf]
    %v3145 = vld [vmem:[%s5 + $0xc] sm:$0xf]
    %v3146 = vld [vmem:[%s5 + $0x10] sm:$0xf]
    %v3147 = vld [vmem:[%s5 + $0x14] sm:$0xf]
    %v3148 = vld [vmem:[%s5 + $0x18] sm:$0xf]
    %v3149 = vld [vmem:[%s5 + $0x1c] sm:$0xf]
    %v3150 = vpack.c.bf16 %v3137, %v3137
    %v3151 = vadd.s32 %v3090, 1
    %vm3152 = vcmp.eq.s32.totalorder %v737, %v3151
    %v3153 = vsel %vm3152, 1.0, 0.0
    %v3154 = vpack.c.bf16 %v3153, %v3153
    %v3156 = vsel %vm3095, %v3154, 0
    %3158 = vmatprep.subr.bf16.mxu0 0
    %3159 = vmatpush1.bf16.msra.mxu0 0
    %3160 = vmatprep.subr.bf16.mxu0 0
    %3161 = vmatpush1.bf16.msra.mxu0 0
    %3162 = vmatprep.subr.bf16.mxu0 0
    %3163 = vmatpush1.bf16.msra.mxu0 0
    %3164 = vmatprep.subr.bf16.mxu0 0
    %3165 = vmatpush1.bf16.msra.mxu0 0
    %3166 = vmatprep.subr.bf16.mxu0 0
    %3167 = vmatpush1.bf16.msra.mxu0 0
    %3168 = vmatprep.subr.bf16.mxu0 0
    %3169 = vmatpush1.bf16.msra.mxu0 0
    %3170 = vmatprep.subr.bf16.mxu0 0
    %3171 = vmatpush1.bf16.msra.mxu0 0
    %3172 = vmatprep.subr.bf16.mxu0 0
    %3173 = vmatpush1.bf16.msra.mxu0 %v3100
    %3174 = vmatprep.subr.bf16.mxu0 0
    %3175 = vmatpush2.bf16.msra.mxu0 0
    %3176 = vmatprep.subr.bf16.mxu0 0
    %3177 = vmatpush2.bf16.msra.mxu0 0
    %3178 = vmatprep.subr.bf16.mxu0 0
    %3179 = vmatpush2.bf16.msra.mxu0 0
    %3180 = vmatprep.subr.bf16.mxu0 0
    %3181 = vmatpush2.bf16.msra.mxu0 0
    %3182 = vmatprep.subr.bf16.mxu0 0
    %3183 = vmatpush2.bf16.msra.mxu0 0
    %3184 = vmatprep.subr.bf16.mxu0 0
    %3185 = vmatpush2.bf16.msra.mxu0 0
    %3186 = vmatprep.subr.bf16.mxu0 0
    %3187 = vmatpush2.bf16.msra.mxu0 0
    %3188 = vmatprep.subr.bf16.mxu0 0
    %3189 = vmatpush2.bf16.msra.mxu0 0
    %3190 = vmatprep.mubr.bf16.mxu0 0
    %3191 = vmatmul.mubr.bf16.gmra.mxu0 %v3156
    %v3192 = vpop.f32.mrf.mxu0
    %v3193 = vadd.f32 0.0, %v3192
    %v3194 = vpop.f32.mrf.mxu0
    %v3195 = vpop.f32.mrf.mxu0
    %v3196 = vpop.f32.mrf.mxu0
    %3197 = vdwg.mxu0
    %s3198 = scalar_lea.vmem %s5, 32
    %v3199 = vld [vmem:[%s3198] sm:$0xf]
    %v3200 = vld [vmem:[%s3198 + $0x4] sm:$0xf]
    %v3201 = vld [vmem:[%s3198 + $0x8] sm:$0xf]
    %v3202 = vld [vmem:[%s3198 + $0xc] sm:$0xf]
    %v3203 = vld [vmem:[%s3198 + $0x10] sm:$0xf]
    %v3204 = vld [vmem:[%s3198 + $0x14] sm:$0xf]
    %v3205 = vld [vmem:[%s3198 + $0x18] sm:$0xf]
    %v3206 = vld [vmem:[%s3198 + $0x1c] sm:$0xf]
    %v3207 = vpack.c.bf16 %v3193, %v3193
    %v3216 = vunpack.c.l.b16 %v3199
    %v3217 = vunpack.c.l.b16 %v3200
    %v3218 = vunpack.c.l.b16 %v3201
    %v3219 = vunpack.c.l.b16 %v3202
    %v3220 = vunpack.c.l.b16 %v3203
    %v3221 = vunpack.c.l.b16 %v3204
    %v3222 = vunpack.c.l.b16 %v3205
    %v3223 = vunpack.c.l.b16 %v3206
    %v3224 = vpack.c.b16 %v3217, %v3216
    %v3225 = vpack.c.b16 %v3219, %v3218
    %v3226 = vpack.c.b16 %v3221, %v3220
    %v3227 = vpack.c.b16 %v3223, %v3222
    %vm3232 = vcmask 523264
    %v3234 = vsel %vm3232, %v3207, 0
    %3236 = vmatprep.subr.bf16.mxu0 0
    %3237 = vmatpush1.bf16.msra.mxu0 0
    %3238 = vmatprep.subr.bf16.mxu0 0
    %3239 = vmatpush1.bf16.msra.mxu0 0
    %3240 = vmatprep.subr.bf16.mxu0 0
    %3241 = vmatpush1.bf16.msra.mxu0 0
    %3242 = vmatprep.subr.bf16.mxu0 0
    %3243 = vmatpush1.bf16.msra.mxu0 0
    %3244 = vmatprep.subr.bf16.mxu0 0
    %3245 = vmatpush1.bf16.msra.mxu0 %v3227
    %3246 = vmatprep.subr.bf16.mxu0 0
    %3247 = vmatpush1.bf16.msra.mxu0 %v3226
    %3248 = vmatprep.subr.bf16.mxu0 0
    %3249 = vmatpush1.bf16.msra.mxu0 %v3225
    %3250 = vmatprep.subr.bf16.mxu0 0
    %3251 = vmatpush1.bf16.msra.mxu0 %v3224
    %3252 = vmatprep.subr.bf16.mxu0 0
    %3253 = vmatpush2.bf16.msra.mxu0 0
    %3254 = vmatprep.subr.bf16.mxu0 0
    %3255 = vmatpush2.bf16.msra.mxu0 0
    %3256 = vmatprep.subr.bf16.mxu0 0
    %3257 = vmatpush2.bf16.msra.mxu0 0
    %3258 = vmatprep.subr.bf16.mxu0 0
    %3259 = vmatpush2.bf16.msra.mxu0 0
    %3260 = vmatprep.subr.bf16.mxu0 0
    %3261 = vmatpush2.bf16.msra.mxu0 0
    %3262 = vmatprep.subr.bf16.mxu0 0
    %3263 = vmatpush2.bf16.msra.mxu0 0
    %3264 = vmatprep.subr.bf16.mxu0 0
    %3265 = vmatpush2.bf16.msra.mxu0 0
    %3266 = vmatprep.subr.bf16.mxu0 0
    %3267 = vmatpush2.bf16.msra.mxu0 0
    %3268 = vmatprep.mubr.bf16.mxu0 0
    %3269 = vmatmul.mubr.bf16.gmra.mxu0 %v3234
    %v3270 = vpop.f32.mrf.mxu0
    %v3271 = vadd.f32 0.0, %v3270
    %v3272 = vpop.f32.mrf.mxu0
    %v3273 = vpop.f32.mrf.mxu0
    %v3274 = vpop.f32.mrf.mxu0
    %3275 = vdwg.mxu0
    %v3284 = vunpack.c.l.b16 %v3142
    %v3285 = vunpack.c.l.b16 %v3143
    %v3286 = vunpack.c.l.b16 %v3144
    %v3287 = vunpack.c.l.b16 %v3145
    %v3288 = vunpack.c.l.b16 %v3146
    %v3289 = vunpack.c.l.b16 %v3147
    %v3290 = vunpack.c.l.b16 %v3148
    %v3291 = vunpack.c.l.b16 %v3149
    %v3292 = vpack.c.b16 %v3285, %v3284
    %v3293 = vpack.c.b16 %v3287, %v3286
    %v3294 = vpack.c.b16 %v3289, %v3288
    %v3295 = vpack.c.b16 %v3291, %v3290
    %v3301 = vsel %vm3232, %v3150, 0
    %3303 = vmatprep.subr.bf16.mxu0 0
    %3304 = vmatpush1.bf16.msra.mxu0 0
    %3305 = vmatprep.subr.bf16.mxu0 0
    %3306 = vmatpush1.bf16.msra.mxu0 0
    %3307 = vmatprep.subr.bf16.mxu0 0
    %3308 = vmatpush1.bf16.msra.mxu0 0
    %3309 = vmatprep.subr.bf16.mxu0 0
    %3310 = vmatpush1.bf16.msra.mxu0 0
    %3311 = vmatprep.subr.bf16.mxu0 0
    %3312 = vmatpush1.bf16.msra.mxu0 %v3295
    %3313 = vmatprep.subr.bf16.mxu0 0
    %3314 = vmatpush1.bf16.msra.mxu0 %v3294
    %3315 = vmatprep.subr.bf16.mxu0 0
    %3316 = vmatpush1.bf16.msra.mxu0 %v3293
    %3317 = vmatprep.subr.bf16.mxu0 0
    %3318 = vmatpush1.bf16.msra.mxu0 %v3292
    %3319 = vmatprep.subr.bf16.mxu0 0
    %3320 = vmatpush2.bf16.msra.mxu0 0
    %3321 = vmatprep.subr.bf16.mxu0 0
    %3322 = vmatpush2.bf16.msra.mxu0 0
    %3323 = vmatprep.subr.bf16.mxu0 0
    %3324 = vmatpush2.bf16.msra.mxu0 0
    %3325 = vmatprep.subr.bf16.mxu0 0
    %3326 = vmatpush2.bf16.msra.mxu0 0
    %3327 = vmatprep.subr.bf16.mxu0 0
    %3328 = vmatpush2.bf16.msra.mxu0 0
    %3329 = vmatprep.subr.bf16.mxu0 0
    %3330 = vmatpush2.bf16.msra.mxu0 0
    %3331 = vmatprep.subr.bf16.mxu0 0
    %3332 = vmatpush2.bf16.msra.mxu0 0
    %3333 = vmatprep.subr.bf16.mxu0 0
    %3334 = vmatpush2.bf16.msra.mxu0 0
    %3335 = vmatprep.mubr.bf16.mxu0 0
    %3336 = vmatmul.mubr.bf16.gmra.mxu0 %v3301
    %v3337 = vpop.f32.mrf.mxu0
    %v3338 = vadd.f32 %v3271, %v3337
    %v3339 = vpop.f32.mrf.mxu0
    %v3340 = vpop.f32.mrf.mxu0
    %v3341 = vpop.f32.mrf.mxu0
    %3342 = vdwg.mxu0
    %v3343 = vadd.s32 %v3090, 2
    %vm3344 = vcmp.eq.s32.totalorder %v737, %v3343
    %v3345 = vsel %vm3344, 1.0, 0.0
    %v3346 = vpack.c.bf16 %v3345, %v3345
    %v3348 = vsel %vm3095, %v3346, 0
    %3350 = vmatprep.subr.bf16.mxu0 0
    %3351 = vmatpush1.bf16.msra.mxu0 0
    %3352 = vmatprep.subr.bf16.mxu0 0
    %3353 = vmatpush1.bf16.msra.mxu0 0
    %3354 = vmatprep.subr.bf16.mxu0 0
    %3355 = vmatpush1.bf16.msra.mxu0 0
    %3356 = vmatprep.subr.bf16.mxu0 0
    %3357 = vmatpush1.bf16.msra.mxu0 0
    %3358 = vmatprep.subr.bf16.mxu0 0
    %3359 = vmatpush1.bf16.msra.mxu0 0
    %3360 = vmatprep.subr.bf16.mxu0 0
    %3361 = vmatpush1.bf16.msra.mxu0 0
    %3362 = vmatprep.subr.bf16.mxu0 0
    %3363 = vmatpush1.bf16.msra.mxu0 0
    %3364 = vmatprep.subr.bf16.mxu0 0
    %3365 = vmatpush1.bf16.msra.mxu0 %v3100
    %3366 = vmatprep.subr.bf16.mxu0 0
    %3367 = vmatpush2.bf16.msra.mxu0 0
    %3368 = vmatprep.subr.bf16.mxu0 0
    %3369 = vmatpush2.bf16.msra.mxu0 0
    %3370 = vmatprep.subr.bf16.mxu0 0
    %3371 = vmatpush2.bf16.msra.mxu0 0
    %3372 = vmatprep.subr.bf16.mxu0 0
    %3373 = vmatpush2.bf16.msra.mxu0 0
    %3374 = vmatprep.subr.bf16.mxu0 0
    %3375 = vmatpush2.bf16.msra.mxu0 0
    %3376 = vmatprep.subr.bf16.mxu0 0
    %3377 = vmatpush2.bf16.msra.mxu0 0
    %3378 = vmatprep.subr.bf16.mxu0 0
    %3379 = vmatpush2.bf16.msra.mxu0 0
    %3380 = vmatprep.subr.bf16.mxu0 0
    %3381 = vmatpush2.bf16.msra.mxu0 0
    %3382 = vmatprep.mubr.bf16.mxu0 0
    %3383 = vmatmul.mubr.bf16.gmra.mxu0 %v3348
    %v3384 = vpop.f32.mrf.mxu0
    %v3385 = vadd.f32 0.0, %v3384
    %v3386 = vpop.f32.mrf.mxu0
    %v3387 = vpop.f32.mrf.mxu0
    %v3388 = vpop.f32.mrf.mxu0
    %3389 = vdwg.mxu0
    %s3390 = scalar_lea.vmem %s5, 64
    %v3391 = vld [vmem:[%s3390] sm:$0xf]
    %v3392 = vld [vmem:[%s3390 + $0x4] sm:$0xf]
    %v3393 = vld [vmem:[%s3390 + $0x8] sm:$0xf]
    %v3394 = vld [vmem:[%s3390 + $0xc] sm:$0xf]
    %v3395 = vld [vmem:[%s3390 + $0x10] sm:$0xf]
    %v3396 = vld [vmem:[%s3390 + $0x14] sm:$0xf]
    %v3397 = vld [vmem:[%s3390 + $0x18] sm:$0xf]
    %v3398 = vld [vmem:[%s3390 + $0x1c] sm:$0xf]
    %v3399 = vpack.c.bf16 %v3385, %v3385
    %v3408 = vunpack.c.l.b16 %v3391
    %v3409 = vunpack.c.l.b16 %v3392
    %v3410 = vunpack.c.l.b16 %v3393
    %v3411 = vunpack.c.l.b16 %v3394
    %v3412 = vunpack.c.l.b16 %v3395
    %v3413 = vunpack.c.l.b16 %v3396
    %v3414 = vunpack.c.l.b16 %v3397
    %v3415 = vunpack.c.l.b16 %v3398
    %v3416 = vpack.c.b16 %v3409, %v3408
    %v3417 = vpack.c.b16 %v3411, %v3410
    %v3418 = vpack.c.b16 %v3413, %v3412
    %v3419 = vpack.c.b16 %v3415, %v3414
    %v3425 = vsel %vm3232, %v3399, 0
    %3427 = vmatprep.subr.bf16.mxu0 0
    %3428 = vmatpush1.bf16.msra.mxu0 0
    %3429 = vmatprep.subr.bf16.mxu0 0
    %3430 = vmatpush1.bf16.msra.mxu0 0
    %3431 = vmatprep.subr.bf16.mxu0 0
    %3432 = vmatpush1.bf16.msra.mxu0 0
    %3433 = vmatprep.subr.bf16.mxu0 0
    %3434 = vmatpush1.bf16.msra.mxu0 0
    %3435 = vmatprep.subr.bf16.mxu0 0
    %3436 = vmatpush1.bf16.msra.mxu0 %v3419
    %3437 = vmatprep.subr.bf16.mxu0 0
    %3438 = vmatpush1.bf16.msra.mxu0 %v3418
    %3439 = vmatprep.subr.bf16.mxu0 0
    %3440 = vmatpush1.bf16.msra.mxu0 %v3417
    %3441 = vmatprep.subr.bf16.mxu0 0
    %3442 = vmatpush1.bf16.msra.mxu0 %v3416
    %3443 = vmatprep.subr.bf16.mxu0 0
    %3444 = vmatpush2.bf16.msra.mxu0 0
    %3445 = vmatprep.subr.bf16.mxu0 0
    %3446 = vmatpush2.bf16.msra.mxu0 0
    %3447 = vmatprep.subr.bf16.mxu0 0
    %3448 = vmatpush2.bf16.msra.mxu0 0
    %3449 = vmatprep.subr.bf16.mxu0 0
    %3450 = vmatpush2.bf16.msra.mxu0 0
    %3451 = vmatprep.subr.bf16.mxu0 0
    %3452 = vmatpush2.bf16.msra.mxu0 0
    %3453 = vmatprep.subr.bf16.mxu0 0
    %3454 = vmatpush2.bf16.msra.mxu0 0
    %3455 = vmatprep.subr.bf16.mxu0 0
    %3456 = vmatpush2.bf16.msra.mxu0 0
    %3457 = vmatprep.subr.bf16.mxu0 0
    %3458 = vmatpush2.bf16.msra.mxu0 0
    %3459 = vmatprep.mubr.bf16.mxu0 0
    %3460 = vmatmul.mubr.bf16.gmra.mxu0 %v3425
    %v3461 = vpop.f32.mrf.mxu0
    %v3462 = vadd.f32 0.0, %v3461
    %v3463 = vpop.f32.mrf.mxu0
    %v3464 = vpop.f32.mrf.mxu0
    %v3465 = vpop.f32.mrf.mxu0
    %3466 = vdwg.mxu0
    %v3467 = vadd.f32 %v3338, %v3462
    %v3468 = vadd.s32 %v3090, 3
    %vm3469 = vcmp.eq.s32.totalorder %v737, %v3468
    %v3470 = vsel %vm3469, 1.0, 0.0
    %v3471 = vpack.c.bf16 %v3470, %v3470
    %v3473 = vsel %vm3095, %v3471, 0
    %3475 = vmatprep.subr.bf16.mxu0 0
    %3476 = vmatpush1.bf16.msra.mxu0 0
    %3477 = vmatprep.subr.bf16.mxu0 0
    %3478 = vmatpush1.bf16.msra.mxu0 0
    %3479 = vmatprep.subr.bf16.mxu0 0
    %3480 = vmatpush1.bf16.msra.mxu0 0
    %3481 = vmatprep.subr.bf16.mxu0 0
    %3482 = vmatpush1.bf16.msra.mxu0 0
    %3483 = vmatprep.subr.bf16.mxu0 0
    %3484 = vmatpush1.bf16.msra.mxu0 0
    %3485 = vmatprep.subr.bf16.mxu0 0
    %3486 = vmatpush1.bf16.msra.mxu0 0
    %3487 = vmatprep.subr.bf16.mxu0 0
    %3488 = vmatpush1.bf16.msra.mxu0 0
    %3489 = vmatprep.subr.bf16.mxu0 0
    %3490 = vmatpush1.bf16.msra.mxu0 %v3100
    %3491 = vmatprep.subr.bf16.mxu0 0
    %3492 = vmatpush2.bf16.msra.mxu0 0
    %3493 = vmatprep.subr.bf16.mxu0 0
    %3494 = vmatpush2.bf16.msra.mxu0 0
    %3495 = vmatprep.subr.bf16.mxu0 0
    %3496 = vmatpush2.bf16.msra.mxu0 0
    %3497 = vmatprep.subr.bf16.mxu0 0
    %3498 = vmatpush2.bf16.msra.mxu0 0
    %3499 = vmatprep.subr.bf16.mxu0 0
    %3500 = vmatpush2.bf16.msra.mxu0 0
    %3501 = vmatprep.subr.bf16.mxu0 0
    %3502 = vmatpush2.bf16.msra.mxu0 0
    %3503 = vmatprep.subr.bf16.mxu0 0
    %3504 = vmatpush2.bf16.msra.mxu0 0
    %3505 = vmatprep.subr.bf16.mxu0 0
    %3506 = vmatpush2.bf16.msra.mxu0 0
    %3507 = vmatprep.mubr.bf16.mxu0 0
    %3508 = vmatmul.mubr.bf16.gmra.mxu0 %v3473
    %v3509 = vpop.f32.mrf.mxu0
    %v3510 = vadd.f32 0.0, %v3509
    %v3511 = vpop.f32.mrf.mxu0
    %v3512 = vpop.f32.mrf.mxu0
    %v3513 = vpop.f32.mrf.mxu0
    %3514 = vdwg.mxu0
    %s3515 = scalar_lea.vmem %s5, 96
    %v3516 = vld [vmem:[%s3515] sm:$0xf]
    %v3517 = vld [vmem:[%s3515 + $0x4] sm:$0xf]
    %v3518 = vld [vmem:[%s3515 + $0x8] sm:$0xf]
    %v3519 = vld [vmem:[%s3515 + $0xc] sm:$0xf]
    %v3520 = vld [vmem:[%s3515 + $0x10] sm:$0xf]
    %v3521 = vld [vmem:[%s3515 + $0x14] sm:$0xf]
    %v3522 = vld [vmem:[%s3515 + $0x18] sm:$0xf]
    %v3523 = vld [vmem:[%s3515 + $0x1c] sm:$0xf]
    %v3524 = vpack.c.bf16 %v3510, %v3510
    %v3533 = vunpack.c.l.b16 %v3516
    %v3534 = vunpack.c.l.b16 %v3517
    %v3535 = vunpack.c.l.b16 %v3518
    %v3536 = vunpack.c.l.b16 %v3519
    %v3537 = vunpack.c.l.b16 %v3520
    %v3538 = vunpack.c.l.b16 %v3521
    %v3539 = vunpack.c.l.b16 %v3522
    %v3540 = vunpack.c.l.b16 %v3523
    %v3541 = vpack.c.b16 %v3534, %v3533
    %v3542 = vpack.c.b16 %v3536, %v3535
    %v3543 = vpack.c.b16 %v3538, %v3537
    %v3544 = vpack.c.b16 %v3540, %v3539
    %v3550 = vsel %vm3232, %v3524, 0
    %3552 = vmatprep.subr.bf16.mxu0 0
    %3553 = vmatpush1.bf16.msra.mxu0 0
    %3554 = vmatprep.subr.bf16.mxu0 0
    %3555 = vmatpush1.bf16.msra.mxu0 0
    %3556 = vmatprep.subr.bf16.mxu0 0
    %3557 = vmatpush1.bf16.msra.mxu0 0
    %3558 = vmatprep.subr.bf16.mxu0 0
    %3559 = vmatpush1.bf16.msra.mxu0 0
    %3560 = vmatprep.subr.bf16.mxu0 0
    %3561 = vmatpush1.bf16.msra.mxu0 %v3544
    %3562 = vmatprep.subr.bf16.mxu0 0
    %3563 = vmatpush1.bf16.msra.mxu0 %v3543
    %3564 = vmatprep.subr.bf16.mxu0 0
    %3565 = vmatpush1.bf16.msra.mxu0 %v3542
    %3566 = vmatprep.subr.bf16.mxu0 0
    %3567 = vmatpush1.bf16.msra.mxu0 %v3541
    %3568 = vmatprep.subr.bf16.mxu0 0
    %3569 = vmatpush2.bf16.msra.mxu0 0
    %3570 = vmatprep.subr.bf16.mxu0 0
    %3571 = vmatpush2.bf16.msra.mxu0 0
    %3572 = vmatprep.subr.bf16.mxu0 0
    %3573 = vmatpush2.bf16.msra.mxu0 0
    %3574 = vmatprep.subr.bf16.mxu0 0
    %3575 = vmatpush2.bf16.msra.mxu0 0
    %3576 = vmatprep.subr.bf16.mxu0 0
    %3577 = vmatpush2.bf16.msra.mxu0 0
    %3578 = vmatprep.subr.bf16.mxu0 0
    %3579 = vmatpush2.bf16.msra.mxu0 0
    %3580 = vmatprep.subr.bf16.mxu0 0
    %3581 = vmatpush2.bf16.msra.mxu0 0
    %3582 = vmatprep.subr.bf16.mxu0 0
    %3583 = vmatpush2.bf16.msra.mxu0 0
    %3584 = vmatprep.mubr.bf16.mxu0 0
    %3585 = vmatmul.mubr.bf16.gmra.mxu0 %v3550
    %v3586 = vpop.f32.mrf.mxu0
    %v3587 = vadd.f32 0.0, %v3586
    %v3588 = vpop.f32.mrf.mxu0
    %v3589 = vpop.f32.mrf.mxu0
    %v3590 = vpop.f32.mrf.mxu0
    %3591 = vdwg.mxu0
    %v3592 = vadd.f32 %v3467, %v3587
    %v3593 = vld [vmem:[%s6] sm:$0x1]
    %v3595 = vlaneseq
    %v3596 = vshrl.u32 %v3595, 7
    %v3597 = vsub.s32 0, %v3596
    %v3598 = vrot.slane %v3593, %v3597
    %v3600 = vadd.f32 %v3592, %v3598
    %v3601 = vmax.f32 %v3600, 0.0
    %v3602 = vld [vmem:[%s7] sm:$0xf]
    %v3603 = vld [vmem:[%s7 + $0x4] sm:$0xf]
    %v3604 = vld [vmem:[%s7 + $0x8] sm:$0xf]
    %v3605 = vld [vmem:[%s7 + $0xc] sm:$0xf]
    %v3606 = vld [vmem:[%s7 + $0x10] sm:$0xf]
    %v3607 = vld [vmem:[%s7 + $0x14] sm:$0xf]
    %v3608 = vld [vmem:[%s7 + $0x18] sm:$0xf]
    %v3609 = vld [vmem:[%s7 + $0x1c] sm:$0xf]
    %v3610 = vld [vmem:[%s7 + $0x20] sm:$0xf]
    %v3611 = vld [vmem:[%s7 + $0x24] sm:$0xf]
    %v3612 = vld [vmem:[%s7 + $0x28] sm:$0xf]
    %v3613 = vld [vmem:[%s7 + $0x2c] sm:$0xf]
    %v3614 = vld [vmem:[%s7 + $0x30] sm:$0xf]
    %v3615 = vld [vmem:[%s7 + $0x34] sm:$0xf]
    %v3616 = vld [vmem:[%s7 + $0x38] sm:$0xf]
    %v3617 = vld [vmem:[%s7 + $0x3c] sm:$0xf]
    %v3618 = vpack.c.bf16 %v3601, %v3601
    %v3619 = vld [vmem:[%s8] sm:$0x1]
    %v3621 = vlaneseq
    %v3622 = vshrl.u32 %v3621, 7
    %v3623 = vsub.s32 0, %v3622
    %v3624 = vrot.slane %v3619, %v3623
    %v3642 = vunpack.c.l.b16 %v3602
    %v3643 = vunpack.c.l.b16 %v3603
    %v3644 = vunpack.c.l.b16 %v3604
    %v3645 = vunpack.c.l.b16 %v3605
    %v3646 = vunpack.c.l.b16 %v3606
    %v3647 = vunpack.c.l.b16 %v3607
    %v3648 = vunpack.c.l.b16 %v3608
    %v3649 = vunpack.c.l.b16 %v3609
    %v3650 = vunpack.c.l.b16 %v3610
    %v3651 = vunpack.c.l.b16 %v3611
    %v3652 = vunpack.c.l.b16 %v3612
    %v3653 = vunpack.c.l.b16 %v3613
    %v3654 = vunpack.c.l.b16 %v3614
    %v3655 = vunpack.c.l.b16 %v3615
    %v3656 = vunpack.c.l.b16 %v3616
    %v3657 = vunpack.c.l.b16 %v3617
    %v3658 = vpack.c.b16 %v3643, %v3642
    %v3659 = vpack.c.b16 %v3645, %v3644
    %v3660 = vpack.c.b16 %v3647, %v3646
    %v3661 = vpack.c.b16 %v3649, %v3648
    %v3662 = vpack.c.b16 %v3651, %v3650
    %v3663 = vpack.c.b16 %v3653, %v3652
    %v3664 = vpack.c.b16 %v3655, %v3654
    %v3665 = vpack.c.b16 %v3657, %v3656
    %3674 = vmatprep.subr.bf16.mxu0 0
    %3675 = vmatpush1.bf16.msra.mxu0 %v3665
    %3676 = vmatprep.subr.bf16.mxu0 0
    %3677 = vmatpush1.bf16.msra.mxu0 %v3664
    %3678 = vmatprep.subr.bf16.mxu0 0
    %3679 = vmatpush1.bf16.msra.mxu0 %v3663
    %3680 = vmatprep.subr.bf16.mxu0 0
    %3681 = vmatpush1.bf16.msra.mxu0 %v3662
    %3682 = vmatprep.subr.bf16.mxu0 0
    %3683 = vmatpush1.bf16.msra.mxu0 %v3661
    %3684 = vmatprep.subr.bf16.mxu0 0
    %3685 = vmatpush1.bf16.msra.mxu0 %v3660
    %3686 = vmatprep.subr.bf16.mxu0 0
    %3687 = vmatpush1.bf16.msra.mxu0 %v3659
    %3688 = vmatprep.subr.bf16.mxu0 0
    %3689 = vmatpush1.bf16.msra.mxu0 %v3658
    %3690 = vmatprep.subr.bf16.mxu0 0
    %3691 = vmatpush2.bf16.msra.mxu0 0
    %3692 = vmatprep.subr.bf16.mxu0 0
    %3693 = vmatpush2.bf16.msra.mxu0 0
    %3694 = vmatprep.subr.bf16.mxu0 0
    %3695 = vmatpush2.bf16.msra.mxu0 0
    %3696 = vmatprep.subr.bf16.mxu0 0
    %3697 = vmatpush2.bf16.msra.mxu0 0
    %3698 = vmatprep.subr.bf16.mxu0 0
    %3699 = vmatpush2.bf16.msra.mxu0 0
    %3700 = vmatprep.subr.bf16.mxu0 0
    %3701 = vmatpush2.bf16.msra.mxu0 0
    %3702 = vmatprep.subr.bf16.mxu0 0
    %3703 = vmatpush2.bf16.msra.mxu0 0
    %3704 = vmatprep.subr.bf16.mxu0 0
    %3705 = vmatpush2.bf16.msra.mxu0 0
    %3706 = vmatprep.mubr.bf16.mxu0 0
    %3707 = vmatmul.mubr.bf16.gmra.mxu0 %v3618
    %v3708 = vpop.f32.mrf.mxu0
    %v3709 = vadd.f32 %v3624, %v3708
    %v3710 = vpop.f32.mrf.mxu0
    %v3711 = vpop.f32.mrf.mxu0
    %v3712 = vpop.f32.mrf.mxu0
    %3713 = vdwg.mxu0
    %v3714 = vmax.f32 %v3709, 0.0
    %v3715 = vld [vmem:[%s9] sm:$0xf]
    %v3716 = vld [vmem:[%s9 + $0x4] sm:$0xf]
    %v3717 = vld [vmem:[%s9 + $0x8] sm:$0xf]
    %v3718 = vld [vmem:[%s9 + $0xc] sm:$0xf]
    %v3719 = vld [vmem:[%s9 + $0x10] sm:$0xf]
    %v3720 = vld [vmem:[%s9 + $0x14] sm:$0xf]
    %v3721 = vld [vmem:[%s9 + $0x18] sm:$0xf]
    %v3722 = vld [vmem:[%s9 + $0x1c] sm:$0xf]
    %v3723 = vld [vmem:[%s9 + $0x20] sm:$0xf]
    %v3724 = vld [vmem:[%s9 + $0x24] sm:$0xf]
    %v3725 = vld [vmem:[%s9 + $0x28] sm:$0xf]
    %v3726 = vld [vmem:[%s9 + $0x2c] sm:$0xf]
    %v3727 = vld [vmem:[%s9 + $0x30] sm:$0xf]
    %v3728 = vld [vmem:[%s9 + $0x34] sm:$0xf]
    %v3729 = vld [vmem:[%s9 + $0x38] sm:$0xf]
    %v3730 = vld [vmem:[%s9 + $0x3c] sm:$0xf]
    %v3731 = vpack.c.bf16 %v3714, %v3714
    %v3732 = vld [vmem:[%s10] sm:$0x1]
    %v3734 = vlaneseq
    %v3735 = vshrl.u32 %v3734, 7
    %v3736 = vsub.s32 0, %v3735
    %v3737 = vrot.slane %v3732, %v3736
    %v3755 = vunpack.c.l.b16 %v3715
    %v3756 = vunpack.c.l.b16 %v3716
    %v3757 = vunpack.c.l.b16 %v3717
    %v3758 = vunpack.c.l.b16 %v3718
    %v3759 = vunpack.c.l.b16 %v3719
    %v3760 = vunpack.c.l.b16 %v3720
    %v3761 = vunpack.c.l.b16 %v3721
    %v3762 = vunpack.c.l.b16 %v3722
    %v3763 = vunpack.c.l.b16 %v3723
    %v3764 = vunpack.c.l.b16 %v3724
    %v3765 = vunpack.c.l.b16 %v3725
    %v3766 = vunpack.c.l.b16 %v3726
    %v3767 = vunpack.c.l.b16 %v3727
    %v3768 = vunpack.c.l.b16 %v3728
    %v3769 = vunpack.c.l.b16 %v3729
    %v3770 = vunpack.c.l.b16 %v3730
    %v3771 = vpack.c.b16 %v3756, %v3755
    %v3772 = vpack.c.b16 %v3758, %v3757
    %v3773 = vpack.c.b16 %v3760, %v3759
    %v3774 = vpack.c.b16 %v3762, %v3761
    %v3775 = vpack.c.b16 %v3764, %v3763
    %v3776 = vpack.c.b16 %v3766, %v3765
    %v3777 = vpack.c.b16 %v3768, %v3767
    %v3778 = vpack.c.b16 %v3770, %v3769
    %3787 = vmatprep.subr.bf16.mxu0 0
    %3788 = vmatpush1.bf16.msra.mxu0 %v3778
    %3789 = vmatprep.subr.bf16.mxu0 0
    %3790 = vmatpush1.bf16.msra.mxu0 %v3777
    %3791 = vmatprep.subr.bf16.mxu0 0
    %3792 = vmatpush1.bf16.msra.mxu0 %v3776
    %3793 = vmatprep.subr.bf16.mxu0 0
    %3794 = vmatpush1.bf16.msra.mxu0 %v3775
    %3795 = vmatprep.subr.bf16.mxu0 0
    %3796 = vmatpush1.bf16.msra.mxu0 %v3774
    %3797 = vmatprep.subr.bf16.mxu0 0
    %3798 = vmatpush1.bf16.msra.mxu0 %v3773
    %3799 = vmatprep.subr.bf16.mxu0 0
    %3800 = vmatpush1.bf16.msra.mxu0 %v3772
    %3801 = vmatprep.subr.bf16.mxu0 0
    %3802 = vmatpush1.bf16.msra.mxu0 %v3771
    %3803 = vmatprep.subr.bf16.mxu0 0
    %3804 = vmatpush2.bf16.msra.mxu0 0
    %3805 = vmatprep.subr.bf16.mxu0 0
    %3806 = vmatpush2.bf16.msra.mxu0 0
    %3807 = vmatprep.subr.bf16.mxu0 0
    %3808 = vmatpush2.bf16.msra.mxu0 0
    %3809 = vmatprep.subr.bf16.mxu0 0
    %3810 = vmatpush2.bf16.msra.mxu0 0
    %3811 = vmatprep.subr.bf16.mxu0 0
    %3812 = vmatpush2.bf16.msra.mxu0 0
    %3813 = vmatprep.subr.bf16.mxu0 0
    %3814 = vmatpush2.bf16.msra.mxu0 0
    %3815 = vmatprep.subr.bf16.mxu0 0
    %3816 = vmatpush2.bf16.msra.mxu0 0
    %3817 = vmatprep.subr.bf16.mxu0 0
    %3818 = vmatpush2.bf16.msra.mxu0 0
    %3819 = vmatprep.mubr.bf16.mxu0 0
    %3820 = vmatmul.mubr.bf16.gmra.mxu0 %v3731
    %v3821 = vpop.f32.mrf.mxu0
    %v3822 = vadd.f32 %v3737, %v3821
    %v3823 = vpop.f32.mrf.mxu0
    %v3824 = vpop.f32.mrf.mxu0
    %v3825 = vpop.f32.mrf.mxu0
    %3826 = vdwg.mxu0
    %v3827 = vmax.f32 %v3822, 0.0
    %vm3828 = vcmask 74752
    %3829 = vst.msk [vmem:[#allocation2] sm:$0x3] %vm3828, %v3827
    // Predicated region
    $region46: #{lenet5_forward.1} parent=1 // pred_check
      _
    $region47: #{lenet5_forward.1} parent=1 // pred_check_branch
      %3831 = sbr.rel (0) target = $region49
    $region48: #{lenet5_forward.1} parent=1 // pred_region
      %s3833 = ssub.s32 32, 32
      %3834 = vsyncadd [#allocation3], %s3833
      %s3836 = sshll.u32 [#allocation2], 4
      %s3837 = int_to_ptr.vmem [resolvable:$true] %s3836
      %3839 = dma.vmem_to_hbm [thread:$0]  %s3837, 32, %s11, [#allocation3]
    $region49: #{lenet5_forward.1} parent=1 // pred_fallthru
      _
    // Predicated region
    $region50: #{lenet5_forward.1} parent=1 // pred_check
      _
    $region51: #{lenet5_forward.1} parent=1 // pred_check_branch
      %3841 = sbr.rel (0) target = $region53
    $region52: #{lenet5_forward.1} parent=1 // pred_region
      %3842 = dma.done [#allocation3], 32
    $region53: #{lenet5_forward.1} parent=1 // pred_fallthru
      _
    %3843 = vsyncpa [#allocation3], 1

</llo_original>
